<compile_context>
chip_gen: v7x
topology: tpu7x:2x2x1
jax: 0.10.0
libtpu: 0.0.40
codegen_flags: <defaults>
</compile_context>

<pallas_src>
import jax
import jax.numpy as jnp
from jax.experimental import pallas as pl
from jax.experimental.pallas import tpu as pltpu


# ---------------------------------------------------------------------------
# Pallas kernels: (Cout, K) x (K, bm) matmul fused with activation.
# Output is lane-dense: last dim = bm (a multiple of 128).
# ---------------------------------------------------------------------------
def _conv_elu_kernel(w_ref, p_ref, o_ref):
    acc = jnp.dot(w_ref[...], p_ref[...], preferred_element_type=jnp.float32)
    # ELU(alpha=1): x if x > 0 else exp(x) - 1   (computed in f32)
    o_ref[...] = jnp.where(acc > 0.0, acc, jnp.exp(acc) - 1.0).astype(o_ref.dtype)


def _conv_softmax_kernel(w_ref, p_ref, o_ref):
    acc = jnp.dot(w_ref[...], p_ref[...], preferred_element_type=jnp.float32)
    # softmax over the channel axis (rows); exact division, no approx reciprocal
    m = jnp.max(acc, axis=0, keepdims=True)
    e = jnp.exp(acc - m)
    o_ref[...] = (e / jnp.sum(e, axis=0, keepdims=True)).astype(o_ref.dtype)


# ---------------------------------------------------------------------------
# Tiling helper
# ---------------------------------------------------------------------------
def _choose_bm(m_pad, bytes_per_col, target_cols=4096, vmem_budget_bytes=12 << 20):
    """Pick the M-tile width (lanes): a multiple of 128 that divides m_pad,
    capped by target_cols and by a conservative double-buffered VMEM budget
    (v7x has only 64 MiB physical / 32 MiB default scoped VMEM).  When there is
    enough work, keep >= 2 grid steps so both v7x TensorCores are used."""
    q = m_pad // 128
    cap = max(1, vmem_budget_bytes // max(1, 2 * bytes_per_col * 128))
    limit = max(1, min(target_cols // 128, cap))
    if m_pad >= 2048:
        limit = min(limit, max(1, q // 2))
    best = 1
    for d in range(1, q + 1):
        if q % d == 0 and d <= limit:
            best = d
    return 128 * best


# ---------------------------------------------------------------------------
# im2col (XLA glue), channel-major: (C, N, H, W) -> (K, M)
#   K = k*k*C (tap-major, channel-minor), M = N*OH*OW  (lane axis)
# ---------------------------------------------------------------------------
def _im2col_t(x_cnhw, k, s, p):
    C, N, H, W = x_cnhw.shape
    xp = jnp.pad(x_cnhw, ((0, 0), (0, 0), (p, p), (p, p)))
    OH = (H + 2 * p - k) // s + 1
    OW = (W + 2 * p - k) // s + 1
    taps = []
    for kh in range(k):
        for kw in range(k):
            taps.append(xp[:, :, kh:kh + s * OH:s, kw:kw + s * OW:s])  # (C,N,OH,OW)
    pat = jnp.stack(taps, axis=0)                   # (k*k, C, N, OH, OW)
    pat = pat.reshape(k * k * C, N * OH * OW)       # row order: (kh, kw, c)
    return pat, (N, OH, OW)


def _matmul_act(w2, patches, activation, out_dtype):
    """out = act(w2 @ patches):  (Cout, K) x (K, M_pad) -> (Cout, M_pad)."""
    cout, K = w2.shape
    K2, m_pad = patches.shape
    assert K == K2 and m_pad % 128 == 0
    bytes_per_col = K * patches.dtype.itemsize + cout * jnp.dtype(out_dtype).itemsize
    bm = _choose_bm(m_pad, bytes_per_col)

    kern = _conv_elu_kernel if activation == "elu" else _conv_softmax_kernel
    cost = pl.CostEstimate(
        flops=2 * m_pad * K * cout,
        transcendentals=m_pad * cout,
        bytes_accessed=int(patches.size * patches.dtype.itemsize
                           + w2.size * w2.dtype.itemsize
                           + m_pad * cout * jnp.dtype(out_dtype).itemsize),
    )
    return pl.pallas_call(
        kern,
        out_shape=jax.ShapeDtypeStruct((cout, m_pad), out_dtype),
        grid=(m_pad // bm,),
        in_specs=[
            pl.BlockSpec((cout, K), lambda i: (0, 0)),   # weights: small, resident
            pl.BlockSpec((K, bm), lambda i: (0, i)),     # patches: tiled along lanes
        ],
        out_specs=pl.BlockSpec((cout, bm), lambda i: (0, i)),  # lane-dense output
        compiler_params=pltpu.CompilerParams(dimension_semantics=("parallel",)),
        cost_estimate=cost,
    )(w2, patches)


def _conv_layer(x_cnhw, w, k, s, p, activation, out_dtype):
    """x: (Cin, N, H, W); w: PyTorch layout (Cout, Cin, KH, KW).
    Returns (Cout, N, OH, OW) in out_dtype."""
    cout = w.shape[0]
    patches, (N, OH, OW) = _im2col_t(x_cnhw, k, s, p)
    K, M = patches.shape
    m_pad = ((M + 127) // 128) * 128
    if m_pad != M:                          # keep the lane axis a multiple of 128
        patches = jnp.pad(patches, ((0, 0), (0, m_pad - M)))
    # bf16 matmul inputs (accumulation stays f32 inside the kernel)
    patches = patches.astype(jnp.bfloat16)
    w2 = jnp.transpose(w, (0, 2, 3, 1)).reshape(cout, K).astype(jnp.bfloat16)
    out = _matmul_act(w2, patches, activation, out_dtype)      # (Cout, m_pad)
    return out[:, :M].reshape(cout, N, OH, OW)


# ---------------------------------------------------------------------------
# Model: parameter init + forward
# ---------------------------------------------------------------------------
def init_params(key, action_space, in_channels=3, num_features=4):
    chans = [in_channels, num_features, num_features * 2, num_features * 4,
             num_features * 8, num_features * 16, action_space]
    params = []
    for i in range(6):
        key, sub = jax.random.split(key)
        cin, cout = chans[i], chans[i + 1]
        fan_in = cin * 4 * 4
        w = jax.random.normal(sub, (cout, cin, 4, 4), jnp.float32) * (2.0 / fan_in) ** 0.5
        params.append(w)
    return params


@jax.jit
def model_forward(x_nchw, params):
    # NCHW -> channel-major (C, N, H, W); bf16 activations between ELU layers.
    x = jnp.transpose(x_nchw, (1, 0, 2, 3)).astype(jnp.bfloat16)
    for i in range(5):
        x = _conv_layer(x, params[i], k=4, s=2, p=1,
                        activation="elu", out_dtype=jnp.bfloat16)
    x = _conv_layer(x, params[5], k=4, s=1, p=0,
                    activation="softmax", out_dtype=jnp.float32)
    # (A, N, 1, 1) -> NCHW (N, A, 1, 1)
    return jnp.transpose(x, (1, 0, 2, 3))


if __name__ == "__main__":
    key = jax.random.PRNGKey(0)
    k_param, k_input = jax.random.split(key)

    action_space = 6
    params = init_params(k_param, action_space=action_space, in_channels=3, num_features=4)

    # 128x128 is the smallest spatial size the conv stack supports
    # (5 stride-2 halvings -> 4x4, then a final 4x4 valid conv -> 1x1).
    x = jax.random.normal(k_input, (2, 3, 128, 128), jnp.float32)

    out = model_forward(x, params)
    out = jax.block_until_ready(out)

    assert out.shape == (2, action_space, 1, 1), out.shape
    sums = jnp.sum(out, axis=1)
    assert jnp.allclose(sums, 1.0, atol=1e-5), sums
    print("KERNEL_OK")
</pallas_src>

<mosaic_0001>
module attributes {stable_mosaic.version = 11 : i64} {
  func.func @_conv_elu_kernel(%arg0: i32, %arg1: memref<4x48xbf16, #tpu.memory_space<vmem>>, %arg2: memref<48x4096xbf16, #tpu.memory_space<vmem>>, %arg3: memref<4x4096xbf16, #tpu.memory_space<vmem>>) attributes {dimension_semantics = [#tpu.dimension_semantics<parallel>], iteration_bounds = array<i64: 2>, scalar_prefetch = 0 : i64, scratch_operands = 0 : i64, tpu.core_type = #tpu.core_type<tc>, window_params = [{pipeline_mode = #tpu.pipeline_mode<synchronous>, transform_indices = @transform_0, window_bounds = array<i64: 4, 48>}, {transform_indices = @transform_1, window_bounds = array<i64: 48, 4096>}, {transform_indices = @transform_2, window_bounds = array<i64: 4, 4096>}]} {
    %c0 = arith.constant 0 : index
    %c0_0 = arith.constant 0 : index
    %0 = vector.load %arg1[%c0, %c0_0] : memref<4x48xbf16, #tpu.memory_space<vmem>>, vector<4x48xbf16>
    %c0_1 = arith.constant 0 : index
    %c0_2 = arith.constant 0 : index
    %1 = vector.load %arg2[%c0_1, %c0_2] : memref<48x4096xbf16, #tpu.memory_space<vmem>>, vector<48x4096xbf16>
    %cst = arith.constant dense<0.000000e+00> : vector<4x4096xf32>
    %2 = tpu.matmul %0, %1, %cst {dimension_numbers = #tpu.dot_dimension_numbers<[1], [0], [0], [1], [0, 0, 1, 1], [], []>} : vector<4x48xbf16>, vector<48x4096xbf16>, vector<4x4096xf32> -> vector<4x4096xf32>
    %cst_3 = arith.constant 0.000000e+00 : f32
    %3 = vector.broadcast %cst_3 : f32 to vector<4x4096xf32>
    %4 = arith.cmpf ogt, %2, %3 : vector<4x4096xf32>
    %5 = math.exp %2 : vector<4x4096xf32>
    %cst_4 = arith.constant 1.000000e+00 : f32
    %6 = vector.broadcast %cst_4 : f32 to vector<4x4096xf32>
    %7 = arith.subf %5, %6 : vector<4x4096xf32>
    %8 = arith.select %4, %2, %7 : vector<4x4096xi1>, vector<4x4096xf32>
    %9 = arith.truncf %8 : vector<4x4096xf32> to vector<4x4096xbf16>
    %c0_5 = arith.constant 0 : index
    %c0_6 = arith.constant 0 : index
    %10 = vector.load %arg3[%c0_5, %c0_6] : memref<4x4096xbf16, #tpu.memory_space<vmem>>, vector<4x4096xbf16>
    tpu.vector_store %arg3[%c0_5, %c0_6], %9 {strides = array<i32>} : memref<4x4096xbf16, #tpu.memory_space<vmem>>, vector<4x4096xbf16>,
    return
  }
  func.func @transform_0(%arg0: i32) -> (i32, i32) {
    %c0_i32 = arith.constant 0 : i32
    %c0_i32_0 = arith.constant 0 : i32
    %c0_i32_1 = arith.constant 0 : i32
    return %c0_i32, %c0_i32_0 : i32, i32
  }
  func.func @transform_1(%arg0: i32) -> (i32, i32) {
    %c0_i32 = arith.constant 0 : i32
    %c0_i32_0 = arith.constant 0 : i32
    return %c0_i32, %arg0 : i32, i32
  }
  func.func @transform_2(%arg0: i32) -> (i32, i32) {
    %c0_i32 = arith.constant 0 : i32
    %c0_i32_0 = arith.constant 0 : i32
    return %c0_i32, %arg0 : i32, i32
  }
}

module attributes {stable_mosaic.version = 11 : i64} {
  func.func @_conv_elu_kernel(%arg0: i32, %arg1: memref<8x64xbf16, #tpu.memory_space<vmem>>, %arg2: memref<64x1024xbf16, #tpu.memory_space<vmem>>, %arg3: memref<8x1024xbf16, #tpu.memory_space<vmem>>) attributes {dimension_semantics = [#tpu.dimension_semantics<parallel>], iteration_bounds = array<i64: 2>, scalar_prefetch = 0 : i64, scratch_operands = 0 : i64, tpu.core_type = #tpu.core_type<tc>, window_params = [{pipeline_mode = #tpu.pipeline_mode<synchronous>, transform_indices = @transform_0, window_bounds = array<i64: 8, 64>}, {transform_indices = @transform_1, window_bounds = array<i64: 64, 1024>}, {transform_indices = @transform_2, window_bounds = array<i64: 8, 1024>}]} {
    %c0 = arith.constant 0 : index
    %c0_0 = arith.constant 0 : index
    %0 = vector.load %arg1[%c0, %c0_0] : memref<8x64xbf16, #tpu.memory_space<vmem>>, vector<8x64xbf16>
    %c0_1 = arith.constant 0 : index
    %c0_2 = arith.constant 0 : index
    %1 = vector.load %arg2[%c0_1, %c0_2] : memref<64x1024xbf16, #tpu.memory_space<vmem>>, vector<64x1024xbf16>
    %cst = arith.constant dense<0.000000e+00> : vector<8x1024xf32>
    %2 = tpu.matmul %0, %1, %cst {dimension_numbers = #tpu.dot_dimension_numbers<[1], [0], [0], [1], [0, 0, 1, 1], [], []>} : vector<8x64xbf16>, vector<64x1024xbf16>, vector<8x1024xf32> -> vector<8x1024xf32>
    %cst_3 = arith.constant 0.000000e+00 : f32
    %3 = vector.broadcast %cst_3 : f32 to vector<8x1024xf32>
    %4 = arith.cmpf ogt, %2, %3 : vector<8x1024xf32>
    %5 = math.exp %2 : vector<8x1024xf32>
    %cst_4 = arith.constant 1.000000e+00 : f32
    %6 = vector.broadcast %cst_4 : f32 to vector<8x1024xf32>
    %7 = arith.subf %5, %6 : vector<8x1024xf32>
    %8 = arith.select %4, %2, %7 : vector<8x1024xi1>, vector<8x1024xf32>
    %9 = arith.truncf %8 : vector<8x1024xf32> to vector<8x1024xbf16>
    %c0_5 = arith.constant 0 : index
    %c0_6 = arith.constant 0 : index
    %10 = vector.load %arg3[%c0_5, %c0_6] : memref<8x1024xbf16, #tpu.memory_space<vmem>>, vector<8x1024xbf16>
    tpu.vector_store %arg3[%c0_5, %c0_6], %9 {strides = array<i32>} : memref<8x1024xbf16, #tpu.memory_space<vmem>>, vector<8x1024xbf16>,
    return
  }
  func.func @transform_0(%arg0: i32) -> (i32, i32) {
    %c0_i32 = arith.constant 0 : i32
    %c0_i32_0 = arith.constant 0 : i32
    %c0_i32_1 = arith.constant 0 : i32
    return %c0_i32, %c0_i32_0 : i32, i32
  }
  func.func @transform_1(%arg0: i32) -> (i32, i32) {
    %c0_i32 = arith.constant 0 : i32
    %c0_i32_0 = arith.constant 0 : i32
    return %c0_i32, %arg0 : i32, i32
  }
  func.func @transform_2(%arg0: i32) -> (i32, i32) {
    %c0_i32 = arith.constant 0 : i32
    %c0_i32_0 = arith.constant 0 : i32
    return %c0_i32, %arg0 : i32, i32
  }
}

module attributes {stable_mosaic.version = 11 : i64} {
  func.func @_conv_elu_kernel(%arg0: i32, %arg1: memref<16x128xbf16, #tpu.memory_space<vmem>>, %arg2: memref<128x512xbf16, #tpu.memory_space<vmem>>, %arg3: memref<16x512xbf16, #tpu.memory_space<vmem>>) attributes {dimension_semantics = [#tpu.dimension_semantics<parallel>], iteration_bounds = array<i64: 1>, scalar_prefetch = 0 : i64, scratch_operands = 0 : i64, tpu.core_type = #tpu.core_type<tc>, window_params = [{pipeline_mode = #tpu.pipeline_mode<synchronous>, transform_indices = @transform_0, window_bounds = array<i64: 16, 128>}, {transform_indices = @transform_1, window_bounds = array<i64: 128, 512>}, {transform_indices = @transform_2, window_bounds = array<i64: 16, 512>}]} {
    %c0 = arith.constant 0 : index
    %c0_0 = arith.constant 0 : index
    %0 = vector.load %arg1[%c0, %c0_0] : memref<16x128xbf16, #tpu.memory_space<vmem>>, vector<16x128xbf16>
    %c0_1 = arith.constant 0 : index
    %c0_2 = arith.constant 0 : index
    %1 = vector.load %arg2[%c0_1, %c0_2] : memref<128x512xbf16, #tpu.memory_space<vmem>>, vector<128x512xbf16>
    %cst = arith.constant dense<0.000000e+00> : vector<16x512xf32>
    %2 = tpu.matmul %0, %1, %cst {dimension_numbers = #tpu.dot_dimension_numbers<[1], [0], [0], [1], [0, 0, 1, 1], [], []>} : vector<16x128xbf16>, vector<128x512xbf16>, vector<16x512xf32> -> vector<16x512xf32>
    %cst_3 = arith.constant 0.000000e+00 : f32
    %3 = vector.broadcast %cst_3 : f32 to vector<16x512xf32>
    %4 = arith.cmpf ogt, %2, %3 : vector<16x512xf32>
    %5 = math.exp %2 : vector<16x512xf32>
    %cst_4 = arith.constant 1.000000e+00 : f32
    %6 = vector.broadcast %cst_4 : f32 to vector<16x512xf32>
    %7 = arith.subf %5, %6 : vector<16x512xf32>
    %8 = arith.select %4, %2, %7 : vector<16x512xi1>, vector<16x512xf32>
    %9 = arith.truncf %8 : vector<16x512xf32> to vector<16x512xbf16>
    %c0_5 = arith.constant 0 : index
    %c0_6 = arith.constant 0 : index
    %10 = vector.load %arg3[%c0_5, %c0_6] : memref<16x512xbf16, #tpu.memory_space<vmem>>, vector<16x512xbf16>
    tpu.vector_store %arg3[%c0_5, %c0_6], %9 {strides = array<i32>} : memref<16x512xbf16, #tpu.memory_space<vmem>>, vector<16x512xbf16>,
    return
  }
  func.func @transform_0(%arg0: i32) -> (i32, i32) {
    %c0_i32 = arith.constant 0 : i32
    %c0_i32_0 = arith.constant 0 : i32
    %c0_i32_1 = arith.constant 0 : i32
    return %c0_i32, %c0_i32_0 : i32, i32
  }
  func.func @transform_1(%arg0: i32) -> (i32, i32) {
    %c0_i32 = arith.constant 0 : i32
    %c0_i32_0 = arith.constant 0 : i32
    return %c0_i32, %arg0 : i32, i32
  }
  func.func @transform_2(%arg0: i32) -> (i32, i32) {
    %c0_i32 = arith.constant 0 : i32
    %c0_i32_0 = arith.constant 0 : i32
    return %c0_i32, %arg0 : i32, i32
  }
}

module attributes {stable_mosaic.version = 11 : i64} {
  func.func @_conv_elu_kernel(%arg0: i32, %arg1: memref<32x256xbf16, #tpu.memory_space<vmem>>, %arg2: memref<256x128xbf16, #tpu.memory_space<vmem>>, %arg3: memref<32x128xbf16, #tpu.memory_space<vmem>>) attributes {dimension_semantics = [#tpu.dimension_semantics<parallel>], iteration_bounds = array<i64: 1>, scalar_prefetch = 0 : i64, scratch_operands = 0 : i64, tpu.core_type = #tpu.core_type<tc>, window_params = [{pipeline_mode = #tpu.pipeline_mode<synchronous>, transform_indices = @transform_0, window_bounds = array<i64: 32, 256>}, {transform_indices = @transform_1, window_bounds = array<i64: 256, 128>}, {transform_indices = @transform_2, window_bounds = array<i64: 32, 128>}]} {
    %c0 = arith.constant 0 : index
    %c0_0 = arith.constant 0 : index
    %0 = vector.load %arg1[%c0, %c0_0] : memref<32x256xbf16, #tpu.memory_space<vmem>>, vector<32x256xbf16>
    %c0_1 = arith.constant 0 : index
    %c0_2 = arith.constant 0 : index
    %1 = vector.load %arg2[%c0_1, %c0_2] : memref<256x128xbf16, #tpu.memory_space<vmem>>, vector<256x128xbf16>
    %cst = arith.constant dense<0.000000e+00> : vector<32x128xf32>
    %2 = tpu.matmul %0, %1, %cst {dimension_numbers = #tpu.dot_dimension_numbers<[1], [0], [0], [1], [0, 0, 1, 1], [], []>} : vector<32x256xbf16>, vector<256x128xbf16>, vector<32x128xf32> -> vector<32x128xf32>
    %cst_3 = arith.constant 0.000000e+00 : f32
    %3 = vector.broadcast %cst_3 : f32 to vector<32x128xf32>
    %4 = arith.cmpf ogt, %2, %3 : vector<32x128xf32>
    %5 = math.exp %2 : vector<32x128xf32>
    %cst_4 = arith.constant 1.000000e+00 : f32
    %6 = vector.broadcast %cst_4 : f32 to vector<32x128xf32>
    %7 = arith.subf %5, %6 : vector<32x128xf32>
    %8 = arith.select %4, %2, %7 : vector<32x128xi1>, vector<32x128xf32>
    %9 = arith.truncf %8 : vector<32x128xf32> to vector<32x128xbf16>
    %c0_5 = arith.constant 0 : index
    %c0_6 = arith.constant 0 : index
    %10 = vector.load %arg3[%c0_5, %c0_6] : memref<32x128xbf16, #tpu.memory_space<vmem>>, vector<32x128xbf16>
    tpu.vector_store %arg3[%c0_5, %c0_6], %9 {strides = array<i32>} : memref<32x128xbf16, #tpu.memory_space<vmem>>, vector<32x128xbf16>,
    return
  }
  func.func @transform_0(%arg0: i32) -> (i32, i32) {
    %c0_i32 = arith.constant 0 : i32
    %c0_i32_0 = arith.constant 0 : i32
    %c0_i32_1 = arith.constant 0 : i32
    return %c0_i32, %c0_i32_0 : i32, i32
  }
  func.func @transform_1(%arg0: i32) -> (i32, i32) {
    %c0_i32 = arith.constant 0 : i32
    %c0_i32_0 = arith.constant 0 : i32
    return %c0_i32, %arg0 : i32, i32
  }
  func.func @transform_2(%arg0: i32) -> (i32, i32) {
    %c0_i32 = arith.constant 0 : i32
    %c0_i32_0 = arith.constant 0 : i32
    return %c0_i32, %arg0 : i32, i32
  }
}

module attributes {stable_mosaic.version = 11 : i64} {
  func.func @_conv_elu_kernel(%arg0: i32, %arg1: memref<64x512xbf16, #tpu.memory_space<vmem>>, %arg2: memref<512x128xbf16, #tpu.memory_space<vmem>>, %arg3: memref<64x128xbf16, #tpu.memory_space<vmem>>) attributes {dimension_semantics = [#tpu.dimension_semantics<parallel>], iteration_bounds = array<i64: 1>, scalar_prefetch = 0 : i64, scratch_operands = 0 : i64, tpu.core_type = #tpu.core_type<tc>, window_params = [{pipeline_mode = #tpu.pipeline_mode<synchronous>, transform_indices = @transform_0, window_bounds = array<i64: 64, 512>}, {transform_indices = @transform_1, window_bounds = array<i64: 512, 128>}, {transform_indices = @transform_2, window_bounds = array<i64: 64, 128>}]} {
    %c0 = arith.constant 0 : index
    %c0_0 = arith.constant 0 : index
    %0 = vector.load %arg1[%c0, %c0_0] : memref<64x512xbf16, #tpu.memory_space<vmem>>, vector<64x512xbf16>
    %c0_1 = arith.constant 0 : index
    %c0_2 = arith.constant 0 : index
    %1 = vector.load %arg2[%c0_1, %c0_2] : memref<512x128xbf16, #tpu.memory_space<vmem>>, vector<512x128xbf16>
    %cst = arith.constant dense<0.000000e+00> : vector<64x128xf32>
    %2 = tpu.matmul %0, %1, %cst {dimension_numbers = #tpu.dot_dimension_numbers<[1], [0], [0], [1], [0, 0, 1, 1], [], []>} : vector<64x512xbf16>, vector<512x128xbf16>, vector<64x128xf32> -> vector<64x128xf32>
    %cst_3 = arith.constant 0.000000e+00 : f32
    %3 = vector.broadcast %cst_3 : f32 to vector<64x128xf32>
    %4 = arith.cmpf ogt, %2, %3 : vector<64x128xf32>
    %5 = math.exp %2 : vector<64x128xf32>
    %cst_4 = arith.constant 1.000000e+00 : f32
    %6 = vector.broadcast %cst_4 : f32 to vector<64x128xf32>
    %7 = arith.subf %5, %6 : vector<64x128xf32>
    %8 = arith.select %4, %2, %7 : vector<64x128xi1>, vector<64x128xf32>
    %9 = arith.truncf %8 : vector<64x128xf32> to vector<64x128xbf16>
    %c0_5 = arith.constant 0 : index
    %c0_6 = arith.constant 0 : index
    %10 = vector.load %arg3[%c0_5, %c0_6] : memref<64x128xbf16, #tpu.memory_space<vmem>>, vector<64x128xbf16>
    tpu.vector_store %arg3[%c0_5, %c0_6], %9 {strides = array<i32>} : memref<64x128xbf16, #tpu.memory_space<vmem>>, vector<64x128xbf16>,
    return
  }
  func.func @transform_0(%arg0: i32) -> (i32, i32) {
    %c0_i32 = arith.constant 0 : i32
    %c0_i32_0 = arith.constant 0 : i32
    %c0_i32_1 = arith.constant 0 : i32
    return %c0_i32, %c0_i32_0 : i32, i32
  }
  func.func @transform_1(%arg0: i32) -> (i32, i32) {
    %c0_i32 = arith.constant 0 : i32
    %c0_i32_0 = arith.constant 0 : i32
    return %c0_i32, %arg0 : i32, i32
  }
  func.func @transform_2(%arg0: i32) -> (i32, i32) {
    %c0_i32 = arith.constant 0 : i32
    %c0_i32_0 = arith.constant 0 : i32
    return %c0_i32, %arg0 : i32, i32
  }
}

module attributes {stable_mosaic.version = 11 : i64} {
  func.func @_conv_softmax_kernel(%arg0: i32, %arg1: memref<6x1024xbf16, #tpu.memory_space<vmem>>, %arg2: memref<1024x128xbf16, #tpu.memory_space<vmem>>, %arg3: memref<6x128xf32, #tpu.memory_space<vmem>>) attributes {dimension_semantics = [#tpu.dimension_semantics<parallel>], iteration_bounds = array<i64: 1>, scalar_prefetch = 0 : i64, scratch_operands = 0 : i64, tpu.core_type = #tpu.core_type<tc>, window_params = [{pipeline_mode = #tpu.pipeline_mode<synchronous>, transform_indices = @transform_0, window_bounds = array<i64: 6, 1024>}, {transform_indices = @transform_1, window_bounds = array<i64: 1024, 128>}, {transform_indices = @transform_2, window_bounds = array<i64: 6, 128>}]} {
    %c0 = arith.constant 0 : index
    %c0_0 = arith.constant 0 : index
    %0 = vector.load %arg1[%c0, %c0_0] : memref<6x1024xbf16, #tpu.memory_space<vmem>>, vector<6x1024xbf16>
    %c0_1 = arith.constant 0 : index
    %c0_2 = arith.constant 0 : index
    %1 = vector.load %arg2[%c0_1, %c0_2] : memref<1024x128xbf16, #tpu.memory_space<vmem>>, vector<1024x128xbf16>
    %cst = arith.constant dense<0.000000e+00> : vector<6x128xf32>
    %2 = tpu.matmul %0, %1, %cst {dimension_numbers = #tpu.dot_dimension_numbers<[1], [0], [0], [1], [0, 0, 1, 1], [], []>} : vector<6x1024xbf16>, vector<1024x128xbf16>, vector<6x128xf32> -> vector<6x128xf32>
    %cst_3 = arith.constant dense<0xFF800000> : vector<128xf32>
    %3 = vector.multi_reduction <maximumf>, %2, %cst_3 [0] : vector<6x128xf32> to vector<128xf32>
    %4 = vector.shape_cast %3 : vector<128xf32> to vector<1x128xf32>
    %5 = vector.broadcast %4 : vector<1x128xf32> to vector<6x128xf32>
    %6 = arith.subf %2, %5 : vector<6x128xf32>
    %7 = math.exp %6 : vector<6x128xf32>
    %cst_4 = arith.constant dense<0.000000e+00> : vector<128xf32>
    %8 = vector.multi_reduction <add>, %7, %cst_4 [0] : vector<6x128xf32> to vector<128xf32>
    %9 = vector.shape_cast %8 : vector<128xf32> to vector<1x128xf32>
    %10 = vector.broadcast %9 : vector<1x128xf32> to vector<6x128xf32>
    %11 = arith.divf %7, %10 : vector<6x128xf32>
    %c0_5 = arith.constant 0 : index
    %c0_6 = arith.constant 0 : index
    %12 = vector.load %arg3[%c0_5, %c0_6] : memref<6x128xf32, #tpu.memory_space<vmem>>, vector<6x128xf32>
    tpu.vector_store %arg3[%c0_5, %c0_6], %11 {strides = array<i32>} : memref<6x128xf32, #tpu.memory_space<vmem>>, vector<6x128xf32>,
    return
  }
  func.func @transform_0(%arg0: i32) -> (i32, i32) {
    %c0_i32 = arith.constant 0 : i32
    %c0_i32_0 = arith.constant 0 : i32
    %c0_i32_1 = arith.constant 0 : i32
    return %c0_i32, %c0_i32_0 : i32, i32
  }
  func.func @transform_1(%arg0: i32) -> (i32, i32) {
    %c0_i32 = arith.constant 0 : i32
    %c0_i32_0 = arith.constant 0 : i32
    return %c0_i32, %arg0 : i32, i32
  }
  func.func @transform_2(%arg0: i32) -> (i32, i32) {
    %c0_i32 = arith.constant 0 : i32
    %c0_i32_0 = arith.constant 0 : i32
    return %c0_i32, %arg0 : i32, i32
  }
}

</mosaic_0001>

<llo_original>
// kernel: model_forward.6
$region0: #{model_forward.6}
  #allocation0 [shape = 'u32[]', space=smem, size = 0x4, offset = 0x4, fixed_abs, tag = 'smem constant byte address 0x4 - core index']
  #allocation1 [shape = 'u32[144,128]{1,0:T(1,128)}', space=vmem, size = 0x12000, scoped, tag = 'internal scratch']
  %s0 = inlined_call_operand.vmem [shape: bf16[4,48], index: 0, kind: input, shape index: {}]
  %s1 = inlined_call_operand.vmem [shape: bf16[48,8192], index: 1, kind: input, shape index: {}]
  %s2 = inlined_call_operand.vmem [shape: bf16[4,8192], index: 2, kind: output, shape index: {}]
  %s3 = sld [smem:[#allocation0]]
  $region64: #{model_forward.6} parent=0
    _
  %s5 = ssub.s32 1, %s3
  %s6 = scalar_select 0, %s5, %s3
  $region1: #{model_forward.6} parent=0
    #allocation2 [shape = 'u8[786432]{0}', space=vmem, size = 0xc0000, scoped, tag = 'input window, operand 1']
    loop: start=0, step=1, limit=4
    $region2: #{model_forward.6} parent=1 // loop_pre_header
      _
    $region3: #{model_forward.6} parent=1 // loop_header
      %s8 = sphi 0, %s12
      %p9 = scmp.ge.s32.totalorder %s8, 4
      %s16 = sphi 0, %s16
      %s18 = sphi 0, %s16
      %s19 = sphi 0, %s18
      %s33 = sphi 0, %s19
      %s39 = sphi 0, %s41
      %s42 = sphi 0, %s39
      %s43 = sphi 0, %s42
      %s59 = sphi 0, %s43
      %s65 = sphi 0, %s67
      %s68 = sphi 0, %s65
      %s69 = sphi 0, %s68
      %s85 = sphi 0, %s69
    $region4: #{model_forward.6} parent=1 // loop_header_branch
      %11 = sbr.rel (%p9) target = $region8
    $region5: #{model_forward.6} parent=1 // loop_body
      %s13 = ssub.s32 %s8, 1
      %s14 = ssub.s32 %s8, 2
      %s15 = sadd.s32 %s8, 1
      %s17 = sadd.s32 %s16, 1
      %p20 = scmp.eq.s32.totalorder %s8, 1
      %p21 = scmp.ne.s32.totalorder %s16, %s18
      %p22 = scmp.eq.s32.totalorder %s8, 0
      %p23 = por %p21, %p22
      %p24 = scmp.ne.s32.totalorder %s16, %s18
      %p25 = scmp.eq.s32.totalorder %s13, 1
      %p26 = por %p24, %p25
      %p27 = scmp.ne.s32.totalorder %s18, %s19
      %p28 = scmp.eq.s32.totalorder %s13, 0
      %p29 = por %p27, %p28
      %p30 = scmp.ne.s32.totalorder %s18, %s19
      %p31 = scmp.eq.s32.totalorder %s14, 1
      %p32 = por %p30, %p31
      %p34 = scmp.ne.s32.totalorder %s19, %s33
      %p35 = scmp.eq.s32.totalorder %s14, 0
      %p36 = por %p34, %p35
      %s37 = ssub.s32 %s8, %s15
      %p38 = scmp.eq.s32.totalorder %s37, 0
      %s40 = sadd.s32 %s39, 1
      %s41 = scalar_select %p38, %s39, %s40
      %p44 = pneg %p38
      %p45 = scmp.eq.s32.totalorder %s8, 1
      %p46 = por %p44, %p45
      %p47 = scmp.ne.s32.totalorder %s39, %s42
      %p48 = scmp.eq.s32.totalorder %s8, 0
      %p49 = por %p47, %p48
      %p50 = scmp.ne.s32.totalorder %s39, %s42
      %p51 = scmp.eq.s32.totalorder %s13, 1
      %p52 = por %p50, %p51
      %p53 = scmp.ne.s32.totalorder %s42, %s43
      %p54 = scmp.eq.s32.totalorder %s13, 0
      %p55 = por %p53, %p54
      %p56 = scmp.ne.s32.totalorder %s42, %s43
      %p57 = scmp.eq.s32.totalorder %s14, 1
      %p58 = por %p56, %p57
      %p60 = scmp.ne.s32.totalorder %s43, %s59
      %p61 = scmp.eq.s32.totalorder %s14, 0
      %p62 = por %p60, %p61
      %s63 = ssub.s32 %s8, %s15
      %p64 = scmp.eq.s32.totalorder %s63, 0
      %s66 = sadd.s32 %s65, 1
      %s67 = scalar_select %p64, %s65, %s66
      %p70 = pneg %p64
      %p71 = scmp.eq.s32.totalorder %s8, 1
      %p72 = por %p70, %p71
      %p73 = scmp.ne.s32.totalorder %s65, %s68
      %p74 = scmp.eq.s32.totalorder %s8, 0
      %p75 = por %p73, %p74
      %p76 = scmp.ne.s32.totalorder %s65, %s68
      %p77 = scmp.eq.s32.totalorder %s13, 1
      %p78 = por %p76, %p77
      %p79 = scmp.ne.s32.totalorder %s68, %s69
      %p80 = scmp.eq.s32.totalorder %s13, 0
      %p81 = por %p79, %p80
      %p82 = scmp.ne.s32.totalorder %s68, %s69
      %p83 = scmp.eq.s32.totalorder %s14, 1
      %p84 = por %p82, %p83
      %p86 = scmp.ne.s32.totalorder %s69, %s85
      %p87 = scmp.eq.s32.totalorder %s14, 0
      %p88 = por %p86, %p87
      %p89 = scmp.le.s32.totalorder 1, %s8
      %p90 = scmp.lt.s32.totalorder %s8, 3
      %p91 = pnand %p89, %p90
      %p92 = pneg %p91
      // Predicated region
      $region9: #{model_forward.6} parent=5 // pred_check
        _
      $region10: #{model_forward.6} parent=5 // pred_check_branch
        %94 = sbr.rel (%p91) target = $region12
      $region11: #{model_forward.6} parent=5 // pred_region
        %s95 = ssub.s32 %s8, 1
        // Predicated region
        $region13: #{model_forward.6} parent=11 // pred_check
          %p96 = pneg %p29
        $region14: #{model_forward.6} parent=11 // pred_check_branch
          %98 = sbr.rel (%p96) target = $region16
        $region15: #{model_forward.6} parent=11 // pred_region
          _
        $region16: #{model_forward.6} parent=11 // pred_fallthru
          _
      $region12: #{model_forward.6} parent=5 // pred_fallthru
        _
      %p99 = scmp.lt.s32.totalorder %s8, 2
      // Predicated region
      $region17: #{model_forward.6} parent=5 // pred_check
        %p100 = pneg %p99
      $region18: #{model_forward.6} parent=5 // pred_check_branch
        %102 = sbr.rel (%p100) target = $region20
      $region19: #{model_forward.6} parent=5 // pred_region
        // Predicated region
        $region21: #{model_forward.6} parent=19 // pred_check
          %p103 = pneg %p49
        $region22: #{model_forward.6} parent=19 // pred_check_branch
          %105 = sbr.rel (%p103) target = $region24
        $region23: #{model_forward.6} parent=19 // pred_region
          %s106 = sand.u32 %s39, 1
          %s107 = sand.u32 %s39, 1
          %s108 = smul.addr %s107, 768
          %s109 = scalar_lea.vmem [#allocation2], %s108
          %s110 = smul.u32 32, %s8
          %s111 = smul.addr %s110, 4
          %s112 = scalar_lea.vmem %s1, %s111
          // Predicated region
          $region25: #{model_forward.6} parent=23 // pred_check
            _
          $region26: #{model_forward.6} parent=23 // pred_check_branch
            %114 = sbr.rel (0) target = $region28
          $region27: #{model_forward.6} parent=23 // pred_region
            // Predicated region
            $region29: #{model_forward.6} parent=27 // pred_check
              _
            $region30: #{model_forward.6} parent=27 // pred_check_branch
              %116 = sbr.rel (0) target = $region32
            $region31: #{model_forward.6} parent=27 // pred_region
              loop: start=0, step=1, limit=1
              $region33: #{model_forward.6} parent=31 // loop_pre_header
                _
              $region34: #{model_forward.6} parent=31 // loop_header
                %s118 = sphi 0, %s122
                %p119 = scmp.ge.s32.totalorder %s118, 1
                %s123 = sphi %s112, %s112
                %s124 = sphi %s109, %s109
              $region35: #{model_forward.6} parent=31 // loop_header_branch
                %121 = sbr.rel (%p119) target = $region39
              $region36: #{model_forward.6} parent=31 // loop_body
                %v125 = vld [vmem:[%s123] sm:$0xff]
                %126 = vst [vmem:[%s124] sm:$0xff] %v125
                %v127 = vld [vmem:[%s123 + $0x8] sm:$0xff]
                %128 = vst [vmem:[%s124 + $0x8] sm:$0xff] %v127
                %v129 = vld [vmem:[%s123 + $0x10] sm:$0xff]
                %130 = vst [vmem:[%s124 + $0x10] sm:$0xff] %v129
                %v131 = vld [vmem:[%s123 + $0x18] sm:$0xff]
                %132 = vst [vmem:[%s124 + $0x18] sm:$0xff] %v131
                %v133 = vld [vmem:[%s123 + $0x20] sm:$0xff]
                %134 = vst [vmem:[%s124 + $0x20] sm:$0xff] %v133
                %v135 = vld [vmem:[%s123 + $0x28] sm:$0xff]
                %136 = vst [vmem:[%s124 + $0x28] sm:$0xff] %v135
                %v137 = vld [vmem:[%s123 + $0x30] sm:$0xff]
                %138 = vst [vmem:[%s124 + $0x30] sm:$0xff] %v137
                %v139 = vld [vmem:[%s123 + $0x38] sm:$0xff]
                %140 = vst [vmem:[%s124 + $0x38] sm:$0xff] %v139
                %v141 = vld [vmem:[%s123 + $0x40] sm:$0xff]
                %142 = vst [vmem:[%s124 + $0x40] sm:$0xff] %v141
                %v143 = vld [vmem:[%s123 + $0x48] sm:$0xff]
                %144 = vst [vmem:[%s124 + $0x48] sm:$0xff] %v143
                %v145 = vld [vmem:[%s123 + $0x50] sm:$0xff]
                %146 = vst [vmem:[%s124 + $0x50] sm:$0xff] %v145
                %v147 = vld [vmem:[%s123 + $0x58] sm:$0xff]
                %148 = vst [vmem:[%s124 + $0x58] sm:$0xff] %v147
                %v149 = vld [vmem:[%s123 + $0x60] sm:$0xff]
                %150 = vst [vmem:[%s124 + $0x60] sm:$0xff] %v149
                %v151 = vld [vmem:[%s123 + $0x68] sm:$0xff]
                %152 = vst [vmem:[%s124 + $0x68] sm:$0xff] %v151
                %v153 = vld [vmem:[%s123 + $0x70] sm:$0xff]
                %154 = vst [vmem:[%s124 + $0x70] sm:$0xff] %v153
                %v155 = vld [vmem:[%s123 + $0x78] sm:$0xff]
                %156 = vst [vmem:[%s124 + $0x78] sm:$0xff] %v155
                %v157 = vld [vmem:[%s123 + $0x100] sm:$0xff]
                %158 = vst [vmem:[%s124 + $0x80] sm:$0xff] %v157
                %v159 = vld [vmem:[%s123 + $0x108] sm:$0xff]
                %160 = vst [vmem:[%s124 + $0x88] sm:$0xff] %v159
                %v161 = vld [vmem:[%s123 + $0x110] sm:$0xff]
                %162 = vst [vmem:[%s124 + $0x90] sm:$0xff] %v161
                %v163 = vld [vmem:[%s123 + $0x118] sm:$0xff]
                %164 = vst [vmem:[%s124 + $0x98] sm:$0xff] %v163
                %v165 = vld [vmem:[%s123 + $0x120] sm:$0xff]
                %166 = vst [vmem:[%s124 + $0xa0] sm:$0xff] %v165
                %v167 = vld [vmem:[%s123 + $0x128] sm:$0xff]
                %168 = vst [vmem:[%s124 + $0xa8] sm:$0xff] %v167
                %v169 = vld [vmem:[%s123 + $0x130] sm:$0xff]
                %170 = vst [vmem:[%s124 + $0xb0] sm:$0xff] %v169
                %v171 = vld [vmem:[%s123 + $0x138] sm:$0xff]
                %172 = vst [vmem:[%s124 + $0xb8] sm:$0xff] %v171
                %v173 = vld [vmem:[%s123 + $0x140] sm:$0xff]
                %174 = vst [vmem:[%s124 + $0xc0] sm:$0xff] %v173
                %v175 = vld [vmem:[%s123 + $0x148] sm:$0xff]
                %176 = vst [vmem:[%s124 + $0xc8] sm:$0xff] %v175
                %v177 = vld [vmem:[%s123 + $0x150] sm:$0xff]
                %178 = vst [vmem:[%s124 + $0xd0] sm:$0xff] %v177
                %v179 = vld [vmem:[%s123 + $0x158] sm:$0xff]
                %180 = vst [vmem:[%s124 + $0xd8] sm:$0xff] %v179
                %v181 = vld [vmem:[%s123 + $0x160] sm:$0xff]
                %182 = vst [vmem:[%s124 + $0xe0] sm:$0xff] %v181
                %v183 = vld [vmem:[%s123 + $0x168] sm:$0xff]
                %184 = vst [vmem:[%s124 + $0xe8] sm:$0xff] %v183
                %v185 = vld [vmem:[%s123 + $0x170] sm:$0xff]
                %186 = vst [vmem:[%s124 + $0xf0] sm:$0xff] %v185
                %v187 = vld [vmem:[%s123 + $0x178] sm:$0xff]
                %188 = vst [vmem:[%s124 + $0xf8] sm:$0xff] %v187
                %v189 = vld [vmem:[%s123 + $0x200] sm:$0xff]
                %190 = vst [vmem:[%s124 + $0x100] sm:$0xff] %v189
                %v191 = vld [vmem:[%s123 + $0x208] sm:$0xff]
                %192 = vst [vmem:[%s124 + $0x108] sm:$0xff] %v191
                %v193 = vld [vmem:[%s123 + $0x210] sm:$0xff]
                %194 = vst [vmem:[%s124 + $0x110] sm:$0xff] %v193
                %v195 = vld [vmem:[%s123 + $0x218] sm:$0xff]
                %196 = vst [vmem:[%s124 + $0x118] sm:$0xff] %v195
                %v197 = vld [vmem:[%s123 + $0x220] sm:$0xff]
                %198 = vst [vmem:[%s124 + $0x120] sm:$0xff] %v197
                %v199 = vld [vmem:[%s123 + $0x228] sm:$0xff]
                %200 = vst [vmem:[%s124 + $0x128] sm:$0xff] %v199
                %v201 = vld [vmem:[%s123 + $0x230] sm:$0xff]
                %202 = vst [vmem:[%s124 + $0x130] sm:$0xff] %v201
                %v203 = vld [vmem:[%s123 + $0x238] sm:$0xff]
                %204 = vst [vmem:[%s124 + $0x138] sm:$0xff] %v203
                %v205 = vld [vmem:[%s123 + $0x240] sm:$0xff]
                %206 = vst [vmem:[%s124 + $0x140] sm:$0xff] %v205
                %v207 = vld [vmem:[%s123 + $0x248] sm:$0xff]
                %208 = vst [vmem:[%s124 + $0x148] sm:$0xff] %v207
                %v209 = vld [vmem:[%s123 + $0x250] sm:$0xff]
                %210 = vst [vmem:[%s124 + $0x150] sm:$0xff] %v209
                %v211 = vld [vmem:[%s123 + $0x258] sm:$0xff]
                %212 = vst [vmem:[%s124 + $0x158] sm:$0xff] %v211
                %v213 = vld [vmem:[%s123 + $0x260] sm:$0xff]
                %214 = vst [vmem:[%s124 + $0x160] sm:$0xff] %v213
                %v215 = vld [vmem:[%s123 + $0x268] sm:$0xff]
                %216 = vst [vmem:[%s124 + $0x168] sm:$0xff] %v215
                %v217 = vld [vmem:[%s123 + $0x270] sm:$0xff]
                %218 = vst [vmem:[%s124 + $0x170] sm:$0xff] %v217
                %v219 = vld [vmem:[%s123 + $0x278] sm:$0xff]
                %220 = vst [vmem:[%s124 + $0x178] sm:$0xff] %v219
                %v221 = vld [vmem:[%s123 + $0x300] sm:$0xff]
                %222 = vst [vmem:[%s124 + $0x180] sm:$0xff] %v221
                %v223 = vld [vmem:[%s123 + $0x308] sm:$0xff]
                %224 = vst [vmem:[%s124 + $0x188] sm:$0xff] %v223
                %v225 = vld [vmem:[%s123 + $0x310] sm:$0xff]
                %226 = vst [vmem:[%s124 + $0x190] sm:$0xff] %v225
                %v227 = vld [vmem:[%s123 + $0x318] sm:$0xff]
                %228 = vst [vmem:[%s124 + $0x198] sm:$0xff] %v227
                %v229 = vld [vmem:[%s123 + $0x320] sm:$0xff]
                %230 = vst [vmem:[%s124 + $0x1a0] sm:$0xff] %v229
                %v231 = vld [vmem:[%s123 + $0x328] sm:$0xff]
                %232 = vst [vmem:[%s124 + $0x1a8] sm:$0xff] %v231
                %v233 = vld [vmem:[%s123 + $0x330] sm:$0xff]
                %234 = vst [vmem:[%s124 + $0x1b0] sm:$0xff] %v233
                %v235 = vld [vmem:[%s123 + $0x338] sm:$0xff]
                %236 = vst [vmem:[%s124 + $0x1b8] sm:$0xff] %v235
                %v237 = vld [vmem:[%s123 + $0x340] sm:$0xff]
                %238 = vst [vmem:[%s124 + $0x1c0] sm:$0xff] %v237
                %v239 = vld [vmem:[%s123 + $0x348] sm:$0xff]
                %240 = vst [vmem:[%s124 + $0x1c8] sm:$0xff] %v239
                %v241 = vld [vmem:[%s123 + $0x350] sm:$0xff]
                %242 = vst [vmem:[%s124 + $0x1d0] sm:$0xff] %v241
                %v243 = vld [vmem:[%s123 + $0x358] sm:$0xff]
                %244 = vst [vmem:[%s124 + $0x1d8] sm:$0xff] %v243
                %v245 = vld [vmem:[%s123 + $0x360] sm:$0xff]
                %246 = vst [vmem:[%s124 + $0x1e0] sm:$0xff] %v245
                %v247 = vld [vmem:[%s123 + $0x368] sm:$0xff]
                %248 = vst [vmem:[%s124 + $0x1e8] sm:$0xff] %v247
                %v249 = vld [vmem:[%s123 + $0x370] sm:$0xff]
                %250 = vst [vmem:[%s124 + $0x1f0] sm:$0xff] %v249
                %v251 = vld [vmem:[%s123 + $0x378] sm:$0xff]
                %252 = vst [vmem:[%s124 + $0x1f8] sm:$0xff] %v251
                %v253 = vld [vmem:[%s123 + $0x400] sm:$0xff]
                %254 = vst [vmem:[%s124 + $0x200] sm:$0xff] %v253
                %v255 = vld [vmem:[%s123 + $0x408] sm:$0xff]
                %256 = vst [vmem:[%s124 + $0x208] sm:$0xff] %v255
                %v257 = vld [vmem:[%s123 + $0x410] sm:$0xff]
                %258 = vst [vmem:[%s124 + $0x210] sm:$0xff] %v257
                %v259 = vld [vmem:[%s123 + $0x418] sm:$0xff]
                %260 = vst [vmem:[%s124 + $0x218] sm:$0xff] %v259
                %v261 = vld [vmem:[%s123 + $0x420] sm:$0xff]
                %262 = vst [vmem:[%s124 + $0x220] sm:$0xff] %v261
                %v263 = vld [vmem:[%s123 + $0x428] sm:$0xff]
                %264 = vst [vmem:[%s124 + $0x228] sm:$0xff] %v263
                %v265 = vld [vmem:[%s123 + $0x430] sm:$0xff]
                %266 = vst [vmem:[%s124 + $0x230] sm:$0xff] %v265
                %v267 = vld [vmem:[%s123 + $0x438] sm:$0xff]
                %268 = vst [vmem:[%s124 + $0x238] sm:$0xff] %v267
                %v269 = vld [vmem:[%s123 + $0x440] sm:$0xff]
                %270 = vst [vmem:[%s124 + $0x240] sm:$0xff] %v269
                %v271 = vld [vmem:[%s123 + $0x448] sm:$0xff]
                %272 = vst [vmem:[%s124 + $0x248] sm:$0xff] %v271
                %v273 = vld [vmem:[%s123 + $0x450] sm:$0xff]
                %274 = vst [vmem:[%s124 + $0x250] sm:$0xff] %v273
                %v275 = vld [vmem:[%s123 + $0x458] sm:$0xff]
                %276 = vst [vmem:[%s124 + $0x258] sm:$0xff] %v275
                %v277 = vld [vmem:[%s123 + $0x460] sm:$0xff]
                %278 = vst [vmem:[%s124 + $0x260] sm:$0xff] %v277
                %v279 = vld [vmem:[%s123 + $0x468] sm:$0xff]
                %280 = vst [vmem:[%s124 + $0x268] sm:$0xff] %v279
                %v281 = vld [vmem:[%s123 + $0x470] sm:$0xff]
                %282 = vst [vmem:[%s124 + $0x270] sm:$0xff] %v281
                %v283 = vld [vmem:[%s123 + $0x478] sm:$0xff]
                %284 = vst [vmem:[%s124 + $0x278] sm:$0xff] %v283
                %v285 = vld [vmem:[%s123 + $0x500] sm:$0xff]
                %286 = vst [vmem:[%s124 + $0x280] sm:$0xff] %v285
                %v287 = vld [vmem:[%s123 + $0x508] sm:$0xff]
                %288 = vst [vmem:[%s124 + $0x288] sm:$0xff] %v287
                %v289 = vld [vmem:[%s123 + $0x510] sm:$0xff]
                %290 = vst [vmem:[%s124 + $0x290] sm:$0xff] %v289
                %v291 = vld [vmem:[%s123 + $0x518] sm:$0xff]
                %292 = vst [vmem:[%s124 + $0x298] sm:$0xff] %v291
                %v293 = vld [vmem:[%s123 + $0x520] sm:$0xff]
                %294 = vst [vmem:[%s124 + $0x2a0] sm:$0xff] %v293
                %v295 = vld [vmem:[%s123 + $0x528] sm:$0xff]
                %296 = vst [vmem:[%s124 + $0x2a8] sm:$0xff] %v295
                %v297 = vld [vmem:[%s123 + $0x530] sm:$0xff]
                %298 = vst [vmem:[%s124 + $0x2b0] sm:$0xff] %v297
                %v299 = vld [vmem:[%s123 + $0x538] sm:$0xff]
                %300 = vst [vmem:[%s124 + $0x2b8] sm:$0xff] %v299
                %v301 = vld [vmem:[%s123 + $0x540] sm:$0xff]
                %302 = vst [vmem:[%s124 + $0x2c0] sm:$0xff] %v301
                %v303 = vld [vmem:[%s123 + $0x548] sm:$0xff]
                %304 = vst [vmem:[%s124 + $0x2c8] sm:$0xff] %v303
                %v305 = vld [vmem:[%s123 + $0x550] sm:$0xff]
                %306 = vst [vmem:[%s124 + $0x2d0] sm:$0xff] %v305
                %v307 = vld [vmem:[%s123 + $0x558] sm:$0xff]
                %308 = vst [vmem:[%s124 + $0x2d8] sm:$0xff] %v307
                %v309 = vld [vmem:[%s123 + $0x560] sm:$0xff]
                %310 = vst [vmem:[%s124 + $0x2e0] sm:$0xff] %v309
                %v311 = vld [vmem:[%s123 + $0x568] sm:$0xff]
                %312 = vst [vmem:[%s124 + $0x2e8] sm:$0xff] %v311
                %v313 = vld [vmem:[%s123 + $0x570] sm:$0xff]
                %314 = vst [vmem:[%s124 + $0x2f0] sm:$0xff] %v313
                %v315 = vld [vmem:[%s123 + $0x578] sm:$0xff]
                %316 = vst [vmem:[%s124 + $0x2f8] sm:$0xff] %v315
              $region37: #{model_forward.6} parent=31 // loop_footer
                %s122 = sadd.s32 1, %s118
              $region38: #{model_forward.6} parent=31 // loop_footer_branch
                %117 = sbr.rel target = $region34
              $region39: #{model_forward.6} parent=31 // loop_exit
                _
            $region32: #{model_forward.6} parent=27 // pred_fallthru
              _
            // Predicated region
            $region40: #{model_forward.6} parent=27 // pred_check
              _
            $region41: #{model_forward.6} parent=27 // pred_check_branch
              %318 = sbr.rel target = $region43
            $region42: #{model_forward.6} parent=27 // pred_region
              _
            $region43: #{model_forward.6} parent=27 // pred_fallthru
              _
          $region28: #{model_forward.6} parent=23 // pred_fallthru
            _
          %319 = vnop
        $region24: #{model_forward.6} parent=19 // pred_fallthru
          _
      $region20: #{model_forward.6} parent=5 // pred_fallthru
        _
      %p320 = scmp.le.s32.totalorder 1, %s8
      %p321 = scmp.lt.s32.totalorder %s8, 3
      %p322 = pnand %p320, %p321
      %p323 = pneg %p322
      // Predicated region
      $region44: #{model_forward.6} parent=5 // pred_check
        _
      $region45: #{model_forward.6} parent=5 // pred_check_branch
        %325 = sbr.rel (%p322) target = $region47
      $region46: #{model_forward.6} parent=5 // pred_region
        %s326 = ssub.s32 %s8, 1
        %s327 = sand.u32 %s42, 1
        %s328 = sand.u32 %s42, 1
        %s329 = smul.addr %s328, 768
        %s330 = scalar_lea.vmem [#allocation2], %s329
        // Predicated region
        $region48: #{model_forward.6} parent=46 // pred_check
          %p331 = pneg %p55
        $region49: #{model_forward.6} parent=46 // pred_check_branch
          %333 = sbr.rel (%p331) target = $region51
        $region50: #{model_forward.6} parent=46 // pred_region
          _
        $region51: #{model_forward.6} parent=46 // pred_fallthru
          _
        %p334 = pneg %p29
        %p335 = pneg %p26
        %s336 = sand.u32 %s42, 1
        %s337 = sand.u32 %s42, 1
        %s338 = smul.addr %s337, 768
        %s339 = scalar_lea.vmem [#allocation2], %s338
        %p340 = pneg %p55
        %p341 = pneg %p52
        %p342 = pneg %p81
        %p343 = pneg %p78
        %s344 = smul.u32 32, %s13
        %p345 = scmp.lt.s32.totalorder %s344, 63
        %s346 = scalar_select %p345, %s344, 63
        %s347 = smul.addr %s346, 2
        %s348 = scalar_lea.vmem %s2, %s347
        %s349 = smul.u32 32, %s13
        %s350 = smul.u32 32, %s13
        %p351 = scmp.lt.s32.totalorder %s350, 63
        %s352 = scalar_select %p351, %s350, 63
        %s353 = smul.addr %s352, 2
        %s354 = scalar_lea.vmem %s2, %s353
        %s355 = smul.u32 32, %s13
        %v357 = vld [vmem:[%s0] sm:$0x3]
        %v358 = vld [vmem:[%s330] sm:$0xff]
        %v359 = vld [vmem:[%s330 + $0x8] sm:$0xff]
        %v360 = vld [vmem:[%s330 + $0x10] sm:$0xff]
        %v361 = vld [vmem:[%s330 + $0x18] sm:$0xff]
        %v362 = vld [vmem:[%s330 + $0x20] sm:$0xff]
        %v363 = vld [vmem:[%s330 + $0x28] sm:$0xff]
        %v364 = vld [vmem:[%s330 + $0x30] sm:$0xff]
        %v365 = vld [vmem:[%s330 + $0x38] sm:$0xff]
        %v366 = vld [vmem:[%s330 + $0x40] sm:$0xff]
        %v367 = vld [vmem:[%s330 + $0x48] sm:$0xff]
        %v368 = vld [vmem:[%s330 + $0x50] sm:$0xff]
        %v369 = vld [vmem:[%s330 + $0x58] sm:$0xff]
        %v370 = vld [vmem:[%s330 + $0x60] sm:$0xff]
        %v371 = vld [vmem:[%s330 + $0x68] sm:$0xff]
        %v372 = vld [vmem:[%s330 + $0x70] sm:$0xff]
        %v373 = vld [vmem:[%s330 + $0x78] sm:$0xff]
        %v374 = vld [vmem:[%s330 + $0x80] sm:$0xff]
        %v375 = vld [vmem:[%s330 + $0x88] sm:$0xff]
        %v376 = vld [vmem:[%s330 + $0x90] sm:$0xff]
        %v377 = vld [vmem:[%s330 + $0x98] sm:$0xff]
        %v378 = vld [vmem:[%s330 + $0xa0] sm:$0xff]
        %v379 = vld [vmem:[%s330 + $0xa8] sm:$0xff]
        %v380 = vld [vmem:[%s330 + $0xb0] sm:$0xff]
        %v381 = vld [vmem:[%s330 + $0xb8] sm:$0xff]
        %v382 = vld [vmem:[%s330 + $0xc0] sm:$0xff]
        %v383 = vld [vmem:[%s330 + $0xc8] sm:$0xff]
        %v384 = vld [vmem:[%s330 + $0xd0] sm:$0xff]
        %v385 = vld [vmem:[%s330 + $0xd8] sm:$0xff]
        %v386 = vld [vmem:[%s330 + $0xe0] sm:$0xff]
        %v387 = vld [vmem:[%s330 + $0xe8] sm:$0xff]
        %v388 = vld [vmem:[%s330 + $0xf0] sm:$0xff]
        %v389 = vld [vmem:[%s330 + $0xf8] sm:$0xff]
        %v390 = vld [vmem:[%s330 + $0x100] sm:$0xff]
        %v391 = vld [vmem:[%s330 + $0x108] sm:$0xff]
        %v392 = vld [vmem:[%s330 + $0x110] sm:$0xff]
        %v393 = vld [vmem:[%s330 + $0x118] sm:$0xff]
        %v394 = vld [vmem:[%s330 + $0x120] sm:$0xff]
        %v395 = vld [vmem:[%s330 + $0x128] sm:$0xff]
        %v396 = vld [vmem:[%s330 + $0x130] sm:$0xff]
        %v397 = vld [vmem:[%s330 + $0x138] sm:$0xff]
        %v398 = vld [vmem:[%s330 + $0x140] sm:$0xff]
        %v399 = vld [vmem:[%s330 + $0x148] sm:$0xff]
        %v400 = vld [vmem:[%s330 + $0x150] sm:$0xff]
        %v401 = vld [vmem:[%s330 + $0x158] sm:$0xff]
        %v402 = vld [vmem:[%s330 + $0x160] sm:$0xff]
        %v403 = vld [vmem:[%s330 + $0x168] sm:$0xff]
        %v404 = vld [vmem:[%s330 + $0x170] sm:$0xff]
        %v405 = vld [vmem:[%s330 + $0x178] sm:$0xff]
        %v406 = vld [vmem:[%s330 + $0x180] sm:$0xff]
        %v407 = vld [vmem:[%s330 + $0x188] sm:$0xff]
        %v408 = vld [vmem:[%s330 + $0x190] sm:$0xff]
        %v409 = vld [vmem:[%s330 + $0x198] sm:$0xff]
        %v410 = vld [vmem:[%s330 + $0x1a0] sm:$0xff]
        %v411 = vld [vmem:[%s330 + $0x1a8] sm:$0xff]
        %v412 = vld [vmem:[%s330 + $0x1b0] sm:$0xff]
        %v413 = vld [vmem:[%s330 + $0x1b8] sm:$0xff]
        %v414 = vld [vmem:[%s330 + $0x1c0] sm:$0xff]
        %v415 = vld [vmem:[%s330 + $0x1c8] sm:$0xff]
        %v416 = vld [vmem:[%s330 + $0x1d0] sm:$0xff]
        %v417 = vld [vmem:[%s330 + $0x1d8] sm:$0xff]
        %v418 = vld [vmem:[%s330 + $0x1e0] sm:$0xff]
        %v419 = vld [vmem:[%s330 + $0x1e8] sm:$0xff]
        %v420 = vld [vmem:[%s330 + $0x1f0] sm:$0xff]
        %v421 = vld [vmem:[%s330 + $0x1f8] sm:$0xff]
        %v422 = vld [vmem:[%s330 + $0x200] sm:$0xff]
        %v423 = vld [vmem:[%s330 + $0x208] sm:$0xff]
        %v424 = vld [vmem:[%s330 + $0x210] sm:$0xff]
        %v425 = vld [vmem:[%s330 + $0x218] sm:$0xff]
        %v426 = vld [vmem:[%s330 + $0x220] sm:$0xff]
        %v427 = vld [vmem:[%s330 + $0x228] sm:$0xff]
        %v428 = vld [vmem:[%s330 + $0x230] sm:$0xff]
        %v429 = vld [vmem:[%s330 + $0x238] sm:$0xff]
        %v430 = vld [vmem:[%s330 + $0x240] sm:$0xff]
        %v431 = vld [vmem:[%s330 + $0x248] sm:$0xff]
        %v432 = vld [vmem:[%s330 + $0x250] sm:$0xff]
        %v433 = vld [vmem:[%s330 + $0x258] sm:$0xff]
        %v434 = vld [vmem:[%s330 + $0x260] sm:$0xff]
        %v435 = vld [vmem:[%s330 + $0x268] sm:$0xff]
        %v436 = vld [vmem:[%s330 + $0x270] sm:$0xff]
        %v437 = vld [vmem:[%s330 + $0x278] sm:$0xff]
        %v438 = vld [vmem:[%s330 + $0x280] sm:$0xff]
        %v439 = vld [vmem:[%s330 + $0x288] sm:$0xff]
        %v440 = vld [vmem:[%s330 + $0x290] sm:$0xff]
        %v441 = vld [vmem:[%s330 + $0x298] sm:$0xff]
        %v442 = vld [vmem:[%s330 + $0x2a0] sm:$0xff]
        %v443 = vld [vmem:[%s330 + $0x2a8] sm:$0xff]
        %v444 = vld [vmem:[%s330 + $0x2b0] sm:$0xff]
        %v445 = vld [vmem:[%s330 + $0x2b8] sm:$0xff]
        %v446 = vld [vmem:[%s330 + $0x2c0] sm:$0xff]
        %v447 = vld [vmem:[%s330 + $0x2c8] sm:$0xff]
        %v448 = vld [vmem:[%s330 + $0x2d0] sm:$0xff]
        %v449 = vld [vmem:[%s330 + $0x2d8] sm:$0xff]
        %v450 = vld [vmem:[%s330 + $0x2e0] sm:$0xff]
        %v451 = vld [vmem:[%s330 + $0x2e8] sm:$0xff]
        %v452 = vld [vmem:[%s330 + $0x2f0] sm:$0xff]
        %v453 = vld [vmem:[%s330 + $0x2f8] sm:$0xff]
        %v550 = vunpack.c.l.b16 %v358
        %v551 = vunpack.c.h.b16 %v358
        %v552 = vunpack.c.l.b16 %v359
        %v553 = vunpack.c.h.b16 %v359
        %v554 = vunpack.c.l.b16 %v360
        %v555 = vunpack.c.h.b16 %v360
        %v556 = vunpack.c.l.b16 %v361
        %v557 = vunpack.c.h.b16 %v361
        %v558 = vunpack.c.l.b16 %v362
        %v559 = vunpack.c.h.b16 %v362
        %v560 = vunpack.c.l.b16 %v363
        %v561 = vunpack.c.h.b16 %v363
        %v562 = vunpack.c.l.b16 %v364
        %v563 = vunpack.c.h.b16 %v364
        %v564 = vunpack.c.l.b16 %v365
        %v565 = vunpack.c.h.b16 %v365
        %v566 = vunpack.c.l.b16 %v366
        %v567 = vunpack.c.h.b16 %v366
        %v568 = vunpack.c.l.b16 %v367
        %v569 = vunpack.c.h.b16 %v367
        %v570 = vunpack.c.l.b16 %v368
        %v571 = vunpack.c.h.b16 %v368
        %v572 = vunpack.c.l.b16 %v369
        %v573 = vunpack.c.h.b16 %v369
        %v574 = vunpack.c.l.b16 %v370
        %v575 = vunpack.c.h.b16 %v370
        %v576 = vunpack.c.l.b16 %v371
        %v577 = vunpack.c.h.b16 %v371
        %v578 = vunpack.c.l.b16 %v372
        %v579 = vunpack.c.h.b16 %v372
        %v580 = vunpack.c.l.b16 %v373
        %v581 = vunpack.c.h.b16 %v373
        %v582 = vunpack.c.l.b16 %v374
        %v583 = vunpack.c.h.b16 %v374
        %v584 = vunpack.c.l.b16 %v375
        %v585 = vunpack.c.h.b16 %v375
        %v586 = vunpack.c.l.b16 %v376
        %v587 = vunpack.c.h.b16 %v376
        %v588 = vunpack.c.l.b16 %v377
        %v589 = vunpack.c.h.b16 %v377
        %v590 = vunpack.c.l.b16 %v378
        %v591 = vunpack.c.h.b16 %v378
        %v592 = vunpack.c.l.b16 %v379
        %v593 = vunpack.c.h.b16 %v379
        %v594 = vunpack.c.l.b16 %v380
        %v595 = vunpack.c.h.b16 %v380
        %v596 = vunpack.c.l.b16 %v381
        %v597 = vunpack.c.h.b16 %v381
        %v598 = vunpack.c.l.b16 %v382
        %v599 = vunpack.c.h.b16 %v382
        %v600 = vunpack.c.l.b16 %v383
        %v601 = vunpack.c.h.b16 %v383
        %v602 = vunpack.c.l.b16 %v384
        %v603 = vunpack.c.h.b16 %v384
        %v604 = vunpack.c.l.b16 %v385
        %v605 = vunpack.c.h.b16 %v385
        %v606 = vunpack.c.l.b16 %v386
        %v607 = vunpack.c.h.b16 %v386
        %v608 = vunpack.c.l.b16 %v387
        %v609 = vunpack.c.h.b16 %v387
        %v610 = vunpack.c.l.b16 %v388
        %v611 = vunpack.c.h.b16 %v388
        %v612 = vunpack.c.l.b16 %v389
        %v613 = vunpack.c.h.b16 %v389
        %v614 = vunpack.c.l.b16 %v390
        %v615 = vunpack.c.h.b16 %v390
        %v616 = vunpack.c.l.b16 %v391
        %v617 = vunpack.c.h.b16 %v391
        %v618 = vunpack.c.l.b16 %v392
        %v619 = vunpack.c.h.b16 %v392
        %v620 = vunpack.c.l.b16 %v393
        %v621 = vunpack.c.h.b16 %v393
        %v622 = vunpack.c.l.b16 %v394
        %v623 = vunpack.c.h.b16 %v394
        %v624 = vunpack.c.l.b16 %v395
        %v625 = vunpack.c.h.b16 %v395
        %v626 = vunpack.c.l.b16 %v396
        %v627 = vunpack.c.h.b16 %v396
        %v628 = vunpack.c.l.b16 %v397
        %v629 = vunpack.c.h.b16 %v397
        %v630 = vunpack.c.l.b16 %v398
        %v631 = vunpack.c.h.b16 %v398
        %v632 = vunpack.c.l.b16 %v399
        %v633 = vunpack.c.h.b16 %v399
        %v634 = vunpack.c.l.b16 %v400
        %v635 = vunpack.c.h.b16 %v400
        %v636 = vunpack.c.l.b16 %v401
        %v637 = vunpack.c.h.b16 %v401
        %v638 = vunpack.c.l.b16 %v402
        %v639 = vunpack.c.h.b16 %v402
        %v640 = vunpack.c.l.b16 %v403
        %v641 = vunpack.c.h.b16 %v403
        %v642 = vunpack.c.l.b16 %v404
        %v643 = vunpack.c.h.b16 %v404
        %v644 = vunpack.c.l.b16 %v405
        %v645 = vunpack.c.h.b16 %v405
        %v646 = vunpack.c.l.b16 %v406
        %v647 = vunpack.c.h.b16 %v406
        %v648 = vunpack.c.l.b16 %v407
        %v649 = vunpack.c.h.b16 %v407
        %v650 = vunpack.c.l.b16 %v408
        %v651 = vunpack.c.h.b16 %v408
        %v652 = vunpack.c.l.b16 %v409
        %v653 = vunpack.c.h.b16 %v409
        %v654 = vunpack.c.l.b16 %v410
        %v655 = vunpack.c.h.b16 %v410
        %v656 = vunpack.c.l.b16 %v411
        %v657 = vunpack.c.h.b16 %v411
        %v658 = vunpack.c.l.b16 %v412
        %v659 = vunpack.c.h.b16 %v412
        %v660 = vunpack.c.l.b16 %v413
        %v661 = vunpack.c.h.b16 %v413
        %v662 = vunpack.c.l.b16 %v414
        %v663 = vunpack.c.h.b16 %v414
        %v664 = vunpack.c.l.b16 %v415
        %v665 = vunpack.c.h.b16 %v415
        %v666 = vunpack.c.l.b16 %v416
        %v667 = vunpack.c.h.b16 %v416
        %v668 = vunpack.c.l.b16 %v417
        %v669 = vunpack.c.h.b16 %v417
        %v670 = vunpack.c.l.b16 %v418
        %v671 = vunpack.c.h.b16 %v418
        %v672 = vunpack.c.l.b16 %v419
        %v673 = vunpack.c.h.b16 %v419
        %v674 = vunpack.c.l.b16 %v420
        %v675 = vunpack.c.h.b16 %v420
        %v676 = vunpack.c.l.b16 %v421
        %v677 = vunpack.c.h.b16 %v421
        %v678 = vunpack.c.l.b16 %v422
        %v679 = vunpack.c.h.b16 %v422
        %v680 = vunpack.c.l.b16 %v423
        %v681 = vunpack.c.h.b16 %v423
        %v682 = vunpack.c.l.b16 %v424
        %v683 = vunpack.c.h.b16 %v424
        %v684 = vunpack.c.l.b16 %v425
        %v685 = vunpack.c.h.b16 %v425
        %v686 = vunpack.c.l.b16 %v426
        %v687 = vunpack.c.h.b16 %v426
        %v688 = vunpack.c.l.b16 %v427
        %v689 = vunpack.c.h.b16 %v427
        %v690 = vunpack.c.l.b16 %v428
        %v691 = vunpack.c.h.b16 %v428
        %v692 = vunpack.c.l.b16 %v429
        %v693 = vunpack.c.h.b16 %v429
        %v694 = vunpack.c.l.b16 %v430
        %v695 = vunpack.c.h.b16 %v430
        %v696 = vunpack.c.l.b16 %v431
        %v697 = vunpack.c.h.b16 %v431
        %v698 = vunpack.c.l.b16 %v432
        %v699 = vunpack.c.h.b16 %v432
        %v700 = vunpack.c.l.b16 %v433
        %v701 = vunpack.c.h.b16 %v433
        %v702 = vunpack.c.l.b16 %v434
        %v703 = vunpack.c.h.b16 %v434
        %v704 = vunpack.c.l.b16 %v435
        %v705 = vunpack.c.h.b16 %v435
        %v706 = vunpack.c.l.b16 %v436
        %v707 = vunpack.c.h.b16 %v436
        %v708 = vunpack.c.l.b16 %v437
        %v709 = vunpack.c.h.b16 %v437
        %v710 = vunpack.c.l.b16 %v438
        %v711 = vunpack.c.h.b16 %v438
        %v712 = vunpack.c.l.b16 %v439
        %v713 = vunpack.c.h.b16 %v439
        %v714 = vunpack.c.l.b16 %v440
        %v715 = vunpack.c.h.b16 %v440
        %v716 = vunpack.c.l.b16 %v441
        %v717 = vunpack.c.h.b16 %v441
        %v718 = vunpack.c.l.b16 %v442
        %v719 = vunpack.c.h.b16 %v442
        %v720 = vunpack.c.l.b16 %v443
        %v721 = vunpack.c.h.b16 %v443
        %v722 = vunpack.c.l.b16 %v444
        %v723 = vunpack.c.h.b16 %v444
        %v724 = vunpack.c.l.b16 %v445
        %v725 = vunpack.c.h.b16 %v445
        %v726 = vunpack.c.l.b16 %v446
        %v727 = vunpack.c.h.b16 %v446
        %v728 = vunpack.c.l.b16 %v447
        %v729 = vunpack.c.h.b16 %v447
        %v730 = vunpack.c.l.b16 %v448
        %v731 = vunpack.c.h.b16 %v448
        %v732 = vunpack.c.l.b16 %v449
        %v733 = vunpack.c.h.b16 %v449
        %v734 = vunpack.c.l.b16 %v450
        %v735 = vunpack.c.h.b16 %v450
        %v736 = vunpack.c.l.b16 %v451
        %v737 = vunpack.c.h.b16 %v451
        %v738 = vunpack.c.l.b16 %v452
        %v739 = vunpack.c.h.b16 %v452
        %v740 = vunpack.c.l.b16 %v453
        %v741 = vunpack.c.h.b16 %v453
        %v742 = vpack.c.b16 %v582, %v550
        %v743 = vpack.c.b16 %v583, %v551
        %v744 = vpack.c.b16 %v584, %v552
        %v745 = vpack.c.b16 %v585, %v553
        %v746 = vpack.c.b16 %v586, %v554
        %v747 = vpack.c.b16 %v587, %v555
        %v748 = vpack.c.b16 %v588, %v556
        %v749 = vpack.c.b16 %v589, %v557
        %v750 = vpack.c.b16 %v590, %v558
        %v751 = vpack.c.b16 %v591, %v559
        %v752 = vpack.c.b16 %v592, %v560
        %v753 = vpack.c.b16 %v593, %v561
        %v754 = vpack.c.b16 %v594, %v562
        %v755 = vpack.c.b16 %v595, %v563
        %v756 = vpack.c.b16 %v596, %v564
        %v757 = vpack.c.b16 %v597, %v565
        %v758 = vpack.c.b16 %v598, %v566
        %v759 = vpack.c.b16 %v599, %v567
        %v760 = vpack.c.b16 %v600, %v568
        %v761 = vpack.c.b16 %v601, %v569
        %v762 = vpack.c.b16 %v602, %v570
        %v763 = vpack.c.b16 %v603, %v571
        %v764 = vpack.c.b16 %v604, %v572
        %v765 = vpack.c.b16 %v605, %v573
        %v766 = vpack.c.b16 %v606, %v574
        %v767 = vpack.c.b16 %v607, %v575
        %v768 = vpack.c.b16 %v608, %v576
        %v769 = vpack.c.b16 %v609, %v577
        %v770 = vpack.c.b16 %v610, %v578
        %v771 = vpack.c.b16 %v611, %v579
        %v772 = vpack.c.b16 %v612, %v580
        %v773 = vpack.c.b16 %v613, %v581
        %v774 = vpack.c.b16 %v646, %v614
        %v775 = vpack.c.b16 %v647, %v615
        %v776 = vpack.c.b16 %v648, %v616
        %v777 = vpack.c.b16 %v649, %v617
        %v778 = vpack.c.b16 %v650, %v618
        %v779 = vpack.c.b16 %v651, %v619
        %v780 = vpack.c.b16 %v652, %v620
        %v781 = vpack.c.b16 %v653, %v621
        %v782 = vpack.c.b16 %v654, %v622
        %v783 = vpack.c.b16 %v655, %v623
        %v784 = vpack.c.b16 %v656, %v624
        %v785 = vpack.c.b16 %v657, %v625
        %v786 = vpack.c.b16 %v658, %v626
        %v787 = vpack.c.b16 %v659, %v627
        %v788 = vpack.c.b16 %v660, %v628
        %v789 = vpack.c.b16 %v661, %v629
        %v790 = vpack.c.b16 %v662, %v630
        %v791 = vpack.c.b16 %v663, %v631
        %v792 = vpack.c.b16 %v664, %v632
        %v793 = vpack.c.b16 %v665, %v633
        %v794 = vpack.c.b16 %v666, %v634
        %v795 = vpack.c.b16 %v667, %v635
        %v796 = vpack.c.b16 %v668, %v636
        %v797 = vpack.c.b16 %v669, %v637
        %v798 = vpack.c.b16 %v670, %v638
        %v799 = vpack.c.b16 %v671, %v639
        %v800 = vpack.c.b16 %v672, %v640
        %v801 = vpack.c.b16 %v673, %v641
        %v802 = vpack.c.b16 %v674, %v642
        %v803 = vpack.c.b16 %v675, %v643
        %v804 = vpack.c.b16 %v676, %v644
        %v805 = vpack.c.b16 %v677, %v645
        %v806 = vpack.c.b16 %v710, %v678
        %v807 = vpack.c.b16 %v711, %v679
        %v808 = vpack.c.b16 %v712, %v680
        %v809 = vpack.c.b16 %v713, %v681
        %v810 = vpack.c.b16 %v714, %v682
        %v811 = vpack.c.b16 %v715, %v683
        %v812 = vpack.c.b16 %v716, %v684
        %v813 = vpack.c.b16 %v717, %v685
        %v814 = vpack.c.b16 %v718, %v686
        %v815 = vpack.c.b16 %v719, %v687
        %v816 = vpack.c.b16 %v720, %v688
        %v817 = vpack.c.b16 %v721, %v689
        %v818 = vpack.c.b16 %v722, %v690
        %v819 = vpack.c.b16 %v723, %v691
        %v820 = vpack.c.b16 %v724, %v692
        %v821 = vpack.c.b16 %v725, %v693
        %v822 = vpack.c.b16 %v726, %v694
        %v823 = vpack.c.b16 %v727, %v695
        %v824 = vpack.c.b16 %v728, %v696
        %v825 = vpack.c.b16 %v729, %v697
        %v826 = vpack.c.b16 %v730, %v698
        %v827 = vpack.c.b16 %v731, %v699
        %v828 = vpack.c.b16 %v732, %v700
        %v829 = vpack.c.b16 %v733, %v701
        %v830 = vpack.c.b16 %v734, %v702
        %v831 = vpack.c.b16 %v735, %v703
        %v832 = vpack.c.b16 %v736, %v704
        %v833 = vpack.c.b16 %v737, %v705
        %v834 = vpack.c.b16 %v738, %v706
        %v835 = vpack.c.b16 %v739, %v707
        %v836 = vpack.c.b16 %v740, %v708
        %v837 = vpack.c.b16 %v741, %v709
        %vm934 = vcmask 392192
        %v936 = vsel %vm934, %v357, 0
        %938 = vmatprep.subr.bf16.mxu0 %v743
        %939 = vmatpush1.bf16.msra.mxu0 %v742
        %940 = vmatprep.subr.bf16.mxu0 %v775
        %941 = vmatpush1.bf16.msra.mxu0 %v774
        %942 = vmatprep.subr.bf16.mxu0 %v807
        %943 = vmatpush1.bf16.msra.mxu0 %v806
        %944 = vmatprep.subr.bf16.mxu0 0
        %945 = vmatpush1.bf16.msra.mxu0 0
        %946 = vmatprep.subr.bf16.mxu0 0
        %947 = vmatpush1.bf16.msra.mxu0 0
        %948 = vmatprep.subr.bf16.mxu0 0
        %949 = vmatpush1.bf16.msra.mxu0 0
        %950 = vmatprep.subr.bf16.mxu0 0
        %951 = vmatpush1.bf16.msra.mxu0 0
        %952 = vmatprep.subr.bf16.mxu0 0
        %953 = vmatpush1.bf16.msra.mxu0 0
        %954 = vmatprep.subr.bf16.mxu0 0
        %955 = vmatpush1.bf16.msra.mxu0 0
        %956 = vmatprep.subr.bf16.mxu0 0
        %957 = vmatpush1.bf16.msra.mxu0 0
        %958 = vmatprep.subr.bf16.mxu0 0
        %959 = vmatpush1.bf16.msra.mxu0 0
        %960 = vmatprep.subr.bf16.mxu0 0
        %961 = vmatpush1.bf16.msra.mxu0 0
        %962 = vmatprep.subr.bf16.mxu0 0
        %963 = vmatpush1.bf16.msra.mxu0 0
        %964 = vmatprep.subr.bf16.mxu0 0
        %965 = vmatpush1.bf16.msra.mxu0 0
        %966 = vmatprep.subr.bf16.mxu0 0
        %967 = vmatpush1.bf16.msra.mxu0 0
        %968 = vmatprep.subr.bf16.mxu0 0
        %969 = vmatpush1.bf16.msra.mxu0 0
        %970 = vmatprep.mubr.bf16.mxu0 0
        %971 = vmatmul.mubr.bf16.gmra.mrb[0].mxu0 %v936
        %v972 = vpop.f32.mrb[0].mxu0
        %v973 = vadd.f32 0.0, %v972
        %v974 = vpop.f32.mrb[0].mxu0
        %v975 = vadd.f32 0.0, %v974
        %v976 = vpop.f32.mrb[0].mxu0
        %v977 = vpop.f32.mrb[0].mxu0
        %978 = vdwg.mxu0
        %979 = vmatprep.subr.bf16.mxu0 %v745
        %980 = vmatpush1.bf16.msra.mxu0 %v744
        %981 = vmatprep.subr.bf16.mxu0 %v777
        %982 = vmatpush1.bf16.msra.mxu0 %v776
        %983 = vmatprep.subr.bf16.mxu0 %v809
        %984 = vmatpush1.bf16.msra.mxu0 %v808
        %985 = vmatprep.subr.bf16.mxu0 0
        %986 = vmatpush1.bf16.msra.mxu0 0
        %987 = vmatprep.subr.bf16.mxu0 0
        %988 = vmatpush1.bf16.msra.mxu0 0
        %989 = vmatprep.subr.bf16.mxu0 0
        %990 = vmatpush1.bf16.msra.mxu0 0
        %991 = vmatprep.subr.bf16.mxu0 0
        %992 = vmatpush1.bf16.msra.mxu0 0
        %993 = vmatprep.subr.bf16.mxu0 0
        %994 = vmatpush1.bf16.msra.mxu0 0
        %995 = vmatprep.subr.bf16.mxu0 0
        %996 = vmatpush1.bf16.msra.mxu0 0
        %997 = vmatprep.subr.bf16.mxu0 0
        %998 = vmatpush1.bf16.msra.mxu0 0
        %999 = vmatprep.subr.bf16.mxu0 0
        %1000 = vmatpush1.bf16.msra.mxu0 0
        %1001 = vmatprep.subr.bf16.mxu0 0
        %1002 = vmatpush1.bf16.msra.mxu0 0
        %1003 = vmatprep.subr.bf16.mxu0 0
        %1004 = vmatpush1.bf16.msra.mxu0 0
        %1005 = vmatprep.subr.bf16.mxu0 0
        %1006 = vmatpush1.bf16.msra.mxu0 0
        %1007 = vmatprep.subr.bf16.mxu0 0
        %1008 = vmatpush1.bf16.msra.mxu0 0
        %1009 = vmatprep.subr.bf16.mxu0 0
        %1010 = vmatpush1.bf16.msra.mxu0 0
        %1011 = vmatprep.mubr.bf16.mxu0 0
        %1012 = vmatmul.mubr.bf16.gmra.mrb[0].mxu0 %v936
        %v1013 = vpop.f32.mrb[0].mxu0
        %v1014 = vadd.f32 0.0, %v1013
        %v1015 = vpop.f32.mrb[0].mxu0
        %v1016 = vadd.f32 0.0, %v1015
        %v1017 = vpop.f32.mrb[0].mxu0
        %v1018 = vpop.f32.mrb[0].mxu0
        %1019 = vdwg.mxu0
        %1020 = vmatprep.subr.bf16.mxu0 %v747
        %1021 = vmatpush1.bf16.msra.mxu0 %v746
        %1022 = vmatprep.subr.bf16.mxu0 %v779
        %1023 = vmatpush1.bf16.msra.mxu0 %v778
        %1024 = vmatprep.subr.bf16.mxu0 %v811
        %1025 = vmatpush1.bf16.msra.mxu0 %v810
        %1026 = vmatprep.subr.bf16.mxu0 0
        %1027 = vmatpush1.bf16.msra.mxu0 0
        %1028 = vmatprep.subr.bf16.mxu0 0
        %1029 = vmatpush1.bf16.msra.mxu0 0
        %1030 = vmatprep.subr.bf16.mxu0 0
        %1031 = vmatpush1.bf16.msra.mxu0 0
        %1032 = vmatprep.subr.bf16.mxu0 0
        %1033 = vmatpush1.bf16.msra.mxu0 0
        %1034 = vmatprep.subr.bf16.mxu0 0
        %1035 = vmatpush1.bf16.msra.mxu0 0
        %1036 = vmatprep.subr.bf16.mxu0 0
        %1037 = vmatpush1.bf16.msra.mxu0 0
        %1038 = vmatprep.subr.bf16.mxu0 0
        %1039 = vmatpush1.bf16.msra.mxu0 0
        %1040 = vmatprep.subr.bf16.mxu0 0
        %1041 = vmatpush1.bf16.msra.mxu0 0
        %1042 = vmatprep.subr.bf16.mxu0 0
        %1043 = vmatpush1.bf16.msra.mxu0 0
        %1044 = vmatprep.subr.bf16.mxu0 0
        %1045 = vmatpush1.bf16.msra.mxu0 0
        %1046 = vmatprep.subr.bf16.mxu0 0
        %1047 = vmatpush1.bf16.msra.mxu0 0
        %1048 = vmatprep.subr.bf16.mxu0 0
        %1049 = vmatpush1.bf16.msra.mxu0 0
        %1050 = vmatprep.subr.bf16.mxu0 0
        %1051 = vmatpush1.bf16.msra.mxu0 0
        %1052 = vmatprep.mubr.bf16.mxu0 0
        %1053 = vmatmul.mubr.bf16.gmra.mrb[0].mxu0 %v936
        %v1054 = vpop.f32.mrb[0].mxu0
        %v1055 = vadd.f32 0.0, %v1054
        %v1056 = vpop.f32.mrb[0].mxu0
        %v1057 = vadd.f32 0.0, %v1056
        %v1058 = vpop.f32.mrb[0].mxu0
        %v1059 = vpop.f32.mrb[0].mxu0
        %1060 = vdwg.mxu0
        %1061 = vmatprep.subr.bf16.mxu0 %v749
        %1062 = vmatpush1.bf16.msra.mxu0 %v748
        %1063 = vmatprep.subr.bf16.mxu0 %v781
        %1064 = vmatpush1.bf16.msra.mxu0 %v780
        %1065 = vmatprep.subr.bf16.mxu0 %v813
        %1066 = vmatpush1.bf16.msra.mxu0 %v812
        %1067 = vmatprep.subr.bf16.mxu0 0
        %1068 = vmatpush1.bf16.msra.mxu0 0
        %1069 = vmatprep.subr.bf16.mxu0 0
        %1070 = vmatpush1.bf16.msra.mxu0 0
        %1071 = vmatprep.subr.bf16.mxu0 0
        %1072 = vmatpush1.bf16.msra.mxu0 0
        %1073 = vmatprep.subr.bf16.mxu0 0
        %1074 = vmatpush1.bf16.msra.mxu0 0
        %1075 = vmatprep.subr.bf16.mxu0 0
        %1076 = vmatpush1.bf16.msra.mxu0 0
        %1077 = vmatprep.subr.bf16.mxu0 0
        %1078 = vmatpush1.bf16.msra.mxu0 0
        %1079 = vmatprep.subr.bf16.mxu0 0
        %1080 = vmatpush1.bf16.msra.mxu0 0
        %1081 = vmatprep.subr.bf16.mxu0 0
        %1082 = vmatpush1.bf16.msra.mxu0 0
        %1083 = vmatprep.subr.bf16.mxu0 0
        %1084 = vmatpush1.bf16.msra.mxu0 0
        %1085 = vmatprep.subr.bf16.mxu0 0
        %1086 = vmatpush1.bf16.msra.mxu0 0
        %1087 = vmatprep.subr.bf16.mxu0 0
        %1088 = vmatpush1.bf16.msra.mxu0 0
        %1089 = vmatprep.subr.bf16.mxu0 0
        %1090 = vmatpush1.bf16.msra.mxu0 0
        %1091 = vmatprep.subr.bf16.mxu0 0
        %1092 = vmatpush1.bf16.msra.mxu0 0
        %1093 = vmatprep.mubr.bf16.mxu0 0
        %1094 = vmatmul.mubr.bf16.gmra.mrb[0].mxu0 %v936
        %v1095 = vpop.f32.mrb[0].mxu0
        %v1096 = vadd.f32 0.0, %v1095
        %v1097 = vpop.f32.mrb[0].mxu0
        %v1098 = vadd.f32 0.0, %v1097
        %v1099 = vpop.f32.mrb[0].mxu0
        %v1100 = vpop.f32.mrb[0].mxu0
        %1101 = vdwg.mxu0
        %1102 = vmatprep.subr.bf16.mxu0 %v751
        %1103 = vmatpush1.bf16.msra.mxu0 %v750
        %1104 = vmatprep.subr.bf16.mxu0 %v783
        %1105 = vmatpush1.bf16.msra.mxu0 %v782
        %1106 = vmatprep.subr.bf16.mxu0 %v815
        %1107 = vmatpush1.bf16.msra.mxu0 %v814
        %1108 = vmatprep.subr.bf16.mxu0 0
        %1109 = vmatpush1.bf16.msra.mxu0 0
        %1110 = vmatprep.subr.bf16.mxu0 0
        %1111 = vmatpush1.bf16.msra.mxu0 0
        %1112 = vmatprep.subr.bf16.mxu0 0
        %1113 = vmatpush1.bf16.msra.mxu0 0
        %1114 = vmatprep.subr.bf16.mxu0 0
        %1115 = vmatpush1.bf16.msra.mxu0 0
        %1116 = vmatprep.subr.bf16.mxu0 0
        %1117 = vmatpush1.bf16.msra.mxu0 0
        %1118 = vmatprep.subr.bf16.mxu0 0
        %1119 = vmatpush1.bf16.msra.mxu0 0
        %1120 = vmatprep.subr.bf16.mxu0 0
        %1121 = vmatpush1.bf16.msra.mxu0 0
        %1122 = vmatprep.subr.bf16.mxu0 0
        %1123 = vmatpush1.bf16.msra.mxu0 0
        %1124 = vmatprep.subr.bf16.mxu0 0
        %1125 = vmatpush1.bf16.msra.mxu0 0
        %1126 = vmatprep.subr.bf16.mxu0 0
        %1127 = vmatpush1.bf16.msra.mxu0 0
        %1128 = vmatprep.subr.bf16.mxu0 0
        %1129 = vmatpush1.bf16.msra.mxu0 0
        %1130 = vmatprep.subr.bf16.mxu0 0
        %1131 = vmatpush1.bf16.msra.mxu0 0
        %1132 = vmatprep.subr.bf16.mxu0 0
        %1133 = vmatpush1.bf16.msra.mxu0 0
        %1134 = vmatprep.mubr.bf16.mxu0 0
        %1135 = vmatmul.mubr.bf16.gmra.mrb[0].mxu0 %v936
        %v1136 = vpop.f32.mrb[0].mxu0
        %v1137 = vadd.f32 0.0, %v1136
        %v1138 = vpop.f32.mrb[0].mxu0
        %v1139 = vadd.f32 0.0, %v1138
        %v1140 = vpop.f32.mrb[0].mxu0
        %v1141 = vpop.f32.mrb[0].mxu0
        %1142 = vdwg.mxu0
        %1143 = vmatprep.subr.bf16.mxu0 %v753
        %1144 = vmatpush1.bf16.msra.mxu0 %v752
        %1145 = vmatprep.subr.bf16.mxu0 %v785
        %1146 = vmatpush1.bf16.msra.mxu0 %v784
        %1147 = vmatprep.subr.bf16.mxu0 %v817
        %1148 = vmatpush1.bf16.msra.mxu0 %v816
        %1149 = vmatprep.subr.bf16.mxu0 0
        %1150 = vmatpush1.bf16.msra.mxu0 0
        %1151 = vmatprep.subr.bf16.mxu0 0
        %1152 = vmatpush1.bf16.msra.mxu0 0
        %1153 = vmatprep.subr.bf16.mxu0 0
        %1154 = vmatpush1.bf16.msra.mxu0 0
        %1155 = vmatprep.subr.bf16.mxu0 0
        %1156 = vmatpush1.bf16.msra.mxu0 0
        %1157 = vmatprep.subr.bf16.mxu0 0
        %1158 = vmatpush1.bf16.msra.mxu0 0
        %1159 = vmatprep.subr.bf16.mxu0 0
        %1160 = vmatpush1.bf16.msra.mxu0 0
        %1161 = vmatprep.subr.bf16.mxu0 0
        %1162 = vmatpush1.bf16.msra.mxu0 0
        %1163 = vmatprep.subr.bf16.mxu0 0
        %1164 = vmatpush1.bf16.msra.mxu0 0
        %1165 = vmatprep.subr.bf16.mxu0 0
        %1166 = vmatpush1.bf16.msra.mxu0 0
        %1167 = vmatprep.subr.bf16.mxu0 0
        %1168 = vmatpush1.bf16.msra.mxu0 0
        %1169 = vmatprep.subr.bf16.mxu0 0
        %1170 = vmatpush1.bf16.msra.mxu0 0
        %1171 = vmatprep.subr.bf16.mxu0 0
        %1172 = vmatpush1.bf16.msra.mxu0 0
        %1173 = vmatprep.subr.bf16.mxu0 0
        %1174 = vmatpush1.bf16.msra.mxu0 0
        %1175 = vmatprep.mubr.bf16.mxu0 0
        %1176 = vmatmul.mubr.bf16.gmra.mrb[0].mxu0 %v936
        %v1177 = vpop.f32.mrb[0].mxu0
        %v1178 = vadd.f32 0.0, %v1177
        %v1179 = vpop.f32.mrb[0].mxu0
        %v1180 = vadd.f32 0.0, %v1179
        %v1181 = vpop.f32.mrb[0].mxu0
        %v1182 = vpop.f32.mrb[0].mxu0
        %1183 = vdwg.mxu0
        %1184 = vmatprep.subr.bf16.mxu0 %v755
        %1185 = vmatpush1.bf16.msra.mxu0 %v754
        %1186 = vmatprep.subr.bf16.mxu0 %v787
        %1187 = vmatpush1.bf16.msra.mxu0 %v786
        %1188 = vmatprep.subr.bf16.mxu0 %v819
        %1189 = vmatpush1.bf16.msra.mxu0 %v818
        %1190 = vmatprep.subr.bf16.mxu0 0
        %1191 = vmatpush1.bf16.msra.mxu0 0
        %1192 = vmatprep.subr.bf16.mxu0 0
        %1193 = vmatpush1.bf16.msra.mxu0 0
        %1194 = vmatprep.subr.bf16.mxu0 0
        %1195 = vmatpush1.bf16.msra.mxu0 0
        %1196 = vmatprep.subr.bf16.mxu0 0
        %1197 = vmatpush1.bf16.msra.mxu0 0
        %1198 = vmatprep.subr.bf16.mxu0 0
        %1199 = vmatpush1.bf16.msra.mxu0 0
        %1200 = vmatprep.subr.bf16.mxu0 0
        %1201 = vmatpush1.bf16.msra.mxu0 0
        %1202 = vmatprep.subr.bf16.mxu0 0
        %1203 = vmatpush1.bf16.msra.mxu0 0
        %1204 = vmatprep.subr.bf16.mxu0 0
        %1205 = vmatpush1.bf16.msra.mxu0 0
        %1206 = vmatprep.subr.bf16.mxu0 0
        %1207 = vmatpush1.bf16.msra.mxu0 0
        %1208 = vmatprep.subr.bf16.mxu0 0
        %1209 = vmatpush1.bf16.msra.mxu0 0
        %1210 = vmatprep.subr.bf16.mxu0 0
        %1211 = vmatpush1.bf16.msra.mxu0 0
        %1212 = vmatprep.subr.bf16.mxu0 0
        %1213 = vmatpush1.bf16.msra.mxu0 0
        %1214 = vmatprep.subr.bf16.mxu0 0
        %1215 = vmatpush1.bf16.msra.mxu0 0
        %1216 = vmatprep.mubr.bf16.mxu0 0
        %1217 = vmatmul.mubr.bf16.gmra.mrb[0].mxu0 %v936
        %v1218 = vpop.f32.mrb[0].mxu0
        %v1219 = vadd.f32 0.0, %v1218
        %v1220 = vpop.f32.mrb[0].mxu0
        %v1221 = vadd.f32 0.0, %v1220
        %v1222 = vpop.f32.mrb[0].mxu0
        %v1223 = vpop.f32.mrb[0].mxu0
        %1224 = vdwg.mxu0
        %1225 = vmatprep.subr.bf16.mxu0 %v757
        %1226 = vmatpush1.bf16.msra.mxu0 %v756
        %1227 = vmatprep.subr.bf16.mxu0 %v789
        %1228 = vmatpush1.bf16.msra.mxu0 %v788
        %1229 = vmatprep.subr.bf16.mxu0 %v821
        %1230 = vmatpush1.bf16.msra.mxu0 %v820
        %1231 = vmatprep.subr.bf16.mxu0 0
        %1232 = vmatpush1.bf16.msra.mxu0 0
        %1233 = vmatprep.subr.bf16.mxu0 0
        %1234 = vmatpush1.bf16.msra.mxu0 0
        %1235 = vmatprep.subr.bf16.mxu0 0
        %1236 = vmatpush1.bf16.msra.mxu0 0
        %1237 = vmatprep.subr.bf16.mxu0 0
        %1238 = vmatpush1.bf16.msra.mxu0 0
        %1239 = vmatprep.subr.bf16.mxu0 0
        %1240 = vmatpush1.bf16.msra.mxu0 0
        %1241 = vmatprep.subr.bf16.mxu0 0
        %1242 = vmatpush1.bf16.msra.mxu0 0
        %1243 = vmatprep.subr.bf16.mxu0 0
        %1244 = vmatpush1.bf16.msra.mxu0 0
        %1245 = vmatprep.subr.bf16.mxu0 0
        %1246 = vmatpush1.bf16.msra.mxu0 0
        %1247 = vmatprep.subr.bf16.mxu0 0
        %1248 = vmatpush1.bf16.msra.mxu0 0
        %1249 = vmatprep.subr.bf16.mxu0 0
        %1250 = vmatpush1.bf16.msra.mxu0 0
        %1251 = vmatprep.subr.bf16.mxu0 0
        %1252 = vmatpush1.bf16.msra.mxu0 0
        %1253 = vmatprep.subr.bf16.mxu0 0
        %1254 = vmatpush1.bf16.msra.mxu0 0
        %1255 = vmatprep.subr.bf16.mxu0 0
        %1256 = vmatpush1.bf16.msra.mxu0 0
        %1257 = vmatprep.mubr.bf16.mxu0 0
        %1258 = vmatmul.mubr.bf16.gmra.mrb[0].mxu0 %v936
        %v1259 = vpop.f32.mrb[0].mxu0
        %v1260 = vadd.f32 0.0, %v1259
        %v1261 = vpop.f32.mrb[0].mxu0
        %v1262 = vadd.f32 0.0, %v1261
        %v1263 = vpop.f32.mrb[0].mxu0
        %v1264 = vpop.f32.mrb[0].mxu0
        %1265 = vdwg.mxu0
        %1266 = vmatprep.subr.bf16.mxu0 %v759
        %1267 = vmatpush1.bf16.msra.mxu0 %v758
        %1268 = vmatprep.subr.bf16.mxu0 %v791
        %1269 = vmatpush1.bf16.msra.mxu0 %v790
        %1270 = vmatprep.subr.bf16.mxu0 %v823
        %1271 = vmatpush1.bf16.msra.mxu0 %v822
        %1272 = vmatprep.subr.bf16.mxu0 0
        %1273 = vmatpush1.bf16.msra.mxu0 0
        %1274 = vmatprep.subr.bf16.mxu0 0
        %1275 = vmatpush1.bf16.msra.mxu0 0
        %1276 = vmatprep.subr.bf16.mxu0 0
        %1277 = vmatpush1.bf16.msra.mxu0 0
        %1278 = vmatprep.subr.bf16.mxu0 0
        %1279 = vmatpush1.bf16.msra.mxu0 0
        %1280 = vmatprep.subr.bf16.mxu0 0
        %1281 = vmatpush1.bf16.msra.mxu0 0
        %1282 = vmatprep.subr.bf16.mxu0 0
        %1283 = vmatpush1.bf16.msra.mxu0 0
        %1284 = vmatprep.subr.bf16.mxu0 0
        %1285 = vmatpush1.bf16.msra.mxu0 0
        %1286 = vmatprep.subr.bf16.mxu0 0
        %1287 = vmatpush1.bf16.msra.mxu0 0
        %1288 = vmatprep.subr.bf16.mxu0 0
        %1289 = vmatpush1.bf16.msra.mxu0 0
        %1290 = vmatprep.subr.bf16.mxu0 0
        %1291 = vmatpush1.bf16.msra.mxu0 0
        %1292 = vmatprep.subr.bf16.mxu0 0
        %1293 = vmatpush1.bf16.msra.mxu0 0
        %1294 = vmatprep.subr.bf16.mxu0 0
        %1295 = vmatpush1.bf16.msra.mxu0 0
        %1296 = vmatprep.subr.bf16.mxu0 0
        %1297 = vmatpush1.bf16.msra.mxu0 0
        %1298 = vmatprep.mubr.bf16.mxu0 0
        %1299 = vmatmul.mubr.bf16.gmra.mrb[0].mxu0 %v936
        %v1300 = vpop.f32.mrb[0].mxu0
        %v1301 = vadd.f32 0.0, %v1300
        %v1302 = vpop.f32.mrb[0].mxu0
        %v1303 = vadd.f32 0.0, %v1302
        %v1304 = vpop.f32.mrb[0].mxu0
        %v1305 = vpop.f32.mrb[0].mxu0
        %1306 = vdwg.mxu0
        %1307 = vmatprep.subr.bf16.mxu0 %v761
        %1308 = vmatpush1.bf16.msra.mxu0 %v760
        %1309 = vmatprep.subr.bf16.mxu0 %v793
        %1310 = vmatpush1.bf16.msra.mxu0 %v792
        %1311 = vmatprep.subr.bf16.mxu0 %v825
        %1312 = vmatpush1.bf16.msra.mxu0 %v824
        %1313 = vmatprep.subr.bf16.mxu0 0
        %1314 = vmatpush1.bf16.msra.mxu0 0
        %1315 = vmatprep.subr.bf16.mxu0 0
        %1316 = vmatpush1.bf16.msra.mxu0 0
        %1317 = vmatprep.subr.bf16.mxu0 0
        %1318 = vmatpush1.bf16.msra.mxu0 0
        %1319 = vmatprep.subr.bf16.mxu0 0
        %1320 = vmatpush1.bf16.msra.mxu0 0
        %1321 = vmatprep.subr.bf16.mxu0 0
        %1322 = vmatpush1.bf16.msra.mxu0 0
        %1323 = vmatprep.subr.bf16.mxu0 0
        %1324 = vmatpush1.bf16.msra.mxu0 0
        %1325 = vmatprep.subr.bf16.mxu0 0
        %1326 = vmatpush1.bf16.msra.mxu0 0
        %1327 = vmatprep.subr.bf16.mxu0 0
        %1328 = vmatpush1.bf16.msra.mxu0 0
        %1329 = vmatprep.subr.bf16.mxu0 0
        %1330 = vmatpush1.bf16.msra.mxu0 0
        %1331 = vmatprep.subr.bf16.mxu0 0
        %1332 = vmatpush1.bf16.msra.mxu0 0
        %1333 = vmatprep.subr.bf16.mxu0 0
        %1334 = vmatpush1.bf16.msra.mxu0 0
        %1335 = vmatprep.subr.bf16.mxu0 0
        %1336 = vmatpush1.bf16.msra.mxu0 0
        %1337 = vmatprep.subr.bf16.mxu0 0
        %1338 = vmatpush1.bf16.msra.mxu0 0
        %1339 = vmatprep.mubr.bf16.mxu0 0
        %1340 = vmatmul.mubr.bf16.gmra.mrb[0].mxu0 %v936
        %v1341 = vpop.f32.mrb[0].mxu0
        %v1342 = vadd.f32 0.0, %v1341
        %v1343 = vpop.f32.mrb[0].mxu0
        %v1344 = vadd.f32 0.0, %v1343
        %v1345 = vpop.f32.mrb[0].mxu0
        %v1346 = vpop.f32.mrb[0].mxu0
        %1347 = vdwg.mxu0
        %1348 = vmatprep.subr.bf16.mxu0 %v763
        %1349 = vmatpush1.bf16.msra.mxu0 %v762
        %1350 = vmatprep.subr.bf16.mxu0 %v795
        %1351 = vmatpush1.bf16.msra.mxu0 %v794
        %1352 = vmatprep.subr.bf16.mxu0 %v827
        %1353 = vmatpush1.bf16.msra.mxu0 %v826
        %1354 = vmatprep.subr.bf16.mxu0 0
        %1355 = vmatpush1.bf16.msra.mxu0 0
        %1356 = vmatprep.subr.bf16.mxu0 0
        %1357 = vmatpush1.bf16.msra.mxu0 0
        %1358 = vmatprep.subr.bf16.mxu0 0
        %1359 = vmatpush1.bf16.msra.mxu0 0
        %1360 = vmatprep.subr.bf16.mxu0 0
        %1361 = vmatpush1.bf16.msra.mxu0 0
        %1362 = vmatprep.subr.bf16.mxu0 0
        %1363 = vmatpush1.bf16.msra.mxu0 0
        %1364 = vmatprep.subr.bf16.mxu0 0
        %1365 = vmatpush1.bf16.msra.mxu0 0
        %1366 = vmatprep.subr.bf16.mxu0 0
        %1367 = vmatpush1.bf16.msra.mxu0 0
        %1368 = vmatprep.subr.bf16.mxu0 0
        %1369 = vmatpush1.bf16.msra.mxu0 0
        %1370 = vmatprep.subr.bf16.mxu0 0
        %1371 = vmatpush1.bf16.msra.mxu0 0
        %1372 = vmatprep.subr.bf16.mxu0 0
        %1373 = vmatpush1.bf16.msra.mxu0 0
        %1374 = vmatprep.subr.bf16.mxu0 0
        %1375 = vmatpush1.bf16.msra.mxu0 0
        %1376 = vmatprep.subr.bf16.mxu0 0
        %1377 = vmatpush1.bf16.msra.mxu0 0
        %1378 = vmatprep.subr.bf16.mxu0 0
        %1379 = vmatpush1.bf16.msra.mxu0 0
        %1380 = vmatprep.mubr.bf16.mxu0 0
        %1381 = vmatmul.mubr.bf16.gmra.mrb[0].mxu0 %v936
        %v1382 = vpop.f32.mrb[0].mxu0
        %v1383 = vadd.f32 0.0, %v1382
        %v1384 = vpop.f32.mrb[0].mxu0
        %v1385 = vadd.f32 0.0, %v1384
        %v1386 = vpop.f32.mrb[0].mxu0
        %v1387 = vpop.f32.mrb[0].mxu0
        %1388 = vdwg.mxu0
        %1389 = vmatprep.subr.bf16.mxu0 %v765
        %1390 = vmatpush1.bf16.msra.mxu0 %v764
        %1391 = vmatprep.subr.bf16.mxu0 %v797
        %1392 = vmatpush1.bf16.msra.mxu0 %v796
        %1393 = vmatprep.subr.bf16.mxu0 %v829
        %1394 = vmatpush1.bf16.msra.mxu0 %v828
        %1395 = vmatprep.subr.bf16.mxu0 0
        %1396 = vmatpush1.bf16.msra.mxu0 0
        %1397 = vmatprep.subr.bf16.mxu0 0
        %1398 = vmatpush1.bf16.msra.mxu0 0
        %1399 = vmatprep.subr.bf16.mxu0 0
        %1400 = vmatpush1.bf16.msra.mxu0 0
        %1401 = vmatprep.subr.bf16.mxu0 0
        %1402 = vmatpush1.bf16.msra.mxu0 0
        %1403 = vmatprep.subr.bf16.mxu0 0
        %1404 = vmatpush1.bf16.msra.mxu0 0
        %1405 = vmatprep.subr.bf16.mxu0 0
        %1406 = vmatpush1.bf16.msra.mxu0 0
        %1407 = vmatprep.subr.bf16.mxu0 0
        %1408 = vmatpush1.bf16.msra.mxu0 0
        %1409 = vmatprep.subr.bf16.mxu0 0
        %1410 = vmatpush1.bf16.msra.mxu0 0
        %1411 = vmatprep.subr.bf16.mxu0 0
        %1412 = vmatpush1.bf16.msra.mxu0 0
        %1413 = vmatprep.subr.bf16.mxu0 0
        %1414 = vmatpush1.bf16.msra.mxu0 0
        %1415 = vmatprep.subr.bf16.mxu0 0
        %1416 = vmatpush1.bf16.msra.mxu0 0
        %1417 = vmatprep.subr.bf16.mxu0 0
        %1418 = vmatpush1.bf16.msra.mxu0 0
        %1419 = vmatprep.subr.bf16.mxu0 0
        %1420 = vmatpush1.bf16.msra.mxu0 0
        %1421 = vmatprep.mubr.bf16.mxu0 0
        %1422 = vmatmul.mubr.bf16.gmra.mrb[0].mxu0 %v936
        %v1423 = vpop.f32.mrb[0].mxu0
        %v1424 = vadd.f32 0.0, %v1423
        %v1425 = vpop.f32.mrb[0].mxu0
        %v1426 = vadd.f32 0.0, %v1425
        %v1427 = vpop.f32.mrb[0].mxu0
        %v1428 = vpop.f32.mrb[0].mxu0
        %1429 = vdwg.mxu0
        %1430 = vmatprep.subr.bf16.mxu0 %v767
        %1431 = vmatpush1.bf16.msra.mxu0 %v766
        %1432 = vmatprep.subr.bf16.mxu0 %v799
        %1433 = vmatpush1.bf16.msra.mxu0 %v798
        %1434 = vmatprep.subr.bf16.mxu0 %v831
        %1435 = vmatpush1.bf16.msra.mxu0 %v830
        %1436 = vmatprep.subr.bf16.mxu0 0
        %1437 = vmatpush1.bf16.msra.mxu0 0
        %1438 = vmatprep.subr.bf16.mxu0 0
        %1439 = vmatpush1.bf16.msra.mxu0 0
        %1440 = vmatprep.subr.bf16.mxu0 0
        %1441 = vmatpush1.bf16.msra.mxu0 0
        %1442 = vmatprep.subr.bf16.mxu0 0
        %1443 = vmatpush1.bf16.msra.mxu0 0
        %1444 = vmatprep.subr.bf16.mxu0 0
        %1445 = vmatpush1.bf16.msra.mxu0 0
        %1446 = vmatprep.subr.bf16.mxu0 0
        %1447 = vmatpush1.bf16.msra.mxu0 0
        %1448 = vmatprep.subr.bf16.mxu0 0
        %1449 = vmatpush1.bf16.msra.mxu0 0
        %1450 = vmatprep.subr.bf16.mxu0 0
        %1451 = vmatpush1.bf16.msra.mxu0 0
        %1452 = vmatprep.subr.bf16.mxu0 0
        %1453 = vmatpush1.bf16.msra.mxu0 0
        %1454 = vmatprep.subr.bf16.mxu0 0
        %1455 = vmatpush1.bf16.msra.mxu0 0
        %1456 = vmatprep.subr.bf16.mxu0 0
        %1457 = vmatpush1.bf16.msra.mxu0 0
        %1458 = vmatprep.subr.bf16.mxu0 0
        %1459 = vmatpush1.bf16.msra.mxu0 0
        %1460 = vmatprep.subr.bf16.mxu0 0
        %1461 = vmatpush1.bf16.msra.mxu0 0
        %1462 = vmatprep.mubr.bf16.mxu0 0
        %1463 = vmatmul.mubr.bf16.gmra.mrb[0].mxu0 %v936
        %v1464 = vpop.f32.mrb[0].mxu0
        %v1465 = vadd.f32 0.0, %v1464
        %v1466 = vpop.f32.mrb[0].mxu0
        %v1467 = vadd.f32 0.0, %v1466
        %v1468 = vpop.f32.mrb[0].mxu0
        %v1469 = vpop.f32.mrb[0].mxu0
        %1470 = vdwg.mxu0
        %1471 = vmatprep.subr.bf16.mxu0 %v769
        %1472 = vmatpush1.bf16.msra.mxu0 %v768
        %1473 = vmatprep.subr.bf16.mxu0 %v801
        %1474 = vmatpush1.bf16.msra.mxu0 %v800
        %1475 = vmatprep.subr.bf16.mxu0 %v833
        %1476 = vmatpush1.bf16.msra.mxu0 %v832
        %1477 = vmatprep.subr.bf16.mxu0 0
        %1478 = vmatpush1.bf16.msra.mxu0 0
        %1479 = vmatprep.subr.bf16.mxu0 0
        %1480 = vmatpush1.bf16.msra.mxu0 0
        %1481 = vmatprep.subr.bf16.mxu0 0
        %1482 = vmatpush1.bf16.msra.mxu0 0
        %1483 = vmatprep.subr.bf16.mxu0 0
        %1484 = vmatpush1.bf16.msra.mxu0 0
        %1485 = vmatprep.subr.bf16.mxu0 0
        %1486 = vmatpush1.bf16.msra.mxu0 0
        %1487 = vmatprep.subr.bf16.mxu0 0
        %1488 = vmatpush1.bf16.msra.mxu0 0
        %1489 = vmatprep.subr.bf16.mxu0 0
        %1490 = vmatpush1.bf16.msra.mxu0 0
        %1491 = vmatprep.subr.bf16.mxu0 0
        %1492 = vmatpush1.bf16.msra.mxu0 0
        %1493 = vmatprep.subr.bf16.mxu0 0
        %1494 = vmatpush1.bf16.msra.mxu0 0
        %1495 = vmatprep.subr.bf16.mxu0 0
        %1496 = vmatpush1.bf16.msra.mxu0 0
        %1497 = vmatprep.subr.bf16.mxu0 0
        %1498 = vmatpush1.bf16.msra.mxu0 0
        %1499 = vmatprep.subr.bf16.mxu0 0
        %1500 = vmatpush1.bf16.msra.mxu0 0
        %1501 = vmatprep.subr.bf16.mxu0 0
        %1502 = vmatpush1.bf16.msra.mxu0 0
        %1503 = vmatprep.mubr.bf16.mxu0 0
        %1504 = vmatmul.mubr.bf16.gmra.mrb[0].mxu0 %v936
        %v1505 = vpop.f32.mrb[0].mxu0
        %v1506 = vadd.f32 0.0, %v1505
        %v1507 = vpop.f32.mrb[0].mxu0
        %v1508 = vadd.f32 0.0, %v1507
        %v1509 = vpop.f32.mrb[0].mxu0
        %v1510 = vpop.f32.mrb[0].mxu0
        %1511 = vdwg.mxu0
        %1512 = vmatprep.subr.bf16.mxu0 %v771
        %1513 = vmatpush1.bf16.msra.mxu0 %v770
        %1514 = vmatprep.subr.bf16.mxu0 %v803
        %1515 = vmatpush1.bf16.msra.mxu0 %v802
        %1516 = vmatprep.subr.bf16.mxu0 %v835
        %1517 = vmatpush1.bf16.msra.mxu0 %v834
        %1518 = vmatprep.subr.bf16.mxu0 0
        %1519 = vmatpush1.bf16.msra.mxu0 0
        %1520 = vmatprep.subr.bf16.mxu0 0
        %1521 = vmatpush1.bf16.msra.mxu0 0
        %1522 = vmatprep.subr.bf16.mxu0 0
        %1523 = vmatpush1.bf16.msra.mxu0 0
        %1524 = vmatprep.subr.bf16.mxu0 0
        %1525 = vmatpush1.bf16.msra.mxu0 0
        %1526 = vmatprep.subr.bf16.mxu0 0
        %1527 = vmatpush1.bf16.msra.mxu0 0
        %1528 = vmatprep.subr.bf16.mxu0 0
        %1529 = vmatpush1.bf16.msra.mxu0 0
        %1530 = vmatprep.subr.bf16.mxu0 0
        %1531 = vmatpush1.bf16.msra.mxu0 0
        %1532 = vmatprep.subr.bf16.mxu0 0
        %1533 = vmatpush1.bf16.msra.mxu0 0
        %1534 = vmatprep.subr.bf16.mxu0 0
        %1535 = vmatpush1.bf16.msra.mxu0 0
        %1536 = vmatprep.subr.bf16.mxu0 0
        %1537 = vmatpush1.bf16.msra.mxu0 0
        %1538 = vmatprep.subr.bf16.mxu0 0
        %1539 = vmatpush1.bf16.msra.mxu0 0
        %1540 = vmatprep.subr.bf16.mxu0 0
        %1541 = vmatpush1.bf16.msra.mxu0 0
        %1542 = vmatprep.subr.bf16.mxu0 0
        %1543 = vmatpush1.bf16.msra.mxu0 0
        %1544 = vmatprep.mubr.bf16.mxu0 0
        %1545 = vmatmul.mubr.bf16.gmra.mrb[0].mxu0 %v936
        %v1546 = vpop.f32.mrb[0].mxu0
        %v1547 = vadd.f32 0.0, %v1546
        %v1548 = vpop.f32.mrb[0].mxu0
        %v1549 = vadd.f32 0.0, %v1548
        %v1550 = vpop.f32.mrb[0].mxu0
        %v1551 = vpop.f32.mrb[0].mxu0
        %1552 = vdwg.mxu0
        %1553 = vmatprep.subr.bf16.mxu0 %v773
        %1554 = vmatpush1.bf16.msra.mxu0 %v772
        %1555 = vmatprep.subr.bf16.mxu0 %v805
        %1556 = vmatpush1.bf16.msra.mxu0 %v804
        %1557 = vmatprep.subr.bf16.mxu0 %v837
        %1558 = vmatpush1.bf16.msra.mxu0 %v836
        %1559 = vmatprep.subr.bf16.mxu0 0
        %1560 = vmatpush1.bf16.msra.mxu0 0
        %1561 = vmatprep.subr.bf16.mxu0 0
        %1562 = vmatpush1.bf16.msra.mxu0 0
        %1563 = vmatprep.subr.bf16.mxu0 0
        %1564 = vmatpush1.bf16.msra.mxu0 0
        %1565 = vmatprep.subr.bf16.mxu0 0
        %1566 = vmatpush1.bf16.msra.mxu0 0
        %1567 = vmatprep.subr.bf16.mxu0 0
        %1568 = vmatpush1.bf16.msra.mxu0 0
        %1569 = vmatprep.subr.bf16.mxu0 0
        %1570 = vmatpush1.bf16.msra.mxu0 0
        %1571 = vmatprep.subr.bf16.mxu0 0
        %1572 = vmatpush1.bf16.msra.mxu0 0
        %1573 = vmatprep.subr.bf16.mxu0 0
        %1574 = vmatpush1.bf16.msra.mxu0 0
        %1575 = vmatprep.subr.bf16.mxu0 0
        %1576 = vmatpush1.bf16.msra.mxu0 0
        %1577 = vmatprep.subr.bf16.mxu0 0
        %1578 = vmatpush1.bf16.msra.mxu0 0
        %1579 = vmatprep.subr.bf16.mxu0 0
        %1580 = vmatpush1.bf16.msra.mxu0 0
        %1581 = vmatprep.subr.bf16.mxu0 0
        %1582 = vmatpush1.bf16.msra.mxu0 0
        %1583 = vmatprep.subr.bf16.mxu0 0
        %1584 = vmatpush1.bf16.msra.mxu0 0
        %1585 = vmatprep.mubr.bf16.mxu0 0
        %1586 = vmatmul.mubr.bf16.gmra.mrb[0].mxu0 %v936
        %v1587 = vpop.f32.mrb[0].mxu0
        %v1588 = vadd.f32 0.0, %v1587
        %v1589 = vpop.f32.mrb[0].mxu0
        %v1590 = vadd.f32 0.0, %v1589
        %v1591 = vpop.f32.mrb[0].mxu0
        %v1592 = vpop.f32.mrb[0].mxu0
        %1593 = vdwg.mxu0
        %vm1594 = vcmp.gt.f32.partialorder %v973, 0.0
        %vm1595 = vcmp.gt.f32.partialorder %v975, 0.0
        %vm1596 = vcmp.gt.f32.partialorder %v1014, 0.0
        %vm1597 = vcmp.gt.f32.partialorder %v1016, 0.0
        %vm1598 = vcmp.gt.f32.partialorder %v1055, 0.0
        %vm1599 = vcmp.gt.f32.partialorder %v1057, 0.0
        %vm1600 = vcmp.gt.f32.partialorder %v1096, 0.0
        %vm1601 = vcmp.gt.f32.partialorder %v1098, 0.0
        %vm1602 = vcmp.gt.f32.partialorder %v1137, 0.0
        %vm1603 = vcmp.gt.f32.partialorder %v1139, 0.0
        %vm1604 = vcmp.gt.f32.partialorder %v1178, 0.0
        %vm1605 = vcmp.gt.f32.partialorder %v1180, 0.0
        %vm1606 = vcmp.gt.f32.partialorder %v1219, 0.0
        %vm1607 = vcmp.gt.f32.partialorder %v1221, 0.0
        %vm1608 = vcmp.gt.f32.partialorder %v1260, 0.0
        %vm1609 = vcmp.gt.f32.partialorder %v1262, 0.0
        %vm1610 = vcmp.gt.f32.partialorder %v1301, 0.0
        %vm1611 = vcmp.gt.f32.partialorder %v1303, 0.0
        %vm1612 = vcmp.gt.f32.partialorder %v1342, 0.0
        %vm1613 = vcmp.gt.f32.partialorder %v1344, 0.0
        %vm1614 = vcmp.gt.f32.partialorder %v1383, 0.0
        %vm1615 = vcmp.gt.f32.partialorder %v1385, 0.0
        %vm1616 = vcmp.gt.f32.partialorder %v1424, 0.0
        %vm1617 = vcmp.gt.f32.partialorder %v1426, 0.0
        %vm1618 = vcmp.gt.f32.partialorder %v1465, 0.0
        %vm1619 = vcmp.gt.f32.partialorder %v1467, 0.0
        %vm1620 = vcmp.gt.f32.partialorder %v1506, 0.0
        %vm1621 = vcmp.gt.f32.partialorder %v1508, 0.0
        %vm1622 = vcmp.gt.f32.partialorder %v1547, 0.0
        %vm1623 = vcmp.gt.f32.partialorder %v1549, 0.0
        %vm1624 = vcmp.gt.f32.partialorder %v1588, 0.0
        %vm1625 = vcmp.gt.f32.partialorder %v1590, 0.0
        %v1626 = vmul.f32 %v973, 1.442695
        %v1627 = vpow.pop %v1626
        %v1628 = vmul.f32 %v975, 1.442695
        %v1629 = vpow.pop %v1628
        %v1630 = vmul.f32 %v1014, 1.442695
        %v1631 = vpow.pop %v1630
        %v1632 = vmul.f32 %v1016, 1.442695
        %v1633 = vpow.pop %v1632
        %v1634 = vmul.f32 %v1055, 1.442695
        %v1635 = vpow.pop %v1634
        %v1636 = vmul.f32 %v1057, 1.442695
        %v1637 = vpow.pop %v1636
        %v1638 = vmul.f32 %v1096, 1.442695
        %v1639 = vpow.pop %v1638
        %v1640 = vmul.f32 %v1098, 1.442695
        %v1641 = vpow.pop %v1640
        %v1642 = vmul.f32 %v1137, 1.442695
        %v1643 = vpow.pop %v1642
        %v1644 = vmul.f32 %v1139, 1.442695
        %v1645 = vpow.pop %v1644
        %v1646 = vmul.f32 %v1178, 1.442695
        %v1647 = vpow.pop %v1646
        %v1648 = vmul.f32 %v1180, 1.442695
        %v1649 = vpow.pop %v1648
        %v1650 = vmul.f32 %v1219, 1.442695
        %v1651 = vpow.pop %v1650
        %v1652 = vmul.f32 %v1221, 1.442695
        %v1653 = vpow.pop %v1652
        %v1654 = vmul.f32 %v1260, 1.442695
        %v1655 = vpow.pop %v1654
        %v1656 = vmul.f32 %v1262, 1.442695
        %v1657 = vpow.pop %v1656
        %v1658 = vmul.f32 %v1301, 1.442695
        %v1659 = vpow.pop %v1658
        %v1660 = vmul.f32 %v1303, 1.442695
        %v1661 = vpow.pop %v1660
        %v1662 = vmul.f32 %v1342, 1.442695
        %v1663 = vpow.pop %v1662
        %v1664 = vmul.f32 %v1344, 1.442695
        %v1665 = vpow.pop %v1664
        %v1666 = vmul.f32 %v1383, 1.442695
        %v1667 = vpow.pop %v1666
        %v1668 = vmul.f32 %v1385, 1.442695
        %v1669 = vpow.pop %v1668
        %v1670 = vmul.f32 %v1424, 1.442695
        %v1671 = vpow.pop %v1670
        %v1672 = vmul.f32 %v1426, 1.442695
        %v1673 = vpow.pop %v1672
        %v1674 = vmul.f32 %v1465, 1.442695
        %v1675 = vpow.pop %v1674
        %v1676 = vmul.f32 %v1467, 1.442695
        %v1677 = vpow.pop %v1676
        %v1678 = vmul.f32 %v1506, 1.442695
        %v1679 = vpow.pop %v1678
        %v1680 = vmul.f32 %v1508, 1.442695
        %v1681 = vpow.pop %v1680
        %v1682 = vmul.f32 %v1547, 1.442695
        %v1683 = vpow.pop %v1682
        %v1684 = vmul.f32 %v1549, 1.442695
        %v1685 = vpow.pop %v1684
        %v1686 = vmul.f32 %v1588, 1.442695
        %v1687 = vpow.pop %v1686
        %v1688 = vmul.f32 %v1590, 1.442695
        %v1689 = vpow.pop %v1688
        %v1690 = vsub.f32 %v1627, 1.0
        %v1691 = vsub.f32 %v1629, 1.0
        %v1692 = vsub.f32 %v1631, 1.0
        %v1693 = vsub.f32 %v1633, 1.0
        %v1694 = vsub.f32 %v1635, 1.0
        %v1695 = vsub.f32 %v1637, 1.0
        %v1696 = vsub.f32 %v1639, 1.0
        %v1697 = vsub.f32 %v1641, 1.0
        %v1698 = vsub.f32 %v1643, 1.0
        %v1699 = vsub.f32 %v1645, 1.0
        %v1700 = vsub.f32 %v1647, 1.0
        %v1701 = vsub.f32 %v1649, 1.0
        %v1702 = vsub.f32 %v1651, 1.0
        %v1703 = vsub.f32 %v1653, 1.0
        %v1704 = vsub.f32 %v1655, 1.0
        %v1705 = vsub.f32 %v1657, 1.0
        %v1706 = vsub.f32 %v1659, 1.0
        %v1707 = vsub.f32 %v1661, 1.0
        %v1708 = vsub.f32 %v1663, 1.0
        %v1709 = vsub.f32 %v1665, 1.0
        %v1710 = vsub.f32 %v1667, 1.0
        %v1711 = vsub.f32 %v1669, 1.0
        %v1712 = vsub.f32 %v1671, 1.0
        %v1713 = vsub.f32 %v1673, 1.0
        %v1714 = vsub.f32 %v1675, 1.0
        %v1715 = vsub.f32 %v1677, 1.0
        %v1716 = vsub.f32 %v1679, 1.0
        %v1717 = vsub.f32 %v1681, 1.0
        %v1718 = vsub.f32 %v1683, 1.0
        %v1719 = vsub.f32 %v1685, 1.0
        %v1720 = vsub.f32 %v1687, 1.0
        %v1721 = vsub.f32 %v1689, 1.0
        %v1722 = vsel %vm1594, %v973, %v1690
        %v1723 = vsel %vm1595, %v975, %v1691
        %v1724 = vsel %vm1596, %v1014, %v1692
        %v1725 = vsel %vm1597, %v1016, %v1693
        %v1726 = vsel %vm1598, %v1055, %v1694
        %v1727 = vsel %vm1599, %v1057, %v1695
        %v1728 = vsel %vm1600, %v1096, %v1696
        %v1729 = vsel %vm1601, %v1098, %v1697
        %v1730 = vsel %vm1602, %v1137, %v1698
        %v1731 = vsel %vm1603, %v1139, %v1699
        %v1732 = vsel %vm1604, %v1178, %v1700
        %v1733 = vsel %vm1605, %v1180, %v1701
        %v1734 = vsel %vm1606, %v1219, %v1702
        %v1735 = vsel %vm1607, %v1221, %v1703
        %v1736 = vsel %vm1608, %v1260, %v1704
        %v1737 = vsel %vm1609, %v1262, %v1705
        %v1738 = vsel %vm1610, %v1301, %v1706
        %v1739 = vsel %vm1611, %v1303, %v1707
        %v1740 = vsel %vm1612, %v1342, %v1708
        %v1741 = vsel %vm1613, %v1344, %v1709
        %v1742 = vsel %vm1614, %v1383, %v1710
        %v1743 = vsel %vm1615, %v1385, %v1711
        %v1744 = vsel %vm1616, %v1424, %v1712
        %v1745 = vsel %vm1617, %v1426, %v1713
        %v1746 = vsel %vm1618, %v1465, %v1714
        %v1747 = vsel %vm1619, %v1467, %v1715
        %v1748 = vsel %vm1620, %v1506, %v1716
        %v1749 = vsel %vm1621, %v1508, %v1717
        %v1750 = vsel %vm1622, %v1547, %v1718
        %v1751 = vsel %vm1623, %v1549, %v1719
        %v1752 = vsel %vm1624, %v1588, %v1720
        %v1753 = vsel %vm1625, %v1590, %v1721
        %v1754 = vpack.c.bf16 %v1722, %v1722
        %v1755 = vpack.c.bf16 %v1723, %v1723
        %v1756 = vpack.c.bf16 %v1724, %v1724
        %v1757 = vpack.c.bf16 %v1725, %v1725
        %v1758 = vpack.c.bf16 %v1726, %v1726
        %v1759 = vpack.c.bf16 %v1727, %v1727
        %v1760 = vpack.c.bf16 %v1728, %v1728
        %v1761 = vpack.c.bf16 %v1729, %v1729
        %v1762 = vpack.c.bf16 %v1730, %v1730
        %v1763 = vpack.c.bf16 %v1731, %v1731
        %v1764 = vpack.c.bf16 %v1732, %v1732
        %v1765 = vpack.c.bf16 %v1733, %v1733
        %v1766 = vpack.c.bf16 %v1734, %v1734
        %v1767 = vpack.c.bf16 %v1735, %v1735
        %v1768 = vpack.c.bf16 %v1736, %v1736
        %v1769 = vpack.c.bf16 %v1737, %v1737
        %v1770 = vpack.c.bf16 %v1738, %v1738
        %v1771 = vpack.c.bf16 %v1739, %v1739
        %v1772 = vpack.c.bf16 %v1740, %v1740
        %v1773 = vpack.c.bf16 %v1741, %v1741
        %v1774 = vpack.c.bf16 %v1742, %v1742
        %v1775 = vpack.c.bf16 %v1743, %v1743
        %v1776 = vpack.c.bf16 %v1744, %v1744
        %v1777 = vpack.c.bf16 %v1745, %v1745
        %v1778 = vpack.c.bf16 %v1746, %v1746
        %v1779 = vpack.c.bf16 %v1747, %v1747
        %v1780 = vpack.c.bf16 %v1748, %v1748
        %v1781 = vpack.c.bf16 %v1749, %v1749
        %v1782 = vpack.c.bf16 %v1750, %v1750
        %v1783 = vpack.c.bf16 %v1751, %v1751
        %v1784 = vpack.c.bf16 %v1752, %v1752
        %v1785 = vpack.c.bf16 %v1753, %v1753
        %v1818 = vcombine.low %v1754, %v1755
        %v1819 = vcombine.low %v1756, %v1757
        %v1821 = vunpack.c.l.s4 1983009808
        %v1822 = vunpack.c.0.s8 %v1821
        %v1823 = vlaneseq
        %v1824 = vshrl.u32 %v1823, 7
        %v1825 = vsub.s32 %v1822, %v1824
        %v1826 = vrot.slane %v1818, %v1825
        %v1828 = vunpack.c.l.s4 1983009808
        %v1829 = vunpack.c.0.s8 %v1828
        %v1830 = vlaneseq
        %v1831 = vshrl.u32 %v1830, 7
        %v1832 = vsub.s32 %v1829, %v1831
        %v1833 = vrot.slane %v1819, %v1832
        %v1834 = vcombine.low %v1826, %v1833
        %v1835 = vcombine.low %v1758, %v1759
        %v1836 = vcombine.low %v1760, %v1761
        %v1838 = vunpack.c.l.s4 1983009808
        %v1839 = vunpack.c.0.s8 %v1838
        %v1840 = vlaneseq
        %v1841 = vshrl.u32 %v1840, 7
        %v1842 = vsub.s32 %v1839, %v1841
        %v1843 = vrot.slane %v1835, %v1842
        %v1845 = vunpack.c.l.s4 1983009808
        %v1846 = vunpack.c.0.s8 %v1845
        %v1847 = vlaneseq
        %v1848 = vshrl.u32 %v1847, 7
        %v1849 = vsub.s32 %v1846, %v1848
        %v1850 = vrot.slane %v1836, %v1849
        %v1851 = vcombine.low %v1843, %v1850
        %v1852 = vcombine.low %v1762, %v1763
        %v1853 = vcombine.low %v1764, %v1765
        %v1855 = vunpack.c.l.s4 1983009808
        %v1856 = vunpack.c.0.s8 %v1855
        %v1857 = vlaneseq
        %v1858 = vshrl.u32 %v1857, 7
        %v1859 = vsub.s32 %v1856, %v1858
        %v1860 = vrot.slane %v1852, %v1859
        %v1862 = vunpack.c.l.s4 1983009808
        %v1863 = vunpack.c.0.s8 %v1862
        %v1864 = vlaneseq
        %v1865 = vshrl.u32 %v1864, 7
        %v1866 = vsub.s32 %v1863, %v1865
        %v1867 = vrot.slane %v1853, %v1866
        %v1868 = vcombine.low %v1860, %v1867
        %v1869 = vcombine.low %v1766, %v1767
        %v1870 = vcombine.low %v1768, %v1769
        %v1872 = vunpack.c.l.s4 1983009808
        %v1873 = vunpack.c.0.s8 %v1872
        %v1874 = vlaneseq
        %v1875 = vshrl.u32 %v1874, 7
        %v1876 = vsub.s32 %v1873, %v1875
        %v1877 = vrot.slane %v1869, %v1876
        %v1879 = vunpack.c.l.s4 1983009808
        %v1880 = vunpack.c.0.s8 %v1879
        %v1881 = vlaneseq
        %v1882 = vshrl.u32 %v1881, 7
        %v1883 = vsub.s32 %v1880, %v1882
        %v1884 = vrot.slane %v1870, %v1883
        %v1885 = vcombine.low %v1877, %v1884
        %v1886 = vcombine.low %v1770, %v1771
        %v1887 = vcombine.low %v1772, %v1773
        %v1889 = vunpack.c.l.s4 1983009808
        %v1890 = vunpack.c.0.s8 %v1889
        %v1891 = vlaneseq
        %v1892 = vshrl.u32 %v1891, 7
        %v1893 = vsub.s32 %v1890, %v1892
        %v1894 = vrot.slane %v1886, %v1893
        %v1896 = vunpack.c.l.s4 1983009808
        %v1897 = vunpack.c.0.s8 %v1896
        %v1898 = vlaneseq
        %v1899 = vshrl.u32 %v1898, 7
        %v1900 = vsub.s32 %v1897, %v1899
        %v1901 = vrot.slane %v1887, %v1900
        %v1902 = vcombine.low %v1894, %v1901
        %v1903 = vcombine.low %v1774, %v1775
        %v1904 = vcombine.low %v1776, %v1777
        %v1906 = vunpack.c.l.s4 1983009808
        %v1907 = vunpack.c.0.s8 %v1906
        %v1908 = vlaneseq
        %v1909 = vshrl.u32 %v1908, 7
        %v1910 = vsub.s32 %v1907, %v1909
        %v1911 = vrot.slane %v1903, %v1910
        %v1913 = vunpack.c.l.s4 1983009808
        %v1914 = vunpack.c.0.s8 %v1913
        %v1915 = vlaneseq
        %v1916 = vshrl.u32 %v1915, 7
        %v1917 = vsub.s32 %v1914, %v1916
        %v1918 = vrot.slane %v1904, %v1917
        %v1919 = vcombine.low %v1911, %v1918
        %v1920 = vcombine.low %v1778, %v1779
        %v1921 = vcombine.low %v1780, %v1781
        %v1923 = vunpack.c.l.s4 1983009808
        %v1924 = vunpack.c.0.s8 %v1923
        %v1925 = vlaneseq
        %v1926 = vshrl.u32 %v1925, 7
        %v1927 = vsub.s32 %v1924, %v1926
        %v1928 = vrot.slane %v1920, %v1927
        %v1930 = vunpack.c.l.s4 1983009808
        %v1931 = vunpack.c.0.s8 %v1930
        %v1932 = vlaneseq
        %v1933 = vshrl.u32 %v1932, 7
        %v1934 = vsub.s32 %v1931, %v1933
        %v1935 = vrot.slane %v1921, %v1934
        %v1936 = vcombine.low %v1928, %v1935
        %v1937 = vcombine.low %v1782, %v1783
        %v1938 = vcombine.low %v1784, %v1785
        %v1940 = vunpack.c.l.s4 1983009808
        %v1941 = vunpack.c.0.s8 %v1940
        %v1942 = vlaneseq
        %v1943 = vshrl.u32 %v1942, 7
        %v1944 = vsub.s32 %v1941, %v1943
        %v1945 = vrot.slane %v1937, %v1944
        %v1947 = vunpack.c.l.s4 1983009808
        %v1948 = vunpack.c.0.s8 %v1947
        %v1949 = vlaneseq
        %v1950 = vshrl.u32 %v1949, 7
        %v1951 = vsub.s32 %v1948, %v1950
        %v1952 = vrot.slane %v1938, %v1951
        %v1953 = vcombine.low %v1945, %v1952
        %1962 = vst [vmem:[%s354] sm:$0xff] %v1834
        %1963 = vst [vmem:[%s354 + $0x8] sm:$0xff] %v1851
        %1964 = vst [vmem:[%s354 + $0x10] sm:$0xff] %v1868
        %1965 = vst [vmem:[%s354 + $0x18] sm:$0xff] %v1885
        %1966 = vst [vmem:[%s354 + $0x20] sm:$0xff] %v1902
        %1967 = vst [vmem:[%s354 + $0x28] sm:$0xff] %v1919
        %1968 = vst [vmem:[%s354 + $0x30] sm:$0xff] %v1936
        %1969 = vst [vmem:[%s354 + $0x38] sm:$0xff] %v1953
        %s1970 = smul.u32 32, %s13
        %p1971 = scmp.lt.s32.totalorder %s1970, 63
        %s1972 = scalar_select %p1971, %s1970, 63
        %s1973 = smul.addr %s1972, 2
        %s1974 = scalar_lea.vmem %s2, %s1973
        // Predicated region
        $region52: #{model_forward.6} parent=46 // pred_check
          %p1975 = pneg %p78
        $region53: #{model_forward.6} parent=46 // pred_check_branch
          %1977 = sbr.rel (%p1975) target = $region55
        $region54: #{model_forward.6} parent=46 // pred_region
          %s1978 = smul.u32 32, %s13
        $region55: #{model_forward.6} parent=46 // pred_fallthru
          _
      $region47: #{model_forward.6} parent=5 // pred_fallthru
        _
      %p1979 = scmp.le.s32.totalorder 2, %s8
      // Predicated region
      $region56: #{model_forward.6} parent=5 // pred_check
        %p1980 = pneg %p1979
      $region57: #{model_forward.6} parent=5 // pred_check_branch
        %1982 = sbr.rel (%p1980) target = $region59
      $region58: #{model_forward.6} parent=5 // pred_region
        %s1983 = ssub.s32 %s8, 2
        // Predicated region
        $region60: #{model_forward.6} parent=58 // pred_check
          %p1984 = pneg %p84
        $region61: #{model_forward.6} parent=58 // pred_check_branch
          %1986 = sbr.rel (%p1984) target = $region63
        $region62: #{model_forward.6} parent=58 // pred_region
          %s1987 = smul.u32 32, %s14
          %p1988 = scmp.lt.s32.totalorder %s1987, 63
          %s1989 = scalar_select %p1988, %s1987, 63
          %s1990 = smul.addr %s1989, 2
          %s1991 = scalar_lea.vmem %s2, %s1990
        $region63: #{model_forward.6} parent=58 // pred_fallthru
          _
      $region59: #{model_forward.6} parent=5 // pred_fallthru
        _
    $region6: #{model_forward.6} parent=1 // loop_footer
      %s12 = sadd.s32 1, %s8
    $region7: #{model_forward.6} parent=1 // loop_footer_branch
      %7 = sbr.rel target = $region3
    $region8: #{model_forward.6} parent=1 // loop_exit
      _

// kernel: model_forward.7
$region0: #{model_forward.7}
  #allocation0 [shape = 'u32[]', space=smem, size = 0x4, offset = 0x4, fixed_abs, tag = 'smem constant byte address 0x4 - core index']
  #allocation1 [shape = 'u32[144,128]{1,0:T(1,128)}', space=vmem, size = 0x12000, scoped, tag = 'internal scratch']
  %s0 = inlined_call_operand.vmem [shape: bf16[8,64], index: 0, kind: input, shape index: {}]
  %s1 = inlined_call_operand.vmem [shape: bf16[64,2048], index: 1, kind: input, shape index: {}]
  %s2 = inlined_call_operand.vmem [shape: bf16[8,2048], index: 2, kind: output, shape index: {}]
  %s3 = sld [smem:[#allocation0]]
  $region64: #{model_forward.7} parent=0
    _
  %s5 = ssub.s32 1, %s3
  %s6 = scalar_select 0, %s5, %s3
  $region1: #{model_forward.7} parent=0
    #allocation2 [shape = 'u8[262144]{0}', space=vmem, size = 0x40000, scoped, tag = 'input window, operand 1']
    loop: start=0, step=1, limit=4
    $region2: #{model_forward.7} parent=1 // loop_pre_header
      _
    $region3: #{model_forward.7} parent=1 // loop_header
      %s8 = sphi 0, %s12
      %p9 = scmp.ge.s32.totalorder %s8, 4
      %s16 = sphi 0, %s16
      %s18 = sphi 0, %s16
      %s19 = sphi 0, %s18
      %s33 = sphi 0, %s19
      %s39 = sphi 0, %s41
      %s42 = sphi 0, %s39
      %s43 = sphi 0, %s42
      %s59 = sphi 0, %s43
      %s65 = sphi 0, %s67
      %s68 = sphi 0, %s65
      %s69 = sphi 0, %s68
      %s85 = sphi 0, %s69
    $region4: #{model_forward.7} parent=1 // loop_header_branch
      %11 = sbr.rel (%p9) target = $region8
    $region5: #{model_forward.7} parent=1 // loop_body
      %s13 = ssub.s32 %s8, 1
      %s14 = ssub.s32 %s8, 2
      %s15 = sadd.s32 %s8, 1
      %s17 = sadd.s32 %s16, 1
      %p20 = scmp.eq.s32.totalorder %s8, 1
      %p21 = scmp.ne.s32.totalorder %s16, %s18
      %p22 = scmp.eq.s32.totalorder %s8, 0
      %p23 = por %p21, %p22
      %p24 = scmp.ne.s32.totalorder %s16, %s18
      %p25 = scmp.eq.s32.totalorder %s13, 1
      %p26 = por %p24, %p25
      %p27 = scmp.ne.s32.totalorder %s18, %s19
      %p28 = scmp.eq.s32.totalorder %s13, 0
      %p29 = por %p27, %p28
      %p30 = scmp.ne.s32.totalorder %s18, %s19
      %p31 = scmp.eq.s32.totalorder %s14, 1
      %p32 = por %p30, %p31
      %p34 = scmp.ne.s32.totalorder %s19, %s33
      %p35 = scmp.eq.s32.totalorder %s14, 0
      %p36 = por %p34, %p35
      %s37 = ssub.s32 %s8, %s15
      %p38 = scmp.eq.s32.totalorder %s37, 0
      %s40 = sadd.s32 %s39, 1
      %s41 = scalar_select %p38, %s39, %s40
      %p44 = pneg %p38
      %p45 = scmp.eq.s32.totalorder %s8, 1
      %p46 = por %p44, %p45
      %p47 = scmp.ne.s32.totalorder %s39, %s42
      %p48 = scmp.eq.s32.totalorder %s8, 0
      %p49 = por %p47, %p48
      %p50 = scmp.ne.s32.totalorder %s39, %s42
      %p51 = scmp.eq.s32.totalorder %s13, 1
      %p52 = por %p50, %p51
      %p53 = scmp.ne.s32.totalorder %s42, %s43
      %p54 = scmp.eq.s32.totalorder %s13, 0
      %p55 = por %p53, %p54
      %p56 = scmp.ne.s32.totalorder %s42, %s43
      %p57 = scmp.eq.s32.totalorder %s14, 1
      %p58 = por %p56, %p57
      %p60 = scmp.ne.s32.totalorder %s43, %s59
      %p61 = scmp.eq.s32.totalorder %s14, 0
      %p62 = por %p60, %p61
      %s63 = ssub.s32 %s8, %s15
      %p64 = scmp.eq.s32.totalorder %s63, 0
      %s66 = sadd.s32 %s65, 1
      %s67 = scalar_select %p64, %s65, %s66
      %p70 = pneg %p64
      %p71 = scmp.eq.s32.totalorder %s8, 1
      %p72 = por %p70, %p71
      %p73 = scmp.ne.s32.totalorder %s65, %s68
      %p74 = scmp.eq.s32.totalorder %s8, 0
      %p75 = por %p73, %p74
      %p76 = scmp.ne.s32.totalorder %s65, %s68
      %p77 = scmp.eq.s32.totalorder %s13, 1
      %p78 = por %p76, %p77
      %p79 = scmp.ne.s32.totalorder %s68, %s69
      %p80 = scmp.eq.s32.totalorder %s13, 0
      %p81 = por %p79, %p80
      %p82 = scmp.ne.s32.totalorder %s68, %s69
      %p83 = scmp.eq.s32.totalorder %s14, 1
      %p84 = por %p82, %p83
      %p86 = scmp.ne.s32.totalorder %s69, %s85
      %p87 = scmp.eq.s32.totalorder %s14, 0
      %p88 = por %p86, %p87
      %p89 = scmp.le.s32.totalorder 1, %s8
      %p90 = scmp.lt.s32.totalorder %s8, 3
      %p91 = pnand %p89, %p90
      %p92 = pneg %p91
      // Predicated region
      $region9: #{model_forward.7} parent=5 // pred_check
        _
      $region10: #{model_forward.7} parent=5 // pred_check_branch
        %94 = sbr.rel (%p91) target = $region12
      $region11: #{model_forward.7} parent=5 // pred_region
        %s95 = ssub.s32 %s8, 1
        // Predicated region
        $region13: #{model_forward.7} parent=11 // pred_check
          %p96 = pneg %p29
        $region14: #{model_forward.7} parent=11 // pred_check_branch
          %98 = sbr.rel (%p96) target = $region16
        $region15: #{model_forward.7} parent=11 // pred_region
          _
        $region16: #{model_forward.7} parent=11 // pred_fallthru
          _
      $region12: #{model_forward.7} parent=5 // pred_fallthru
        _
      %p99 = scmp.lt.s32.totalorder %s8, 2
      // Predicated region
      $region17: #{model_forward.7} parent=5 // pred_check
        %p100 = pneg %p99
      $region18: #{model_forward.7} parent=5 // pred_check_branch
        %102 = sbr.rel (%p100) target = $region20
      $region19: #{model_forward.7} parent=5 // pred_region
        // Predicated region
        $region21: #{model_forward.7} parent=19 // pred_check
          %p103 = pneg %p49
        $region22: #{model_forward.7} parent=19 // pred_check_branch
          %105 = sbr.rel (%p103) target = $region24
        $region23: #{model_forward.7} parent=19 // pred_region
          %s106 = sand.u32 %s39, 1
          %s107 = sand.u32 %s39, 1
          %s108 = smul.addr %s107, 256
          %s109 = scalar_lea.vmem [#allocation2], %s108
          %s110 = smul.u32 8, %s8
          %s111 = smul.addr %s110, 4
          %s112 = scalar_lea.vmem %s1, %s111
          // Predicated region
          $region25: #{model_forward.7} parent=23 // pred_check
            _
          $region26: #{model_forward.7} parent=23 // pred_check_branch
            %114 = sbr.rel (0) target = $region28
          $region27: #{model_forward.7} parent=23 // pred_region
            // Predicated region
            $region29: #{model_forward.7} parent=27 // pred_check
              _
            $region30: #{model_forward.7} parent=27 // pred_check_branch
              %116 = sbr.rel (0) target = $region32
            $region31: #{model_forward.7} parent=27 // pred_region
              loop: start=0, step=1, limit=1
              $region33: #{model_forward.7} parent=31 // loop_pre_header
                _
              $region34: #{model_forward.7} parent=31 // loop_header
                %s118 = sphi 0, %s122
                %p119 = scmp.ge.s32.totalorder %s118, 1
                %s123 = sphi %s112, %s112
                %s124 = sphi %s109, %s109
              $region35: #{model_forward.7} parent=31 // loop_header_branch
                %121 = sbr.rel (%p119) target = $region39
              $region36: #{model_forward.7} parent=31 // loop_body
                %v125 = vld [vmem:[%s123] sm:$0xff]
                %126 = vst [vmem:[%s124] sm:$0xff] %v125
                %v127 = vld [vmem:[%s123 + $0x8] sm:$0xff]
                %128 = vst [vmem:[%s124 + $0x8] sm:$0xff] %v127
                %v129 = vld [vmem:[%s123 + $0x10] sm:$0xff]
                %130 = vst [vmem:[%s124 + $0x10] sm:$0xff] %v129
                %v131 = vld [vmem:[%s123 + $0x18] sm:$0xff]
                %132 = vst [vmem:[%s124 + $0x18] sm:$0xff] %v131
                %v133 = vld [vmem:[%s123 + $0x40] sm:$0xff]
                %134 = vst [vmem:[%s124 + $0x20] sm:$0xff] %v133
                %v135 = vld [vmem:[%s123 + $0x48] sm:$0xff]
                %136 = vst [vmem:[%s124 + $0x28] sm:$0xff] %v135
                %v137 = vld [vmem:[%s123 + $0x50] sm:$0xff]
                %138 = vst [vmem:[%s124 + $0x30] sm:$0xff] %v137
                %v139 = vld [vmem:[%s123 + $0x58] sm:$0xff]
                %140 = vst [vmem:[%s124 + $0x38] sm:$0xff] %v139
                %v141 = vld [vmem:[%s123 + $0x80] sm:$0xff]
                %142 = vst [vmem:[%s124 + $0x40] sm:$0xff] %v141
                %v143 = vld [vmem:[%s123 + $0x88] sm:$0xff]
                %144 = vst [vmem:[%s124 + $0x48] sm:$0xff] %v143
                %v145 = vld [vmem:[%s123 + $0x90] sm:$0xff]
                %146 = vst [vmem:[%s124 + $0x50] sm:$0xff] %v145
                %v147 = vld [vmem:[%s123 + $0x98] sm:$0xff]
                %148 = vst [vmem:[%s124 + $0x58] sm:$0xff] %v147
                %v149 = vld [vmem:[%s123 + $0xc0] sm:$0xff]
                %150 = vst [vmem:[%s124 + $0x60] sm:$0xff] %v149
                %v151 = vld [vmem:[%s123 + $0xc8] sm:$0xff]
                %152 = vst [vmem:[%s124 + $0x68] sm:$0xff] %v151
                %v153 = vld [vmem:[%s123 + $0xd0] sm:$0xff]
                %154 = vst [vmem:[%s124 + $0x70] sm:$0xff] %v153
                %v155 = vld [vmem:[%s123 + $0xd8] sm:$0xff]
                %156 = vst [vmem:[%s124 + $0x78] sm:$0xff] %v155
                %v157 = vld [vmem:[%s123 + $0x100] sm:$0xff]
                %158 = vst [vmem:[%s124 + $0x80] sm:$0xff] %v157
                %v159 = vld [vmem:[%s123 + $0x108] sm:$0xff]
                %160 = vst [vmem:[%s124 + $0x88] sm:$0xff] %v159
                %v161 = vld [vmem:[%s123 + $0x110] sm:$0xff]
                %162 = vst [vmem:[%s124 + $0x90] sm:$0xff] %v161
                %v163 = vld [vmem:[%s123 + $0x118] sm:$0xff]
                %164 = vst [vmem:[%s124 + $0x98] sm:$0xff] %v163
                %v165 = vld [vmem:[%s123 + $0x140] sm:$0xff]
                %166 = vst [vmem:[%s124 + $0xa0] sm:$0xff] %v165
                %v167 = vld [vmem:[%s123 + $0x148] sm:$0xff]
                %168 = vst [vmem:[%s124 + $0xa8] sm:$0xff] %v167
                %v169 = vld [vmem:[%s123 + $0x150] sm:$0xff]
                %170 = vst [vmem:[%s124 + $0xb0] sm:$0xff] %v169
                %v171 = vld [vmem:[%s123 + $0x158] sm:$0xff]
                %172 = vst [vmem:[%s124 + $0xb8] sm:$0xff] %v171
                %v173 = vld [vmem:[%s123 + $0x180] sm:$0xff]
                %174 = vst [vmem:[%s124 + $0xc0] sm:$0xff] %v173
                %v175 = vld [vmem:[%s123 + $0x188] sm:$0xff]
                %176 = vst [vmem:[%s124 + $0xc8] sm:$0xff] %v175
                %v177 = vld [vmem:[%s123 + $0x190] sm:$0xff]
                %178 = vst [vmem:[%s124 + $0xd0] sm:$0xff] %v177
                %v179 = vld [vmem:[%s123 + $0x198] sm:$0xff]
                %180 = vst [vmem:[%s124 + $0xd8] sm:$0xff] %v179
                %v181 = vld [vmem:[%s123 + $0x1c0] sm:$0xff]
                %182 = vst [vmem:[%s124 + $0xe0] sm:$0xff] %v181
                %v183 = vld [vmem:[%s123 + $0x1c8] sm:$0xff]
                %184 = vst [vmem:[%s124 + $0xe8] sm:$0xff] %v183
                %v185 = vld [vmem:[%s123 + $0x1d0] sm:$0xff]
                %186 = vst [vmem:[%s124 + $0xf0] sm:$0xff] %v185
                %v187 = vld [vmem:[%s123 + $0x1d8] sm:$0xff]
                %188 = vst [vmem:[%s124 + $0xf8] sm:$0xff] %v187
              $region37: #{model_forward.7} parent=31 // loop_footer
                %s122 = sadd.s32 1, %s118
              $region38: #{model_forward.7} parent=31 // loop_footer_branch
                %117 = sbr.rel target = $region34
              $region39: #{model_forward.7} parent=31 // loop_exit
                _
            $region32: #{model_forward.7} parent=27 // pred_fallthru
              _
            // Predicated region
            $region40: #{model_forward.7} parent=27 // pred_check
              _
            $region41: #{model_forward.7} parent=27 // pred_check_branch
              %190 = sbr.rel target = $region43
            $region42: #{model_forward.7} parent=27 // pred_region
              _
            $region43: #{model_forward.7} parent=27 // pred_fallthru
              _
          $region28: #{model_forward.7} parent=23 // pred_fallthru
            _
          %191 = vnop
        $region24: #{model_forward.7} parent=19 // pred_fallthru
          _
      $region20: #{model_forward.7} parent=5 // pred_fallthru
        _
      %p192 = scmp.le.s32.totalorder 1, %s8
      %p193 = scmp.lt.s32.totalorder %s8, 3
      %p194 = pnand %p192, %p193
      %p195 = pneg %p194
      // Predicated region
      $region44: #{model_forward.7} parent=5 // pred_check
        _
      $region45: #{model_forward.7} parent=5 // pred_check_branch
        %197 = sbr.rel (%p194) target = $region47
      $region46: #{model_forward.7} parent=5 // pred_region
        %s198 = ssub.s32 %s8, 1
        %s199 = sand.u32 %s42, 1
        %s200 = sand.u32 %s42, 1
        %s201 = smul.addr %s200, 256
        %s202 = scalar_lea.vmem [#allocation2], %s201
        // Predicated region
        $region48: #{model_forward.7} parent=46 // pred_check
          %p203 = pneg %p55
        $region49: #{model_forward.7} parent=46 // pred_check_branch
          %205 = sbr.rel (%p203) target = $region51
        $region50: #{model_forward.7} parent=46 // pred_region
          _
        $region51: #{model_forward.7} parent=46 // pred_fallthru
          _
        %p206 = pneg %p29
        %p207 = pneg %p26
        %s208 = sand.u32 %s42, 1
        %s209 = sand.u32 %s42, 1
        %s210 = smul.addr %s209, 256
        %s211 = scalar_lea.vmem [#allocation2], %s210
        %p212 = pneg %p55
        %p213 = pneg %p52
        %p214 = pneg %p81
        %p215 = pneg %p78
        %s216 = smul.u32 8, %s13
        %p217 = scmp.lt.s32.totalorder %s216, 15
        %s218 = scalar_select %p217, %s216, 15
        %s219 = smul.addr %s218, 4
        %s220 = scalar_lea.vmem %s2, %s219
        %s221 = smul.u32 8, %s13
        %s222 = smul.u32 8, %s13
        %p223 = scmp.lt.s32.totalorder %s222, 15
        %s224 = scalar_select %p223, %s222, 15
        %s225 = smul.addr %s224, 4
        %s226 = scalar_lea.vmem %s2, %s225
        %s227 = smul.u32 8, %s13
        %v229 = vld [vmem:[%s0] sm:$0xf]
        %v230 = vld [vmem:[%s202] sm:$0xff]
        %v231 = vld [vmem:[%s202 + $0x8] sm:$0xff]
        %v232 = vld [vmem:[%s202 + $0x10] sm:$0xff]
        %v233 = vld [vmem:[%s202 + $0x18] sm:$0xff]
        %v234 = vld [vmem:[%s202 + $0x20] sm:$0xff]
        %v235 = vld [vmem:[%s202 + $0x28] sm:$0xff]
        %v236 = vld [vmem:[%s202 + $0x30] sm:$0xff]
        %v237 = vld [vmem:[%s202 + $0x38] sm:$0xff]
        %v238 = vld [vmem:[%s202 + $0x40] sm:$0xff]
        %v239 = vld [vmem:[%s202 + $0x48] sm:$0xff]
        %v240 = vld [vmem:[%s202 + $0x50] sm:$0xff]
        %v241 = vld [vmem:[%s202 + $0x58] sm:$0xff]
        %v242 = vld [vmem:[%s202 + $0x60] sm:$0xff]
        %v243 = vld [vmem:[%s202 + $0x68] sm:$0xff]
        %v244 = vld [vmem:[%s202 + $0x70] sm:$0xff]
        %v245 = vld [vmem:[%s202 + $0x78] sm:$0xff]
        %v246 = vld [vmem:[%s202 + $0x80] sm:$0xff]
        %v247 = vld [vmem:[%s202 + $0x88] sm:$0xff]
        %v248 = vld [vmem:[%s202 + $0x90] sm:$0xff]
        %v249 = vld [vmem:[%s202 + $0x98] sm:$0xff]
        %v250 = vld [vmem:[%s202 + $0xa0] sm:$0xff]
        %v251 = vld [vmem:[%s202 + $0xa8] sm:$0xff]
        %v252 = vld [vmem:[%s202 + $0xb0] sm:$0xff]
        %v253 = vld [vmem:[%s202 + $0xb8] sm:$0xff]
        %v254 = vld [vmem:[%s202 + $0xc0] sm:$0xff]
        %v255 = vld [vmem:[%s202 + $0xc8] sm:$0xff]
        %v256 = vld [vmem:[%s202 + $0xd0] sm:$0xff]
        %v257 = vld [vmem:[%s202 + $0xd8] sm:$0xff]
        %v258 = vld [vmem:[%s202 + $0xe0] sm:$0xff]
        %v259 = vld [vmem:[%s202 + $0xe8] sm:$0xff]
        %v260 = vld [vmem:[%s202 + $0xf0] sm:$0xff]
        %v261 = vld [vmem:[%s202 + $0xf8] sm:$0xff]
        %v294 = vunpack.c.l.b16 %v230
        %v295 = vunpack.c.h.b16 %v230
        %v296 = vunpack.c.l.b16 %v231
        %v297 = vunpack.c.h.b16 %v231
        %v298 = vunpack.c.l.b16 %v232
        %v299 = vunpack.c.h.b16 %v232
        %v300 = vunpack.c.l.b16 %v233
        %v301 = vunpack.c.h.b16 %v233
        %v302 = vunpack.c.l.b16 %v234
        %v303 = vunpack.c.h.b16 %v234
        %v304 = vunpack.c.l.b16 %v235
        %v305 = vunpack.c.h.b16 %v235
        %v306 = vunpack.c.l.b16 %v236
        %v307 = vunpack.c.h.b16 %v236
        %v308 = vunpack.c.l.b16 %v237
        %v309 = vunpack.c.h.b16 %v237
        %v310 = vunpack.c.l.b16 %v238
        %v311 = vunpack.c.h.b16 %v238
        %v312 = vunpack.c.l.b16 %v239
        %v313 = vunpack.c.h.b16 %v239
        %v314 = vunpack.c.l.b16 %v240
        %v315 = vunpack.c.h.b16 %v240
        %v316 = vunpack.c.l.b16 %v241
        %v317 = vunpack.c.h.b16 %v241
        %v318 = vunpack.c.l.b16 %v242
        %v319 = vunpack.c.h.b16 %v242
        %v320 = vunpack.c.l.b16 %v243
        %v321 = vunpack.c.h.b16 %v243
        %v322 = vunpack.c.l.b16 %v244
        %v323 = vunpack.c.h.b16 %v244
        %v324 = vunpack.c.l.b16 %v245
        %v325 = vunpack.c.h.b16 %v245
        %v326 = vunpack.c.l.b16 %v246
        %v327 = vunpack.c.h.b16 %v246
        %v328 = vunpack.c.l.b16 %v247
        %v329 = vunpack.c.h.b16 %v247
        %v330 = vunpack.c.l.b16 %v248
        %v331 = vunpack.c.h.b16 %v248
        %v332 = vunpack.c.l.b16 %v249
        %v333 = vunpack.c.h.b16 %v249
        %v334 = vunpack.c.l.b16 %v250
        %v335 = vunpack.c.h.b16 %v250
        %v336 = vunpack.c.l.b16 %v251
        %v337 = vunpack.c.h.b16 %v251
        %v338 = vunpack.c.l.b16 %v252
        %v339 = vunpack.c.h.b16 %v252
        %v340 = vunpack.c.l.b16 %v253
        %v341 = vunpack.c.h.b16 %v253
        %v342 = vunpack.c.l.b16 %v254
        %v343 = vunpack.c.h.b16 %v254
        %v344 = vunpack.c.l.b16 %v255
        %v345 = vunpack.c.h.b16 %v255
        %v346 = vunpack.c.l.b16 %v256
        %v347 = vunpack.c.h.b16 %v256
        %v348 = vunpack.c.l.b16 %v257
        %v349 = vunpack.c.h.b16 %v257
        %v350 = vunpack.c.l.b16 %v258
        %v351 = vunpack.c.h.b16 %v258
        %v352 = vunpack.c.l.b16 %v259
        %v353 = vunpack.c.h.b16 %v259
        %v354 = vunpack.c.l.b16 %v260
        %v355 = vunpack.c.h.b16 %v260
        %v356 = vunpack.c.l.b16 %v261
        %v357 = vunpack.c.h.b16 %v261
        %v358 = vpack.c.b16 %v302, %v294
        %v359 = vpack.c.b16 %v303, %v295
        %v360 = vpack.c.b16 %v304, %v296
        %v361 = vpack.c.b16 %v305, %v297
        %v362 = vpack.c.b16 %v306, %v298
        %v363 = vpack.c.b16 %v307, %v299
        %v364 = vpack.c.b16 %v308, %v300
        %v365 = vpack.c.b16 %v309, %v301
        %v366 = vpack.c.b16 %v318, %v310
        %v367 = vpack.c.b16 %v319, %v311
        %v368 = vpack.c.b16 %v320, %v312
        %v369 = vpack.c.b16 %v321, %v313
        %v370 = vpack.c.b16 %v322, %v314
        %v371 = vpack.c.b16 %v323, %v315
        %v372 = vpack.c.b16 %v324, %v316
        %v373 = vpack.c.b16 %v325, %v317
        %v374 = vpack.c.b16 %v334, %v326
        %v375 = vpack.c.b16 %v335, %v327
        %v376 = vpack.c.b16 %v336, %v328
        %v377 = vpack.c.b16 %v337, %v329
        %v378 = vpack.c.b16 %v338, %v330
        %v379 = vpack.c.b16 %v339, %v331
        %v380 = vpack.c.b16 %v340, %v332
        %v381 = vpack.c.b16 %v341, %v333
        %v382 = vpack.c.b16 %v350, %v342
        %v383 = vpack.c.b16 %v351, %v343
        %v384 = vpack.c.b16 %v352, %v344
        %v385 = vpack.c.b16 %v353, %v345
        %v386 = vpack.c.b16 %v354, %v346
        %v387 = vpack.c.b16 %v355, %v347
        %v388 = vpack.c.b16 %v356, %v348
        %v389 = vpack.c.b16 %v357, %v349
        %vm422 = vcmask 523264
        %v424 = vsel %vm422, %v229, 0
        %426 = vmatprep.subr.bf16.mxu0 %v359
        %427 = vmatpush1.bf16.msra.mxu0 %v358
        %428 = vmatprep.subr.bf16.mxu0 %v367
        %429 = vmatpush1.bf16.msra.mxu0 %v366
        %430 = vmatprep.subr.bf16.mxu0 %v375
        %431 = vmatpush1.bf16.msra.mxu0 %v374
        %432 = vmatprep.subr.bf16.mxu0 %v383
        %433 = vmatpush1.bf16.msra.mxu0 %v382
        %434 = vmatprep.subr.bf16.mxu0 0
        %435 = vmatpush1.bf16.msra.mxu0 0
        %436 = vmatprep.subr.bf16.mxu0 0
        %437 = vmatpush1.bf16.msra.mxu0 0
        %438 = vmatprep.subr.bf16.mxu0 0
        %439 = vmatpush1.bf16.msra.mxu0 0
        %440 = vmatprep.subr.bf16.mxu0 0
        %441 = vmatpush1.bf16.msra.mxu0 0
        %442 = vmatprep.subr.bf16.mxu0 0
        %443 = vmatpush1.bf16.msra.mxu0 0
        %444 = vmatprep.subr.bf16.mxu0 0
        %445 = vmatpush1.bf16.msra.mxu0 0
        %446 = vmatprep.subr.bf16.mxu0 0
        %447 = vmatpush1.bf16.msra.mxu0 0
        %448 = vmatprep.subr.bf16.mxu0 0
        %449 = vmatpush1.bf16.msra.mxu0 0
        %450 = vmatprep.subr.bf16.mxu0 0
        %451 = vmatpush1.bf16.msra.mxu0 0
        %452 = vmatprep.subr.bf16.mxu0 0
        %453 = vmatpush1.bf16.msra.mxu0 0
        %454 = vmatprep.subr.bf16.mxu0 0
        %455 = vmatpush1.bf16.msra.mxu0 0
        %456 = vmatprep.subr.bf16.mxu0 0
        %457 = vmatpush1.bf16.msra.mxu0 0
        %458 = vmatprep.mubr.bf16.mxu0 0
        %459 = vmatmul.mubr.bf16.gmra.mrb[0].mxu0 %v424
        %v460 = vpop.f32.mrb[0].mxu0
        %v461 = vadd.f32 0.0, %v460
        %v462 = vpop.f32.mrb[0].mxu0
        %v463 = vadd.f32 0.0, %v462
        %v464 = vpop.f32.mrb[0].mxu0
        %v465 = vpop.f32.mrb[0].mxu0
        %466 = vdwg.mxu0
        %467 = vmatprep.subr.bf16.mxu0 %v361
        %468 = vmatpush1.bf16.msra.mxu0 %v360
        %469 = vmatprep.subr.bf16.mxu0 %v369
        %470 = vmatpush1.bf16.msra.mxu0 %v368
        %471 = vmatprep.subr.bf16.mxu0 %v377
        %472 = vmatpush1.bf16.msra.mxu0 %v376
        %473 = vmatprep.subr.bf16.mxu0 %v385
        %474 = vmatpush1.bf16.msra.mxu0 %v384
        %475 = vmatprep.subr.bf16.mxu0 0
        %476 = vmatpush1.bf16.msra.mxu0 0
        %477 = vmatprep.subr.bf16.mxu0 0
        %478 = vmatpush1.bf16.msra.mxu0 0
        %479 = vmatprep.subr.bf16.mxu0 0
        %480 = vmatpush1.bf16.msra.mxu0 0
        %481 = vmatprep.subr.bf16.mxu0 0
        %482 = vmatpush1.bf16.msra.mxu0 0
        %483 = vmatprep.subr.bf16.mxu0 0
        %484 = vmatpush1.bf16.msra.mxu0 0
        %485 = vmatprep.subr.bf16.mxu0 0
        %486 = vmatpush1.bf16.msra.mxu0 0
        %487 = vmatprep.subr.bf16.mxu0 0
        %488 = vmatpush1.bf16.msra.mxu0 0
        %489 = vmatprep.subr.bf16.mxu0 0
        %490 = vmatpush1.bf16.msra.mxu0 0
        %491 = vmatprep.subr.bf16.mxu0 0
        %492 = vmatpush1.bf16.msra.mxu0 0
        %493 = vmatprep.subr.bf16.mxu0 0
        %494 = vmatpush1.bf16.msra.mxu0 0
        %495 = vmatprep.subr.bf16.mxu0 0
        %496 = vmatpush1.bf16.msra.mxu0 0
        %497 = vmatprep.subr.bf16.mxu0 0
        %498 = vmatpush1.bf16.msra.mxu0 0
        %499 = vmatprep.mubr.bf16.mxu0 0
        %500 = vmatmul.mubr.bf16.gmra.mrb[0].mxu0 %v424
        %v501 = vpop.f32.mrb[0].mxu0
        %v502 = vadd.f32 0.0, %v501
        %v503 = vpop.f32.mrb[0].mxu0
        %v504 = vadd.f32 0.0, %v503
        %v505 = vpop.f32.mrb[0].mxu0
        %v506 = vpop.f32.mrb[0].mxu0
        %507 = vdwg.mxu0
        %508 = vmatprep.subr.bf16.mxu0 %v363
        %509 = vmatpush1.bf16.msra.mxu0 %v362
        %510 = vmatprep.subr.bf16.mxu0 %v371
        %511 = vmatpush1.bf16.msra.mxu0 %v370
        %512 = vmatprep.subr.bf16.mxu0 %v379
        %513 = vmatpush1.bf16.msra.mxu0 %v378
        %514 = vmatprep.subr.bf16.mxu0 %v387
        %515 = vmatpush1.bf16.msra.mxu0 %v386
        %516 = vmatprep.subr.bf16.mxu0 0
        %517 = vmatpush1.bf16.msra.mxu0 0
        %518 = vmatprep.subr.bf16.mxu0 0
        %519 = vmatpush1.bf16.msra.mxu0 0
        %520 = vmatprep.subr.bf16.mxu0 0
        %521 = vmatpush1.bf16.msra.mxu0 0
        %522 = vmatprep.subr.bf16.mxu0 0
        %523 = vmatpush1.bf16.msra.mxu0 0
        %524 = vmatprep.subr.bf16.mxu0 0
        %525 = vmatpush1.bf16.msra.mxu0 0
        %526 = vmatprep.subr.bf16.mxu0 0
        %527 = vmatpush1.bf16.msra.mxu0 0
        %528 = vmatprep.subr.bf16.mxu0 0
        %529 = vmatpush1.bf16.msra.mxu0 0
        %530 = vmatprep.subr.bf16.mxu0 0
        %531 = vmatpush1.bf16.msra.mxu0 0
        %532 = vmatprep.subr.bf16.mxu0 0
        %533 = vmatpush1.bf16.msra.mxu0 0
        %534 = vmatprep.subr.bf16.mxu0 0
        %535 = vmatpush1.bf16.msra.mxu0 0
        %536 = vmatprep.subr.bf16.mxu0 0
        %537 = vmatpush1.bf16.msra.mxu0 0
        %538 = vmatprep.subr.bf16.mxu0 0
        %539 = vmatpush1.bf16.msra.mxu0 0
        %540 = vmatprep.mubr.bf16.mxu0 0
        %541 = vmatmul.mubr.bf16.gmra.mrb[0].mxu0 %v424
        %v542 = vpop.f32.mrb[0].mxu0
        %v543 = vadd.f32 0.0, %v542
        %v544 = vpop.f32.mrb[0].mxu0
        %v545 = vadd.f32 0.0, %v544
        %v546 = vpop.f32.mrb[0].mxu0
        %v547 = vpop.f32.mrb[0].mxu0
        %548 = vdwg.mxu0
        %549 = vmatprep.subr.bf16.mxu0 %v365
        %550 = vmatpush1.bf16.msra.mxu0 %v364
        %551 = vmatprep.subr.bf16.mxu0 %v373
        %552 = vmatpush1.bf16.msra.mxu0 %v372
        %553 = vmatprep.subr.bf16.mxu0 %v381
        %554 = vmatpush1.bf16.msra.mxu0 %v380
        %555 = vmatprep.subr.bf16.mxu0 %v389
        %556 = vmatpush1.bf16.msra.mxu0 %v388
        %557 = vmatprep.subr.bf16.mxu0 0
        %558 = vmatpush1.bf16.msra.mxu0 0
        %559 = vmatprep.subr.bf16.mxu0 0
        %560 = vmatpush1.bf16.msra.mxu0 0
        %561 = vmatprep.subr.bf16.mxu0 0
        %562 = vmatpush1.bf16.msra.mxu0 0
        %563 = vmatprep.subr.bf16.mxu0 0
        %564 = vmatpush1.bf16.msra.mxu0 0
        %565 = vmatprep.subr.bf16.mxu0 0
        %566 = vmatpush1.bf16.msra.mxu0 0
        %567 = vmatprep.subr.bf16.mxu0 0
        %568 = vmatpush1.bf16.msra.mxu0 0
        %569 = vmatprep.subr.bf16.mxu0 0
        %570 = vmatpush1.bf16.msra.mxu0 0
        %571 = vmatprep.subr.bf16.mxu0 0
        %572 = vmatpush1.bf16.msra.mxu0 0
        %573 = vmatprep.subr.bf16.mxu0 0
        %574 = vmatpush1.bf16.msra.mxu0 0
        %575 = vmatprep.subr.bf16.mxu0 0
        %576 = vmatpush1.bf16.msra.mxu0 0
        %577 = vmatprep.subr.bf16.mxu0 0
        %578 = vmatpush1.bf16.msra.mxu0 0
        %579 = vmatprep.subr.bf16.mxu0 0
        %580 = vmatpush1.bf16.msra.mxu0 0
        %581 = vmatprep.mubr.bf16.mxu0 0
        %582 = vmatmul.mubr.bf16.gmra.mrb[0].mxu0 %v424
        %v583 = vpop.f32.mrb[0].mxu0
        %v584 = vadd.f32 0.0, %v583
        %v585 = vpop.f32.mrb[0].mxu0
        %v586 = vadd.f32 0.0, %v585
        %v587 = vpop.f32.mrb[0].mxu0
        %v588 = vpop.f32.mrb[0].mxu0
        %589 = vdwg.mxu0
        %vm590 = vcmp.gt.f32.partialorder %v461, 0.0
        %vm591 = vcmp.gt.f32.partialorder %v463, 0.0
        %vm592 = vcmp.gt.f32.partialorder %v502, 0.0
        %vm593 = vcmp.gt.f32.partialorder %v504, 0.0
        %vm594 = vcmp.gt.f32.partialorder %v543, 0.0
        %vm595 = vcmp.gt.f32.partialorder %v545, 0.0
        %vm596 = vcmp.gt.f32.partialorder %v584, 0.0
        %vm597 = vcmp.gt.f32.partialorder %v586, 0.0
        %v598 = vmul.f32 %v461, 1.442695
        %v599 = vpow.pop %v598
        %v600 = vmul.f32 %v463, 1.442695
        %v601 = vpow.pop %v600
        %v602 = vmul.f32 %v502, 1.442695
        %v603 = vpow.pop %v602
        %v604 = vmul.f32 %v504, 1.442695
        %v605 = vpow.pop %v604
        %v606 = vmul.f32 %v543, 1.442695
        %v607 = vpow.pop %v606
        %v608 = vmul.f32 %v545, 1.442695
        %v609 = vpow.pop %v608
        %v610 = vmul.f32 %v584, 1.442695
        %v611 = vpow.pop %v610
        %v612 = vmul.f32 %v586, 1.442695
        %v613 = vpow.pop %v612
        %v614 = vsub.f32 %v599, 1.0
        %v615 = vsub.f32 %v601, 1.0
        %v616 = vsub.f32 %v603, 1.0
        %v617 = vsub.f32 %v605, 1.0
        %v618 = vsub.f32 %v607, 1.0
        %v619 = vsub.f32 %v609, 1.0
        %v620 = vsub.f32 %v611, 1.0
        %v621 = vsub.f32 %v613, 1.0
        %v622 = vsel %vm590, %v461, %v614
        %v623 = vsel %vm591, %v463, %v615
        %v624 = vsel %vm592, %v502, %v616
        %v625 = vsel %vm593, %v504, %v617
        %v626 = vsel %vm594, %v543, %v618
        %v627 = vsel %vm595, %v545, %v619
        %v628 = vsel %vm596, %v584, %v620
        %v629 = vsel %vm597, %v586, %v621
        %v630 = vpack.c.bf16 %v622, %v622
        %v631 = vpack.c.bf16 %v623, %v623
        %v632 = vpack.c.bf16 %v624, %v624
        %v633 = vpack.c.bf16 %v625, %v625
        %v634 = vpack.c.bf16 %v626, %v626
        %v635 = vpack.c.bf16 %v627, %v627
        %v636 = vpack.c.bf16 %v628, %v628
        %v637 = vpack.c.bf16 %v629, %v629
        %v646 = vunpack.c.l.b16 %v630
        %v647 = vunpack.c.l.b16 %v631
        %v648 = vunpack.c.l.b16 %v632
        %v649 = vunpack.c.l.b16 %v633
        %v650 = vunpack.c.l.b16 %v634
        %v651 = vunpack.c.l.b16 %v635
        %v652 = vunpack.c.l.b16 %v636
        %v653 = vunpack.c.l.b16 %v637
        %v654 = vpack.c.b16 %v647, %v646
        %v655 = vpack.c.b16 %v649, %v648
        %v656 = vpack.c.b16 %v651, %v650
        %v657 = vpack.c.b16 %v653, %v652
        %662 = vst [vmem:[%s226] sm:$0xff] %v654
        %663 = vst [vmem:[%s226 + $0x8] sm:$0xff] %v655
        %664 = vst [vmem:[%s226 + $0x10] sm:$0xff] %v656
        %665 = vst [vmem:[%s226 + $0x18] sm:$0xff] %v657
        %s666 = smul.u32 8, %s13
        %p667 = scmp.lt.s32.totalorder %s666, 15
        %s668 = scalar_select %p667, %s666, 15
        %s669 = smul.addr %s668, 4
        %s670 = scalar_lea.vmem %s2, %s669
        // Predicated region
        $region52: #{model_forward.7} parent=46 // pred_check
          %p671 = pneg %p78
        $region53: #{model_forward.7} parent=46 // pred_check_branch
          %673 = sbr.rel (%p671) target = $region55
        $region54: #{model_forward.7} parent=46 // pred_region
          %s674 = smul.u32 8, %s13
        $region55: #{model_forward.7} parent=46 // pred_fallthru
          _
      $region47: #{model_forward.7} parent=5 // pred_fallthru
        _
      %p675 = scmp.le.s32.totalorder 2, %s8
      // Predicated region
      $region56: #{model_forward.7} parent=5 // pred_check
        %p676 = pneg %p675
      $region57: #{model_forward.7} parent=5 // pred_check_branch
        %678 = sbr.rel (%p676) target = $region59
      $region58: #{model_forward.7} parent=5 // pred_region
        %s679 = ssub.s32 %s8, 2
        // Predicated region
        $region60: #{model_forward.7} parent=58 // pred_check
          %p680 = pneg %p84
        $region61: #{model_forward.7} parent=58 // pred_check_branch
          %682 = sbr.rel (%p680) target = $region63
        $region62: #{model_forward.7} parent=58 // pred_region
          %s683 = smul.u32 8, %s14
          %p684 = scmp.lt.s32.totalorder %s683, 15
          %s685 = scalar_select %p684, %s683, 15
          %s686 = smul.addr %s685, 4
          %s687 = scalar_lea.vmem %s2, %s686
        $region63: #{model_forward.7} parent=58 // pred_fallthru
          _
      $region59: #{model_forward.7} parent=5 // pred_fallthru
        _
    $region6: #{model_forward.7} parent=1 // loop_footer
      %s12 = sadd.s32 1, %s8
    $region7: #{model_forward.7} parent=1 // loop_footer_branch
      %7 = sbr.rel target = $region3
    $region8: #{model_forward.7} parent=1 // loop_exit
      _

// kernel: model_forward.8
$region0: #{model_forward.8}
  #allocation0 [shape = 'u32[]', space=smem, size = 0x4, offset = 0x4, fixed_abs, tag = 'smem constant byte address 0x4 - core index']
  #allocation1 [shape = 'u32[144,128]{1,0:T(1,128)}', space=vmem, size = 0x12000, scoped, tag = 'internal scratch']
  %s0 = inlined_call_operand.vmem [shape: bf16[16,128], index: 0, kind: input, shape index: {}]
  %s1 = inlined_call_operand.vmem [shape: bf16[128,512], index: 1, kind: input, shape index: {}]
  %s2 = inlined_call_operand.vmem [shape: bf16[16,512], index: 2, kind: output, shape index: {}]
  %s3 = sld [smem:[#allocation0]]
  $region18: #{model_forward.8} parent=0
    _
  %s5 = ssub.s32 1, %s3
  %s6 = scalar_select 0, %s5, %s3
  // Predicated region
  $region2: #{model_forward.8} parent=0 // pred_check
    _
  $region3: #{model_forward.8} parent=0 // pred_check_branch
    %8 = sbr.rel (0) target = $region5
  $region4: #{model_forward.8} parent=0 // pred_region
    _
  $region5: #{model_forward.8} parent=0 // pred_fallthru
    _
  // Predicated region
  $region6: #{model_forward.8} parent=0 // pred_check
    _
  $region7: #{model_forward.8} parent=0 // pred_check_branch
    %10 = sbr.rel (0) target = $region9
  $region8: #{model_forward.8} parent=0 // pred_region
    _
  $region9: #{model_forward.8} parent=0 // pred_fallthru
    _
  %v12 = vld [vmem:[%s0] sm:$0xf]
  %v13 = vld [vmem:[%s0 + $0x4] sm:$0xf]
  %v14 = vld [vmem:[%s1] sm:$0xff]
  %v15 = vld [vmem:[%s1 + $0x8] sm:$0xff]
  %v16 = vld [vmem:[%s1 + $0x10] sm:$0xff]
  %v17 = vld [vmem:[%s1 + $0x18] sm:$0xff]
  %v18 = vld [vmem:[%s1 + $0x20] sm:$0xff]
  %v19 = vld [vmem:[%s1 + $0x28] sm:$0xff]
  %v20 = vld [vmem:[%s1 + $0x30] sm:$0xff]
  %v21 = vld [vmem:[%s1 + $0x38] sm:$0xff]
  %v22 = vld [vmem:[%s1 + $0x40] sm:$0xff]
  %v23 = vld [vmem:[%s1 + $0x48] sm:$0xff]
  %v24 = vld [vmem:[%s1 + $0x50] sm:$0xff]
  %v25 = vld [vmem:[%s1 + $0x58] sm:$0xff]
  %v26 = vld [vmem:[%s1 + $0x60] sm:$0xff]
  %v27 = vld [vmem:[%s1 + $0x68] sm:$0xff]
  %v28 = vld [vmem:[%s1 + $0x70] sm:$0xff]
  %v29 = vld [vmem:[%s1 + $0x78] sm:$0xff]
  %v30 = vld [vmem:[%s1 + $0x80] sm:$0xff]
  %v31 = vld [vmem:[%s1 + $0x88] sm:$0xff]
  %v32 = vld [vmem:[%s1 + $0x90] sm:$0xff]
  %v33 = vld [vmem:[%s1 + $0x98] sm:$0xff]
  %v34 = vld [vmem:[%s1 + $0xa0] sm:$0xff]
  %v35 = vld [vmem:[%s1 + $0xa8] sm:$0xff]
  %v36 = vld [vmem:[%s1 + $0xb0] sm:$0xff]
  %v37 = vld [vmem:[%s1 + $0xb8] sm:$0xff]
  %v38 = vld [vmem:[%s1 + $0xc0] sm:$0xff]
  %v39 = vld [vmem:[%s1 + $0xc8] sm:$0xff]
  %v40 = vld [vmem:[%s1 + $0xd0] sm:$0xff]
  %v41 = vld [vmem:[%s1 + $0xd8] sm:$0xff]
  %v42 = vld [vmem:[%s1 + $0xe0] sm:$0xff]
  %v43 = vld [vmem:[%s1 + $0xe8] sm:$0xff]
  %v44 = vld [vmem:[%s1 + $0xf0] sm:$0xff]
  %v45 = vld [vmem:[%s1 + $0xf8] sm:$0xff]
  %v48 = vunpack.c.l.b16 %v12
  %v49 = vunpack.c.l.b16 %v13
  %v50 = vpack.c.b16 %v49, %v48
  %v84 = vunpack.c.l.b16 %v14
  %v85 = vunpack.c.h.b16 %v14
  %v86 = vunpack.c.l.b16 %v15
  %v87 = vunpack.c.h.b16 %v15
  %v88 = vunpack.c.l.b16 %v16
  %v89 = vunpack.c.h.b16 %v16
  %v90 = vunpack.c.l.b16 %v17
  %v91 = vunpack.c.h.b16 %v17
  %v92 = vunpack.c.l.b16 %v18
  %v93 = vunpack.c.h.b16 %v18
  %v94 = vunpack.c.l.b16 %v19
  %v95 = vunpack.c.h.b16 %v19
  %v96 = vunpack.c.l.b16 %v20
  %v97 = vunpack.c.h.b16 %v20
  %v98 = vunpack.c.l.b16 %v21
  %v99 = vunpack.c.h.b16 %v21
  %v100 = vunpack.c.l.b16 %v22
  %v101 = vunpack.c.h.b16 %v22
  %v102 = vunpack.c.l.b16 %v23
  %v103 = vunpack.c.h.b16 %v23
  %v104 = vunpack.c.l.b16 %v24
  %v105 = vunpack.c.h.b16 %v24
  %v106 = vunpack.c.l.b16 %v25
  %v107 = vunpack.c.h.b16 %v25
  %v108 = vunpack.c.l.b16 %v26
  %v109 = vunpack.c.h.b16 %v26
  %v110 = vunpack.c.l.b16 %v27
  %v111 = vunpack.c.h.b16 %v27
  %v112 = vunpack.c.l.b16 %v28
  %v113 = vunpack.c.h.b16 %v28
  %v114 = vunpack.c.l.b16 %v29
  %v115 = vunpack.c.h.b16 %v29
  %v116 = vunpack.c.l.b16 %v30
  %v117 = vunpack.c.h.b16 %v30
  %v118 = vunpack.c.l.b16 %v31
  %v119 = vunpack.c.h.b16 %v31
  %v120 = vunpack.c.l.b16 %v32
  %v121 = vunpack.c.h.b16 %v32
  %v122 = vunpack.c.l.b16 %v33
  %v123 = vunpack.c.h.b16 %v33
  %v124 = vunpack.c.l.b16 %v34
  %v125 = vunpack.c.h.b16 %v34
  %v126 = vunpack.c.l.b16 %v35
  %v127 = vunpack.c.h.b16 %v35
  %v128 = vunpack.c.l.b16 %v36
  %v129 = vunpack.c.h.b16 %v36
  %v130 = vunpack.c.l.b16 %v37
  %v131 = vunpack.c.h.b16 %v37
  %v132 = vunpack.c.l.b16 %v38
  %v133 = vunpack.c.h.b16 %v38
  %v134 = vunpack.c.l.b16 %v39
  %v135 = vunpack.c.h.b16 %v39
  %v136 = vunpack.c.l.b16 %v40
  %v137 = vunpack.c.h.b16 %v40
  %v138 = vunpack.c.l.b16 %v41
  %v139 = vunpack.c.h.b16 %v41
  %v140 = vunpack.c.l.b16 %v42
  %v141 = vunpack.c.h.b16 %v42
  %v142 = vunpack.c.l.b16 %v43
  %v143 = vunpack.c.h.b16 %v43
  %v144 = vunpack.c.l.b16 %v44
  %v145 = vunpack.c.h.b16 %v44
  %v146 = vunpack.c.l.b16 %v45
  %v147 = vunpack.c.h.b16 %v45
  %v148 = vpack.c.b16 %v88, %v84
  %v149 = vpack.c.b16 %v89, %v85
  %v150 = vpack.c.b16 %v90, %v86
  %v151 = vpack.c.b16 %v91, %v87
  %v152 = vpack.c.b16 %v96, %v92
  %v153 = vpack.c.b16 %v97, %v93
  %v154 = vpack.c.b16 %v98, %v94
  %v155 = vpack.c.b16 %v99, %v95
  %v156 = vpack.c.b16 %v104, %v100
  %v157 = vpack.c.b16 %v105, %v101
  %v158 = vpack.c.b16 %v106, %v102
  %v159 = vpack.c.b16 %v107, %v103
  %v160 = vpack.c.b16 %v112, %v108
  %v161 = vpack.c.b16 %v113, %v109
  %v162 = vpack.c.b16 %v114, %v110
  %v163 = vpack.c.b16 %v115, %v111
  %v164 = vpack.c.b16 %v120, %v116
  %v165 = vpack.c.b16 %v121, %v117
  %v166 = vpack.c.b16 %v122, %v118
  %v167 = vpack.c.b16 %v123, %v119
  %v168 = vpack.c.b16 %v128, %v124
  %v169 = vpack.c.b16 %v129, %v125
  %v170 = vpack.c.b16 %v130, %v126
  %v171 = vpack.c.b16 %v131, %v127
  %v172 = vpack.c.b16 %v136, %v132
  %v173 = vpack.c.b16 %v137, %v133
  %v174 = vpack.c.b16 %v138, %v134
  %v175 = vpack.c.b16 %v139, %v135
  %v176 = vpack.c.b16 %v144, %v140
  %v177 = vpack.c.b16 %v145, %v141
  %v178 = vpack.c.b16 %v146, %v142
  %v179 = vpack.c.b16 %v147, %v143
  %212 = vmatprep.subr.bf16.mxu0 %v149
  %213 = vmatpush1.bf16.msra.mxu0 %v148
  %214 = vmatprep.subr.bf16.mxu0 %v153
  %215 = vmatpush1.bf16.msra.mxu0 %v152
  %216 = vmatprep.subr.bf16.mxu0 %v157
  %217 = vmatpush1.bf16.msra.mxu0 %v156
  %218 = vmatprep.subr.bf16.mxu0 %v161
  %219 = vmatpush1.bf16.msra.mxu0 %v160
  %220 = vmatprep.subr.bf16.mxu0 %v165
  %221 = vmatpush1.bf16.msra.mxu0 %v164
  %222 = vmatprep.subr.bf16.mxu0 %v169
  %223 = vmatpush1.bf16.msra.mxu0 %v168
  %224 = vmatprep.subr.bf16.mxu0 %v173
  %225 = vmatpush1.bf16.msra.mxu0 %v172
  %226 = vmatprep.subr.bf16.mxu0 %v177
  %227 = vmatpush1.bf16.msra.mxu0 %v176
  %228 = vmatprep.subr.bf16.mxu0 0
  %229 = vmatpush1.bf16.msra.mxu0 0
  %230 = vmatprep.subr.bf16.mxu0 0
  %231 = vmatpush1.bf16.msra.mxu0 0
  %232 = vmatprep.subr.bf16.mxu0 0
  %233 = vmatpush1.bf16.msra.mxu0 0
  %234 = vmatprep.subr.bf16.mxu0 0
  %235 = vmatpush1.bf16.msra.mxu0 0
  %236 = vmatprep.subr.bf16.mxu0 0
  %237 = vmatpush1.bf16.msra.mxu0 0
  %238 = vmatprep.subr.bf16.mxu0 0
  %239 = vmatpush1.bf16.msra.mxu0 0
  %240 = vmatprep.subr.bf16.mxu0 0
  %241 = vmatpush1.bf16.msra.mxu0 0
  %242 = vmatprep.subr.bf16.mxu0 0
  %243 = vmatpush1.bf16.msra.mxu0 0
  %244 = vmatprep.mubr.bf16.mxu0 0
  %245 = vmatmul.mubr.bf16.gmra.mrb[0].mxu0 %v50
  %v246 = vpop.f32.mrb[0].mxu0
  %v247 = vadd.f32 0.0, %v246
  %v248 = vpop.f32.mrb[0].mxu0
  %v249 = vadd.f32 0.0, %v248
  %v250 = vpop.f32.mrb[0].mxu0
  %v251 = vadd.f32 0.0, %v250
  %v252 = vpop.f32.mrb[0].mxu0
  %v253 = vadd.f32 0.0, %v252
  %254 = vdwg.mxu0
  %255 = vmatprep.subr.bf16.mxu0 %v151
  %256 = vmatpush1.bf16.msra.mxu0 %v150
  %257 = vmatprep.subr.bf16.mxu0 %v155
  %258 = vmatpush1.bf16.msra.mxu0 %v154
  %259 = vmatprep.subr.bf16.mxu0 %v159
  %260 = vmatpush1.bf16.msra.mxu0 %v158
  %261 = vmatprep.subr.bf16.mxu0 %v163
  %262 = vmatpush1.bf16.msra.mxu0 %v162
  %263 = vmatprep.subr.bf16.mxu0 %v167
  %264 = vmatpush1.bf16.msra.mxu0 %v166
  %265 = vmatprep.subr.bf16.mxu0 %v171
  %266 = vmatpush1.bf16.msra.mxu0 %v170
  %267 = vmatprep.subr.bf16.mxu0 %v175
  %268 = vmatpush1.bf16.msra.mxu0 %v174
  %269 = vmatprep.subr.bf16.mxu0 %v179
  %270 = vmatpush1.bf16.msra.mxu0 %v178
  %271 = vmatprep.subr.bf16.mxu0 0
  %272 = vmatpush1.bf16.msra.mxu0 0
  %273 = vmatprep.subr.bf16.mxu0 0
  %274 = vmatpush1.bf16.msra.mxu0 0
  %275 = vmatprep.subr.bf16.mxu0 0
  %276 = vmatpush1.bf16.msra.mxu0 0
  %277 = vmatprep.subr.bf16.mxu0 0
  %278 = vmatpush1.bf16.msra.mxu0 0
  %279 = vmatprep.subr.bf16.mxu0 0
  %280 = vmatpush1.bf16.msra.mxu0 0
  %281 = vmatprep.subr.bf16.mxu0 0
  %282 = vmatpush1.bf16.msra.mxu0 0
  %283 = vmatprep.subr.bf16.mxu0 0
  %284 = vmatpush1.bf16.msra.mxu0 0
  %285 = vmatprep.subr.bf16.mxu0 0
  %286 = vmatpush1.bf16.msra.mxu0 0
  %287 = vmatprep.mubr.bf16.mxu0 0
  %288 = vmatmul.mubr.bf16.gmra.mrb[0].mxu0 %v50
  %v289 = vpop.f32.mrb[0].mxu0
  %v290 = vadd.f32 0.0, %v289
  %v291 = vpop.f32.mrb[0].mxu0
  %v292 = vadd.f32 0.0, %v291
  %v293 = vpop.f32.mrb[0].mxu0
  %v294 = vadd.f32 0.0, %v293
  %v295 = vpop.f32.mrb[0].mxu0
  %v296 = vadd.f32 0.0, %v295
  %297 = vdwg.mxu0
  %vm298 = vcmp.gt.f32.partialorder %v247, 0.0
  %vm299 = vcmp.gt.f32.partialorder %v249, 0.0
  %vm300 = vcmp.gt.f32.partialorder %v290, 0.0
  %vm301 = vcmp.gt.f32.partialorder %v292, 0.0
  %vm302 = vcmp.gt.f32.partialorder %v251, 0.0
  %vm303 = vcmp.gt.f32.partialorder %v253, 0.0
  %vm304 = vcmp.gt.f32.partialorder %v294, 0.0
  %vm305 = vcmp.gt.f32.partialorder %v296, 0.0
  %v306 = vmul.f32 %v247, 1.442695
  %v307 = vpow.pop %v306
  %v308 = vmul.f32 %v249, 1.442695
  %v309 = vpow.pop %v308
  %v310 = vmul.f32 %v290, 1.442695
  %v311 = vpow.pop %v310
  %v312 = vmul.f32 %v292, 1.442695
  %v313 = vpow.pop %v312
  %v314 = vmul.f32 %v251, 1.442695
  %v315 = vpow.pop %v314
  %v316 = vmul.f32 %v253, 1.442695
  %v317 = vpow.pop %v316
  %v318 = vmul.f32 %v294, 1.442695
  %v319 = vpow.pop %v318
  %v320 = vmul.f32 %v296, 1.442695
  %v321 = vpow.pop %v320
  %v322 = vsub.f32 %v307, 1.0
  %v323 = vsub.f32 %v309, 1.0
  %v324 = vsub.f32 %v311, 1.0
  %v325 = vsub.f32 %v313, 1.0
  %v326 = vsub.f32 %v315, 1.0
  %v327 = vsub.f32 %v317, 1.0
  %v328 = vsub.f32 %v319, 1.0
  %v329 = vsub.f32 %v321, 1.0
  %v330 = vsel %vm298, %v247, %v322
  %v331 = vsel %vm299, %v249, %v323
  %v332 = vsel %vm300, %v290, %v324
  %v333 = vsel %vm301, %v292, %v325
  %v334 = vsel %vm302, %v251, %v326
  %v335 = vsel %vm303, %v253, %v327
  %v336 = vsel %vm304, %v294, %v328
  %v337 = vsel %vm305, %v296, %v329
  %v338 = vpack.c.bf16 %v334, %v330
  %v339 = vpack.c.bf16 %v335, %v331
  %v340 = vpack.c.bf16 %v336, %v332
  %v341 = vpack.c.bf16 %v337, %v333
  %v346 = vunpack.c.l.b16 %v338
  %v347 = vunpack.c.l.b16 %v339
  %v348 = vunpack.c.l.b16 %v340
  %v349 = vunpack.c.l.b16 %v341
  %v350 = vunpack.c.h.b16 %v338
  %v351 = vunpack.c.h.b16 %v339
  %v352 = vunpack.c.h.b16 %v340
  %v353 = vunpack.c.h.b16 %v341
  %v354 = vpack.c.b16 %v347, %v346
  %v355 = vpack.c.b16 %v349, %v348
  %v356 = vpack.c.b16 %v351, %v350
  %v357 = vpack.c.b16 %v353, %v352
  %362 = vst [vmem:[%s2] sm:$0xff] %v354
  %363 = vst [vmem:[%s2 + $0x8] sm:$0xff] %v355
  %364 = vst [vmem:[%s2 + $0x10] sm:$0xff] %v356
  %365 = vst [vmem:[%s2 + $0x18] sm:$0xff] %v357
  // Predicated region
  $region10: #{model_forward.8} parent=0 // pred_check
    _
  $region11: #{model_forward.8} parent=0 // pred_check_branch
    %367 = sbr.rel (0) target = $region13
  $region12: #{model_forward.8} parent=0 // pred_region
    _
  $region13: #{model_forward.8} parent=0 // pred_fallthru
    _
  // Predicated region
  $region14: #{model_forward.8} parent=0 // pred_check
    _
  $region15: #{model_forward.8} parent=0 // pred_check_branch
    %369 = sbr.rel (0) target = $region17
  $region16: #{model_forward.8} parent=0 // pred_region
    _
  $region17: #{model_forward.8} parent=0 // pred_fallthru
    _

// kernel: model_forward.9
$region0: #{model_forward.9}
  #allocation0 [shape = 'u32[]', space=smem, size = 0x4, offset = 0x4, fixed_abs, tag = 'smem constant byte address 0x4 - core index']
  #allocation1 [shape = 'u32[144,128]{1,0:T(1,128)}', space=vmem, size = 0x12000, scoped, tag = 'internal scratch']
  %s0 = inlined_call_operand.vmem [shape: bf16[32,256], index: 0, kind: input, shape index: {}]
  %s1 = inlined_call_operand.vmem [shape: bf16[256,128], index: 1, kind: input, shape index: {}]
  %s2 = inlined_call_operand.vmem [shape: bf16[32,128], index: 2, kind: output, shape index: {}]
  %s3 = sld [smem:[#allocation0]]
  $region18: #{model_forward.9} parent=0
    _
  %s5 = ssub.s32 1, %s3
  %s6 = scalar_select 0, %s5, %s3
  // Predicated region
  $region2: #{model_forward.9} parent=0 // pred_check
    _
  $region3: #{model_forward.9} parent=0 // pred_check_branch
    %8 = sbr.rel (0) target = $region5
  $region4: #{model_forward.9} parent=0 // pred_region
    _
  $region5: #{model_forward.9} parent=0 // pred_fallthru
    _
  // Predicated region
  $region6: #{model_forward.9} parent=0 // pred_check
    _
  $region7: #{model_forward.9} parent=0 // pred_check_branch
    %10 = sbr.rel (0) target = $region9
  $region8: #{model_forward.9} parent=0 // pred_region
    _
  $region9: #{model_forward.9} parent=0 // pred_fallthru
    _
  %v12 = vld [vmem:[%s0] sm:$0xff]
  %v13 = vld [vmem:[%s0 + $0x8] sm:$0xff]
  %v14 = vld [vmem:[%s0 + $0x10] sm:$0xff]
  %v15 = vld [vmem:[%s0 + $0x18] sm:$0xff]
  %v16 = vld [vmem:[%s1] sm:$0xf]
  %v17 = vld [vmem:[%s1 + $0x4] sm:$0xf]
  %v18 = vld [vmem:[%s1 + $0x8] sm:$0xf]
  %v19 = vld [vmem:[%s1 + $0xc] sm:$0xf]
  %v20 = vld [vmem:[%s1 + $0x10] sm:$0xf]
  %v21 = vld [vmem:[%s1 + $0x14] sm:$0xf]
  %v22 = vld [vmem:[%s1 + $0x18] sm:$0xf]
  %v23 = vld [vmem:[%s1 + $0x1c] sm:$0xf]
  %v24 = vld [vmem:[%s1 + $0x20] sm:$0xf]
  %v25 = vld [vmem:[%s1 + $0x24] sm:$0xf]
  %v26 = vld [vmem:[%s1 + $0x28] sm:$0xf]
  %v27 = vld [vmem:[%s1 + $0x2c] sm:$0xf]
  %v28 = vld [vmem:[%s1 + $0x30] sm:$0xf]
  %v29 = vld [vmem:[%s1 + $0x34] sm:$0xf]
  %v30 = vld [vmem:[%s1 + $0x38] sm:$0xf]
  %v31 = vld [vmem:[%s1 + $0x3c] sm:$0xf]
  %v32 = vld [vmem:[%s1 + $0x40] sm:$0xf]
  %v33 = vld [vmem:[%s1 + $0x44] sm:$0xf]
  %v34 = vld [vmem:[%s1 + $0x48] sm:$0xf]
  %v35 = vld [vmem:[%s1 + $0x4c] sm:$0xf]
  %v36 = vld [vmem:[%s1 + $0x50] sm:$0xf]
  %v37 = vld [vmem:[%s1 + $0x54] sm:$0xf]
  %v38 = vld [vmem:[%s1 + $0x58] sm:$0xf]
  %v39 = vld [vmem:[%s1 + $0x5c] sm:$0xf]
  %v40 = vld [vmem:[%s1 + $0x60] sm:$0xf]
  %v41 = vld [vmem:[%s1 + $0x64] sm:$0xf]
  %v42 = vld [vmem:[%s1 + $0x68] sm:$0xf]
  %v43 = vld [vmem:[%s1 + $0x6c] sm:$0xf]
  %v44 = vld [vmem:[%s1 + $0x70] sm:$0xf]
  %v45 = vld [vmem:[%s1 + $0x74] sm:$0xf]
  %v46 = vld [vmem:[%s1 + $0x78] sm:$0xf]
  %v47 = vld [vmem:[%s1 + $0x7c] sm:$0xf]
  %v52 = vunpack.c.l.b16 %v12
  %v53 = vunpack.c.h.b16 %v12
  %v54 = vunpack.c.l.b16 %v13
  %v55 = vunpack.c.h.b16 %v13
  %v56 = vunpack.c.l.b16 %v14
  %v57 = vunpack.c.h.b16 %v14
  %v58 = vunpack.c.l.b16 %v15
  %v59 = vunpack.c.h.b16 %v15
  %v60 = vpack.c.b16 %v54, %v52
  %v61 = vpack.c.b16 %v55, %v53
  %v62 = vpack.c.b16 %v58, %v56
  %v63 = vpack.c.b16 %v59, %v57
  %v100 = vunpack.c.l.b16 %v16
  %v101 = vunpack.c.l.b16 %v17
  %v102 = vunpack.c.l.b16 %v18
  %v103 = vunpack.c.l.b16 %v19
  %v104 = vunpack.c.l.b16 %v20
  %v105 = vunpack.c.l.b16 %v21
  %v106 = vunpack.c.l.b16 %v22
  %v107 = vunpack.c.l.b16 %v23
  %v108 = vunpack.c.l.b16 %v24
  %v109 = vunpack.c.l.b16 %v25
  %v110 = vunpack.c.l.b16 %v26
  %v111 = vunpack.c.l.b16 %v27
  %v112 = vunpack.c.l.b16 %v28
  %v113 = vunpack.c.l.b16 %v29
  %v114 = vunpack.c.l.b16 %v30
  %v115 = vunpack.c.l.b16 %v31
  %v116 = vunpack.c.l.b16 %v32
  %v117 = vunpack.c.l.b16 %v33
  %v118 = vunpack.c.l.b16 %v34
  %v119 = vunpack.c.l.b16 %v35
  %v120 = vunpack.c.l.b16 %v36
  %v121 = vunpack.c.l.b16 %v37
  %v122 = vunpack.c.l.b16 %v38
  %v123 = vunpack.c.l.b16 %v39
  %v124 = vunpack.c.l.b16 %v40
  %v125 = vunpack.c.l.b16 %v41
  %v126 = vunpack.c.l.b16 %v42
  %v127 = vunpack.c.l.b16 %v43
  %v128 = vunpack.c.l.b16 %v44
  %v129 = vunpack.c.l.b16 %v45
  %v130 = vunpack.c.l.b16 %v46
  %v131 = vunpack.c.l.b16 %v47
  %v132 = vpack.c.b16 %v101, %v100
  %v133 = vpack.c.b16 %v103, %v102
  %v134 = vpack.c.b16 %v105, %v104
  %v135 = vpack.c.b16 %v107, %v106
  %v136 = vpack.c.b16 %v109, %v108
  %v137 = vpack.c.b16 %v111, %v110
  %v138 = vpack.c.b16 %v113, %v112
  %v139 = vpack.c.b16 %v115, %v114
  %v140 = vpack.c.b16 %v117, %v116
  %v141 = vpack.c.b16 %v119, %v118
  %v142 = vpack.c.b16 %v121, %v120
  %v143 = vpack.c.b16 %v123, %v122
  %v144 = vpack.c.b16 %v125, %v124
  %v145 = vpack.c.b16 %v127, %v126
  %v146 = vpack.c.b16 %v129, %v128
  %v147 = vpack.c.b16 %v131, %v130
  %164 = vmatprep.subr.bf16.mxu0 0
  %165 = vmatpush1.bf16.msra.mxu0 %v132
  %166 = vmatprep.subr.bf16.mxu0 0
  %167 = vmatpush1.bf16.msra.mxu0 %v133
  %168 = vmatprep.subr.bf16.mxu0 0
  %169 = vmatpush1.bf16.msra.mxu0 %v134
  %170 = vmatprep.subr.bf16.mxu0 0
  %171 = vmatpush1.bf16.msra.mxu0 %v135
  %172 = vmatprep.subr.bf16.mxu0 0
  %173 = vmatpush1.bf16.msra.mxu0 %v136
  %174 = vmatprep.subr.bf16.mxu0 0
  %175 = vmatpush1.bf16.msra.mxu0 %v137
  %176 = vmatprep.subr.bf16.mxu0 0
  %177 = vmatpush1.bf16.msra.mxu0 %v138
  %178 = vmatprep.subr.bf16.mxu0 0
  %179 = vmatpush1.bf16.msra.mxu0 %v139
  %180 = vmatprep.subr.bf16.mxu0 0
  %181 = vmatpush1.bf16.msra.mxu0 %v140
  %182 = vmatprep.subr.bf16.mxu0 0
  %183 = vmatpush1.bf16.msra.mxu0 %v141
  %184 = vmatprep.subr.bf16.mxu0 0
  %185 = vmatpush1.bf16.msra.mxu0 %v142
  %186 = vmatprep.subr.bf16.mxu0 0
  %187 = vmatpush1.bf16.msra.mxu0 %v143
  %188 = vmatprep.subr.bf16.mxu0 0
  %189 = vmatpush1.bf16.msra.mxu0 %v144
  %190 = vmatprep.subr.bf16.mxu0 0
  %191 = vmatpush1.bf16.msra.mxu0 %v145
  %192 = vmatprep.subr.bf16.mxu0 0
  %193 = vmatpush1.bf16.msra.mxu0 %v146
  %194 = vmatprep.subr.bf16.mxu0 0
  %195 = vmatpush1.bf16.msra.mxu0 %v147
  %196 = vmatprep.mubr.bf16.mxu0 %v61
  %197 = vmatmul.mubr.bf16.gmra.mrb[0].mxu0 %v60
  %v198 = vpop.f32.mrb[0].mxu0
  %v199 = vadd.f32 0.0, %v198
  %v200 = vpop.f32.mrb[0].mxu0
  %v201 = vpop.f32.mrb[0].mxu0
  %v202 = vadd.f32 0.0, %v201
  %v203 = vpop.f32.mrb[0].mxu0
  %204 = vmatprep.mubr.bf16.mxu0 %v63
  %205 = vmatmul.mubr.bf16.gmra.mrb[0].mxu0 %v62
  %v206 = vpop.f32.mrb[0].mxu0
  %v207 = vadd.f32 0.0, %v206
  %v208 = vpop.f32.mrb[0].mxu0
  %v209 = vpop.f32.mrb[0].mxu0
  %v210 = vadd.f32 0.0, %v209
  %v211 = vpop.f32.mrb[0].mxu0
  %212 = vdwg.mxu0
  %vm213 = vcmp.gt.f32.partialorder %v199, 0.0
  %vm214 = vcmp.gt.f32.partialorder %v202, 0.0
  %vm215 = vcmp.gt.f32.partialorder %v207, 0.0
  %vm216 = vcmp.gt.f32.partialorder %v210, 0.0
  %v217 = vmul.f32 %v199, 1.442695
  %v218 = vpow.pop %v217
  %v219 = vmul.f32 %v202, 1.442695
  %v220 = vpow.pop %v219
  %v221 = vmul.f32 %v207, 1.442695
  %v222 = vpow.pop %v221
  %v223 = vmul.f32 %v210, 1.442695
  %v224 = vpow.pop %v223
  %v225 = vsub.f32 %v218, 1.0
  %v226 = vsub.f32 %v220, 1.0
  %v227 = vsub.f32 %v222, 1.0
  %v228 = vsub.f32 %v224, 1.0
  %v229 = vsel %vm213, %v199, %v225
  %v230 = vsel %vm214, %v202, %v226
  %v231 = vsel %vm215, %v207, %v227
  %v232 = vsel %vm216, %v210, %v228
  %v233 = vpack.c.bf16 %v230, %v229
  %v234 = vpack.c.bf16 %v232, %v231
  %v237 = vunpack.c.l.b16 %v233
  %v238 = vunpack.c.h.b16 %v233
  %v239 = vunpack.c.l.b16 %v234
  %v240 = vunpack.c.h.b16 %v234
  %v241 = vpack.c.b16 %v237, %v237
  %v242 = vpack.c.b16 %v238, %v238
  %v243 = vpack.c.b16 %v239, %v239
  %v244 = vpack.c.b16 %v240, %v240
  %249 = vst [vmem:[%s2] sm:$0xf] %v241
  %250 = vst [vmem:[%s2 + $0x4] sm:$0xf] %v242
  %251 = vst [vmem:[%s2 + $0x8] sm:$0xf] %v243
  %252 = vst [vmem:[%s2 + $0xc] sm:$0xf] %v244
  // Predicated region
  $region10: #{model_forward.9} parent=0 // pred_check
    _
  $region11: #{model_forward.9} parent=0 // pred_check_branch
    %254 = sbr.rel (0) target = $region13
  $region12: #{model_forward.9} parent=0 // pred_region
    _
  $region13: #{model_forward.9} parent=0 // pred_fallthru
    _
  // Predicated region
  $region14: #{model_forward.9} parent=0 // pred_check
    _
  $region15: #{model_forward.9} parent=0 // pred_check_branch
    %256 = sbr.rel (0) target = $region17
  $region16: #{model_forward.9} parent=0 // pred_region
    _
  $region17: #{model_forward.9} parent=0 // pred_fallthru
    _

// kernel: model_forward.10
$region0: #{model_forward.10}
  #allocation0 [shape = 'u32[]', space=smem, size = 0x4, offset = 0x4, fixed_abs, tag = 'smem constant byte address 0x4 - core index']
  #allocation1 [shape = 'u32[144,128]{1,0:T(1,128)}', space=vmem, size = 0x12000, scoped, tag = 'internal scratch']
  %s0 = inlined_call_operand.vmem [shape: bf16[64,512], index: 0, kind: input, shape index: {}]
  %s1 = inlined_call_operand.vmem [shape: bf16[512,128], index: 1, kind: input, shape index: {}]
  %s2 = inlined_call_operand.vmem [shape: bf16[64,128], index: 2, kind: output, shape index: {}]
  %s3 = sld [smem:[#allocation0]]
  $region18: #{model_forward.10} parent=0
    _
  %s5 = ssub.s32 1, %s3
  %s6 = scalar_select 0, %s5, %s3
  // Predicated region
  $region2: #{model_forward.10} parent=0 // pred_check
    _
  $region3: #{model_forward.10} parent=0 // pred_check_branch
    %8 = sbr.rel (0) target = $region5
  $region4: #{model_forward.10} parent=0 // pred_region
    _
  $region5: #{model_forward.10} parent=0 // pred_fallthru
    _
  // Predicated region
  $region6: #{model_forward.10} parent=0 // pred_check
    _
  $region7: #{model_forward.10} parent=0 // pred_check_branch
    %10 = sbr.rel (0) target = $region9
  $region8: #{model_forward.10} parent=0 // pred_region
    _
  $region9: #{model_forward.10} parent=0 // pred_fallthru
    _
  %v12 = vld [vmem:[%s0] sm:$0xff]
  %v13 = vld [vmem:[%s0 + $0x8] sm:$0xff]
  %v14 = vld [vmem:[%s0 + $0x10] sm:$0xff]
  %v15 = vld [vmem:[%s0 + $0x18] sm:$0xff]
  %v16 = vld [vmem:[%s0 + $0x20] sm:$0xff]
  %v17 = vld [vmem:[%s0 + $0x28] sm:$0xff]
  %v18 = vld [vmem:[%s0 + $0x30] sm:$0xff]
  %v19 = vld [vmem:[%s0 + $0x38] sm:$0xff]
  %v20 = vld [vmem:[%s0 + $0x40] sm:$0xff]
  %v21 = vld [vmem:[%s0 + $0x48] sm:$0xff]
  %v22 = vld [vmem:[%s0 + $0x50] sm:$0xff]
  %v23 = vld [vmem:[%s0 + $0x58] sm:$0xff]
  %v24 = vld [vmem:[%s0 + $0x60] sm:$0xff]
  %v25 = vld [vmem:[%s0 + $0x68] sm:$0xff]
  %v26 = vld [vmem:[%s0 + $0x70] sm:$0xff]
  %v27 = vld [vmem:[%s0 + $0x78] sm:$0xff]
  %v28 = vld [vmem:[%s1] sm:$0xf]
  %v29 = vld [vmem:[%s1 + $0x4] sm:$0xf]
  %v30 = vld [vmem:[%s1 + $0x8] sm:$0xf]
  %v31 = vld [vmem:[%s1 + $0xc] sm:$0xf]
  %v32 = vld [vmem:[%s1 + $0x10] sm:$0xf]
  %v33 = vld [vmem:[%s1 + $0x14] sm:$0xf]
  %v34 = vld [vmem:[%s1 + $0x18] sm:$0xf]
  %v35 = vld [vmem:[%s1 + $0x1c] sm:$0xf]
  %v36 = vld [vmem:[%s1 + $0x20] sm:$0xf]
  %v37 = vld [vmem:[%s1 + $0x24] sm:$0xf]
  %v38 = vld [vmem:[%s1 + $0x28] sm:$0xf]
  %v39 = vld [vmem:[%s1 + $0x2c] sm:$0xf]
  %v40 = vld [vmem:[%s1 + $0x30] sm:$0xf]
  %v41 = vld [vmem:[%s1 + $0x34] sm:$0xf]
  %v42 = vld [vmem:[%s1 + $0x38] sm:$0xf]
  %v43 = vld [vmem:[%s1 + $0x3c] sm:$0xf]
  %v44 = vld [vmem:[%s1 + $0x40] sm:$0xf]
  %v45 = vld [vmem:[%s1 + $0x44] sm:$0xf]
  %v46 = vld [vmem:[%s1 + $0x48] sm:$0xf]
  %v47 = vld [vmem:[%s1 + $0x4c] sm:$0xf]
  %v48 = vld [vmem:[%s1 + $0x50] sm:$0xf]
  %v49 = vld [vmem:[%s1 + $0x54] sm:$0xf]
  %v50 = vld [vmem:[%s1 + $0x58] sm:$0xf]
  %v51 = vld [vmem:[%s1 + $0x5c] sm:$0xf]
  %v52 = vld [vmem:[%s1 + $0x60] sm:$0xf]
  %v53 = vld [vmem:[%s1 + $0x64] sm:$0xf]
  %v54 = vld [vmem:[%s1 + $0x68] sm:$0xf]
  %v55 = vld [vmem:[%s1 + $0x6c] sm:$0xf]
  %v56 = vld [vmem:[%s1 + $0x70] sm:$0xf]
  %v57 = vld [vmem:[%s1 + $0x74] sm:$0xf]
  %v58 = vld [vmem:[%s1 + $0x78] sm:$0xf]
  %v59 = vld [vmem:[%s1 + $0x7c] sm:$0xf]
  %v60 = vld [vmem:[%s1 + $0x80] sm:$0xf]
  %v61 = vld [vmem:[%s1 + $0x84] sm:$0xf]
  %v62 = vld [vmem:[%s1 + $0x88] sm:$0xf]
  %v63 = vld [vmem:[%s1 + $0x8c] sm:$0xf]
  %v64 = vld [vmem:[%s1 + $0x90] sm:$0xf]
  %v65 = vld [vmem:[%s1 + $0x94] sm:$0xf]
  %v66 = vld [vmem:[%s1 + $0x98] sm:$0xf]
  %v67 = vld [vmem:[%s1 + $0x9c] sm:$0xf]
  %v68 = vld [vmem:[%s1 + $0xa0] sm:$0xf]
  %v69 = vld [vmem:[%s1 + $0xa4] sm:$0xf]
  %v70 = vld [vmem:[%s1 + $0xa8] sm:$0xf]
  %v71 = vld [vmem:[%s1 + $0xac] sm:$0xf]
  %v72 = vld [vmem:[%s1 + $0xb0] sm:$0xf]
  %v73 = vld [vmem:[%s1 + $0xb4] sm:$0xf]
  %v74 = vld [vmem:[%s1 + $0xb8] sm:$0xf]
  %v75 = vld [vmem:[%s1 + $0xbc] sm:$0xf]
  %v76 = vld [vmem:[%s1 + $0xc0] sm:$0xf]
  %v77 = vld [vmem:[%s1 + $0xc4] sm:$0xf]
  %v78 = vld [vmem:[%s1 + $0xc8] sm:$0xf]
  %v79 = vld [vmem:[%s1 + $0xcc] sm:$0xf]
  %v80 = vld [vmem:[%s1 + $0xd0] sm:$0xf]
  %v81 = vld [vmem:[%s1 + $0xd4] sm:$0xf]
  %v82 = vld [vmem:[%s1 + $0xd8] sm:$0xf]
  %v83 = vld [vmem:[%s1 + $0xdc] sm:$0xf]
  %v84 = vld [vmem:[%s1 + $0xe0] sm:$0xf]
  %v85 = vld [vmem:[%s1 + $0xe4] sm:$0xf]
  %v86 = vld [vmem:[%s1 + $0xe8] sm:$0xf]
  %v87 = vld [vmem:[%s1 + $0xec] sm:$0xf]
  %v88 = vld [vmem:[%s1 + $0xf0] sm:$0xf]
  %v89 = vld [vmem:[%s1 + $0xf4] sm:$0xf]
  %v90 = vld [vmem:[%s1 + $0xf8] sm:$0xf]
  %v91 = vld [vmem:[%s1 + $0xfc] sm:$0xf]
  %v108 = vunpack.c.l.b16 %v12
  %v109 = vunpack.c.h.b16 %v12
  %v110 = vunpack.c.l.b16 %v13
  %v111 = vunpack.c.h.b16 %v13
  %v112 = vunpack.c.l.b16 %v14
  %v113 = vunpack.c.h.b16 %v14
  %v114 = vunpack.c.l.b16 %v15
  %v115 = vunpack.c.h.b16 %v15
  %v116 = vunpack.c.l.b16 %v16
  %v117 = vunpack.c.h.b16 %v16
  %v118 = vunpack.c.l.b16 %v17
  %v119 = vunpack.c.h.b16 %v17
  %v120 = vunpack.c.l.b16 %v18
  %v121 = vunpack.c.h.b16 %v18
  %v122 = vunpack.c.l.b16 %v19
  %v123 = vunpack.c.h.b16 %v19
  %v124 = vunpack.c.l.b16 %v20
  %v125 = vunpack.c.h.b16 %v20
  %v126 = vunpack.c.l.b16 %v21
  %v127 = vunpack.c.h.b16 %v21
  %v128 = vunpack.c.l.b16 %v22
  %v129 = vunpack.c.h.b16 %v22
  %v130 = vunpack.c.l.b16 %v23
  %v131 = vunpack.c.h.b16 %v23
  %v132 = vunpack.c.l.b16 %v24
  %v133 = vunpack.c.h.b16 %v24
  %v134 = vunpack.c.l.b16 %v25
  %v135 = vunpack.c.h.b16 %v25
  %v136 = vunpack.c.l.b16 %v26
  %v137 = vunpack.c.h.b16 %v26
  %v138 = vunpack.c.l.b16 %v27
  %v139 = vunpack.c.h.b16 %v27
  %v140 = vpack.c.b16 %v112, %v108
  %v141 = vpack.c.b16 %v113, %v109
  %v142 = vpack.c.b16 %v114, %v110
  %v143 = vpack.c.b16 %v115, %v111
  %v144 = vpack.c.b16 %v120, %v116
  %v145 = vpack.c.b16 %v121, %v117
  %v146 = vpack.c.b16 %v122, %v118
  %v147 = vpack.c.b16 %v123, %v119
  %v148 = vpack.c.b16 %v128, %v124
  %v149 = vpack.c.b16 %v129, %v125
  %v150 = vpack.c.b16 %v130, %v126
  %v151 = vpack.c.b16 %v131, %v127
  %v152 = vpack.c.b16 %v136, %v132
  %v153 = vpack.c.b16 %v137, %v133
  %v154 = vpack.c.b16 %v138, %v134
  %v155 = vpack.c.b16 %v139, %v135
  %v236 = vunpack.c.l.b16 %v28
  %v237 = vunpack.c.l.b16 %v29
  %v238 = vunpack.c.l.b16 %v30
  %v239 = vunpack.c.l.b16 %v31
  %v240 = vunpack.c.l.b16 %v32
  %v241 = vunpack.c.l.b16 %v33
  %v242 = vunpack.c.l.b16 %v34
  %v243 = vunpack.c.l.b16 %v35
  %v244 = vunpack.c.l.b16 %v36
  %v245 = vunpack.c.l.b16 %v37
  %v246 = vunpack.c.l.b16 %v38
  %v247 = vunpack.c.l.b16 %v39
  %v248 = vunpack.c.l.b16 %v40
  %v249 = vunpack.c.l.b16 %v41
  %v250 = vunpack.c.l.b16 %v42
  %v251 = vunpack.c.l.b16 %v43
  %v252 = vunpack.c.l.b16 %v44
  %v253 = vunpack.c.l.b16 %v45
  %v254 = vunpack.c.l.b16 %v46
  %v255 = vunpack.c.l.b16 %v47
  %v256 = vunpack.c.l.b16 %v48
  %v257 = vunpack.c.l.b16 %v49
  %v258 = vunpack.c.l.b16 %v50
  %v259 = vunpack.c.l.b16 %v51
  %v260 = vunpack.c.l.b16 %v52
  %v261 = vunpack.c.l.b16 %v53
  %v262 = vunpack.c.l.b16 %v54
  %v263 = vunpack.c.l.b16 %v55
  %v264 = vunpack.c.l.b16 %v56
  %v265 = vunpack.c.l.b16 %v57
  %v266 = vunpack.c.l.b16 %v58
  %v267 = vunpack.c.l.b16 %v59
  %v268 = vunpack.c.l.b16 %v60
  %v269 = vunpack.c.l.b16 %v61
  %v270 = vunpack.c.l.b16 %v62
  %v271 = vunpack.c.l.b16 %v63
  %v272 = vunpack.c.l.b16 %v64
  %v273 = vunpack.c.l.b16 %v65
  %v274 = vunpack.c.l.b16 %v66
  %v275 = vunpack.c.l.b16 %v67
  %v276 = vunpack.c.l.b16 %v68
  %v277 = vunpack.c.l.b16 %v69
  %v278 = vunpack.c.l.b16 %v70
  %v279 = vunpack.c.l.b16 %v71
  %v280 = vunpack.c.l.b16 %v72
  %v281 = vunpack.c.l.b16 %v73
  %v282 = vunpack.c.l.b16 %v74
  %v283 = vunpack.c.l.b16 %v75
  %v284 = vunpack.c.l.b16 %v76
  %v285 = vunpack.c.l.b16 %v77
  %v286 = vunpack.c.l.b16 %v78
  %v287 = vunpack.c.l.b16 %v79
  %v288 = vunpack.c.l.b16 %v80
  %v289 = vunpack.c.l.b16 %v81
  %v290 = vunpack.c.l.b16 %v82
  %v291 = vunpack.c.l.b16 %v83
  %v292 = vunpack.c.l.b16 %v84
  %v293 = vunpack.c.l.b16 %v85
  %v294 = vunpack.c.l.b16 %v86
  %v295 = vunpack.c.l.b16 %v87
  %v296 = vunpack.c.l.b16 %v88
  %v297 = vunpack.c.l.b16 %v89
  %v298 = vunpack.c.l.b16 %v90
  %v299 = vunpack.c.l.b16 %v91
  %v300 = vpack.c.b16 %v237, %v236
  %v301 = vpack.c.b16 %v239, %v238
  %v302 = vpack.c.b16 %v241, %v240
  %v303 = vpack.c.b16 %v243, %v242
  %v304 = vpack.c.b16 %v245, %v244
  %v305 = vpack.c.b16 %v247, %v246
  %v306 = vpack.c.b16 %v249, %v248
  %v307 = vpack.c.b16 %v251, %v250
  %v308 = vpack.c.b16 %v253, %v252
  %v309 = vpack.c.b16 %v255, %v254
  %v310 = vpack.c.b16 %v257, %v256
  %v311 = vpack.c.b16 %v259, %v258
  %v312 = vpack.c.b16 %v261, %v260
  %v313 = vpack.c.b16 %v263, %v262
  %v314 = vpack.c.b16 %v265, %v264
  %v315 = vpack.c.b16 %v267, %v266
  %v316 = vpack.c.b16 %v269, %v268
  %v317 = vpack.c.b16 %v271, %v270
  %v318 = vpack.c.b16 %v273, %v272
  %v319 = vpack.c.b16 %v275, %v274
  %v320 = vpack.c.b16 %v277, %v276
  %v321 = vpack.c.b16 %v279, %v278
  %v322 = vpack.c.b16 %v281, %v280
  %v323 = vpack.c.b16 %v283, %v282
  %v324 = vpack.c.b16 %v285, %v284
  %v325 = vpack.c.b16 %v287, %v286
  %v326 = vpack.c.b16 %v289, %v288
  %v327 = vpack.c.b16 %v291, %v290
  %v328 = vpack.c.b16 %v293, %v292
  %v329 = vpack.c.b16 %v295, %v294
  %v330 = vpack.c.b16 %v297, %v296
  %v331 = vpack.c.b16 %v299, %v298
  %364 = vmatprep.subr.bf16.mxu0 0
  %365 = vmatpush1.bf16.msra.mxu0 %v300
  %366 = vmatprep.subr.bf16.mxu0 0
  %367 = vmatpush1.bf16.msra.mxu0 %v301
  %368 = vmatprep.subr.bf16.mxu0 0
  %369 = vmatpush1.bf16.msra.mxu0 %v302
  %370 = vmatprep.subr.bf16.mxu0 0
  %371 = vmatpush1.bf16.msra.mxu0 %v303
  %372 = vmatprep.subr.bf16.mxu0 0
  %373 = vmatpush1.bf16.msra.mxu0 %v304
  %374 = vmatprep.subr.bf16.mxu0 0
  %375 = vmatpush1.bf16.msra.mxu0 %v305
  %376 = vmatprep.subr.bf16.mxu0 0
  %377 = vmatpush1.bf16.msra.mxu0 %v306
  %378 = vmatprep.subr.bf16.mxu0 0
  %379 = vmatpush1.bf16.msra.mxu0 %v307
  %380 = vmatprep.subr.bf16.mxu0 0
  %381 = vmatpush1.bf16.msra.mxu0 %v308
  %382 = vmatprep.subr.bf16.mxu0 0
  %383 = vmatpush1.bf16.msra.mxu0 %v309
  %384 = vmatprep.subr.bf16.mxu0 0
  %385 = vmatpush1.bf16.msra.mxu0 %v310
  %386 = vmatprep.subr.bf16.mxu0 0
  %387 = vmatpush1.bf16.msra.mxu0 %v311
  %388 = vmatprep.subr.bf16.mxu0 0
  %389 = vmatpush1.bf16.msra.mxu0 %v312
  %390 = vmatprep.subr.bf16.mxu0 0
  %391 = vmatpush1.bf16.msra.mxu0 %v313
  %392 = vmatprep.subr.bf16.mxu0 0
  %393 = vmatpush1.bf16.msra.mxu0 %v314
  %394 = vmatprep.subr.bf16.mxu0 0
  %395 = vmatpush1.bf16.msra.mxu0 %v315
  %396 = vmatprep.mubr.bf16.mxu0 %v141
  %397 = vmatmul.mubr.bf16.gmra.mrb[0].mxu0 %v140
  %v398 = vpop.f32.mrb[0].mxu0
  %v399 = vadd.f32 0.0, %v398
  %v400 = vpop.f32.mrb[0].mxu0
  %v401 = vpop.f32.mrb[0].mxu0
  %v402 = vadd.f32 0.0, %v401
  %v403 = vpop.f32.mrb[0].mxu0
  %404 = vmatprep.mubr.bf16.mxu0 %v145
  %405 = vmatmul.mubr.bf16.gmra.mrb[0].mxu0 %v144
  %v406 = vpop.f32.mrb[0].mxu0
  %v407 = vadd.f32 0.0, %v406
  %v408 = vpop.f32.mrb[0].mxu0
  %v409 = vpop.f32.mrb[0].mxu0
  %v410 = vadd.f32 0.0, %v409
  %v411 = vpop.f32.mrb[0].mxu0
  %412 = vmatprep.mubr.bf16.mxu0 %v149
  %413 = vmatmul.mubr.bf16.gmra.mrb[0].mxu0 %v148
  %v414 = vpop.f32.mrb[0].mxu0
  %v415 = vadd.f32 0.0, %v414
  %v416 = vpop.f32.mrb[0].mxu0
  %v417 = vpop.f32.mrb[0].mxu0
  %v418 = vadd.f32 0.0, %v417
  %v419 = vpop.f32.mrb[0].mxu0
  %420 = vmatprep.mubr.bf16.mxu0 %v153
  %421 = vmatmul.mubr.bf16.gmra.mrb[0].mxu0 %v152
  %v422 = vpop.f32.mrb[0].mxu0
  %v423 = vadd.f32 0.0, %v422
  %v424 = vpop.f32.mrb[0].mxu0
  %v425 = vpop.f32.mrb[0].mxu0
  %v426 = vadd.f32 0.0, %v425
  %v427 = vpop.f32.mrb[0].mxu0
  %428 = vdwg.mxu0
  %429 = vmatprep.subr.bf16.mxu0 0
  %430 = vmatpush1.bf16.msra.mxu0 %v316
  %431 = vmatprep.subr.bf16.mxu0 0
  %432 = vmatpush1.bf16.msra.mxu0 %v317
  %433 = vmatprep.subr.bf16.mxu0 0
  %434 = vmatpush1.bf16.msra.mxu0 %v318
  %435 = vmatprep.subr.bf16.mxu0 0
  %436 = vmatpush1.bf16.msra.mxu0 %v319
  %437 = vmatprep.subr.bf16.mxu0 0
  %438 = vmatpush1.bf16.msra.mxu0 %v320
  %439 = vmatprep.subr.bf16.mxu0 0
  %440 = vmatpush1.bf16.msra.mxu0 %v321
  %441 = vmatprep.subr.bf16.mxu0 0
  %442 = vmatpush1.bf16.msra.mxu0 %v322
  %443 = vmatprep.subr.bf16.mxu0 0
  %444 = vmatpush1.bf16.msra.mxu0 %v323
  %445 = vmatprep.subr.bf16.mxu0 0
  %446 = vmatpush1.bf16.msra.mxu0 %v324
  %447 = vmatprep.subr.bf16.mxu0 0
  %448 = vmatpush1.bf16.msra.mxu0 %v325
  %449 = vmatprep.subr.bf16.mxu0 0
  %450 = vmatpush1.bf16.msra.mxu0 %v326
  %451 = vmatprep.subr.bf16.mxu0 0
  %452 = vmatpush1.bf16.msra.mxu0 %v327
  %453 = vmatprep.subr.bf16.mxu0 0
  %454 = vmatpush1.bf16.msra.mxu0 %v328
  %455 = vmatprep.subr.bf16.mxu0 0
  %456 = vmatpush1.bf16.msra.mxu0 %v329
  %457 = vmatprep.subr.bf16.mxu0 0
  %458 = vmatpush1.bf16.msra.mxu0 %v330
  %459 = vmatprep.subr.bf16.mxu0 0
  %460 = vmatpush1.bf16.msra.mxu0 %v331
  %461 = vmatprep.mubr.bf16.mxu0 %v143
  %462 = vmatmul.mubr.bf16.gmra.mrb[0].mxu0 %v142
  %v463 = vpop.f32.mrb[0].mxu0
  %v464 = vadd.f32 %v399, %v463
  %v465 = vpop.f32.mrb[0].mxu0
  %v466 = vpop.f32.mrb[0].mxu0
  %v467 = vadd.f32 %v402, %v466
  %v468 = vpop.f32.mrb[0].mxu0
  %469 = vmatprep.mubr.bf16.mxu0 %v147
  %470 = vmatmul.mubr.bf16.gmra.mrb[0].mxu0 %v146
  %v471 = vpop.f32.mrb[0].mxu0
  %v472 = vadd.f32 %v407, %v471
  %v473 = vpop.f32.mrb[0].mxu0
  %v474 = vpop.f32.mrb[0].mxu0
  %v475 = vadd.f32 %v410, %v474
  %v476 = vpop.f32.mrb[0].mxu0
  %477 = vmatprep.mubr.bf16.mxu0 %v151
  %478 = vmatmul.mubr.bf16.gmra.mrb[0].mxu0 %v150
  %v479 = vpop.f32.mrb[0].mxu0
  %v480 = vadd.f32 %v415, %v479
  %v481 = vpop.f32.mrb[0].mxu0
  %v482 = vpop.f32.mrb[0].mxu0
  %v483 = vadd.f32 %v418, %v482
  %v484 = vpop.f32.mrb[0].mxu0
  %485 = vmatprep.mubr.bf16.mxu0 %v155
  %486 = vmatmul.mubr.bf16.gmra.mrb[0].mxu0 %v154
  %v487 = vpop.f32.mrb[0].mxu0
  %v488 = vadd.f32 %v423, %v487
  %v489 = vpop.f32.mrb[0].mxu0
  %v490 = vpop.f32.mrb[0].mxu0
  %v491 = vadd.f32 %v426, %v490
  %v492 = vpop.f32.mrb[0].mxu0
  %493 = vdwg.mxu0
  %vm494 = vcmp.gt.f32.partialorder %v464, 0.0
  %vm495 = vcmp.gt.f32.partialorder %v467, 0.0
  %vm496 = vcmp.gt.f32.partialorder %v472, 0.0
  %vm497 = vcmp.gt.f32.partialorder %v475, 0.0
  %vm498 = vcmp.gt.f32.partialorder %v480, 0.0
  %vm499 = vcmp.gt.f32.partialorder %v483, 0.0
  %vm500 = vcmp.gt.f32.partialorder %v488, 0.0
  %vm501 = vcmp.gt.f32.partialorder %v491, 0.0
  %v502 = vmul.f32 %v464, 1.442695
  %v503 = vpow.pop %v502
  %v504 = vmul.f32 %v467, 1.442695
  %v505 = vpow.pop %v504
  %v506 = vmul.f32 %v472, 1.442695
  %v507 = vpow.pop %v506
  %v508 = vmul.f32 %v475, 1.442695
  %v509 = vpow.pop %v508
  %v510 = vmul.f32 %v480, 1.442695
  %v511 = vpow.pop %v510
  %v512 = vmul.f32 %v483, 1.442695
  %v513 = vpow.pop %v512
  %v514 = vmul.f32 %v488, 1.442695
  %v515 = vpow.pop %v514
  %v516 = vmul.f32 %v491, 1.442695
  %v517 = vpow.pop %v516
  %v518 = vsub.f32 %v503, 1.0
  %v519 = vsub.f32 %v505, 1.0
  %v520 = vsub.f32 %v507, 1.0
  %v521 = vsub.f32 %v509, 1.0
  %v522 = vsub.f32 %v511, 1.0
  %v523 = vsub.f32 %v513, 1.0
  %v524 = vsub.f32 %v515, 1.0
  %v525 = vsub.f32 %v517, 1.0
  %v526 = vsel %vm494, %v464, %v518
  %v527 = vsel %vm495, %v467, %v519
  %v528 = vsel %vm496, %v472, %v520
  %v529 = vsel %vm497, %v475, %v521
  %v530 = vsel %vm498, %v480, %v522
  %v531 = vsel %vm499, %v483, %v523
  %v532 = vsel %vm500, %v488, %v524
  %v533 = vsel %vm501, %v491, %v525
  %v534 = vpack.c.bf16 %v527, %v526
  %v535 = vpack.c.bf16 %v529, %v528
  %v536 = vpack.c.bf16 %v531, %v530
  %v537 = vpack.c.bf16 %v533, %v532
  %v542 = vunpack.c.l.b16 %v534
  %v543 = vunpack.c.h.b16 %v534
  %v544 = vunpack.c.l.b16 %v535
  %v545 = vunpack.c.h.b16 %v535
  %v546 = vunpack.c.l.b16 %v536
  %v547 = vunpack.c.h.b16 %v536
  %v548 = vunpack.c.l.b16 %v537
  %v549 = vunpack.c.h.b16 %v537
  %v550 = vpack.c.b16 %v542, %v542
  %v551 = vpack.c.b16 %v543, %v543
  %v552 = vpack.c.b16 %v544, %v544
  %v553 = vpack.c.b16 %v545, %v545
  %v554 = vpack.c.b16 %v546, %v546
  %v555 = vpack.c.b16 %v547, %v547
  %v556 = vpack.c.b16 %v548, %v548
  %v557 = vpack.c.b16 %v549, %v549
  %566 = vst [vmem:[%s2] sm:$0xf] %v550
  %567 = vst [vmem:[%s2 + $0x4] sm:$0xf] %v551
  %568 = vst [vmem:[%s2 + $0x8] sm:$0xf] %v552
  %569 = vst [vmem:[%s2 + $0xc] sm:$0xf] %v553
  %570 = vst [vmem:[%s2 + $0x10] sm:$0xf] %v554
  %571 = vst [vmem:[%s2 + $0x14] sm:$0xf] %v555
  %572 = vst [vmem:[%s2 + $0x18] sm:$0xf] %v556
  %573 = vst [vmem:[%s2 + $0x1c] sm:$0xf] %v557
  // Predicated region
  $region10: #{model_forward.10} parent=0 // pred_check
    _
  $region11: #{model_forward.10} parent=0 // pred_check_branch
    %575 = sbr.rel (0) target = $region13
  $region12: #{model_forward.10} parent=0 // pred_region
    _
  $region13: #{model_forward.10} parent=0 // pred_fallthru
    _
  // Predicated region
  $region14: #{model_forward.10} parent=0 // pred_check
    _
  $region15: #{model_forward.10} parent=0 // pred_check_branch
    %577 = sbr.rel (0) target = $region17
  $region16: #{model_forward.10} parent=0 // pred_region
    _
  $region17: #{model_forward.10} parent=0 // pred_fallthru
    _

// kernel: model_forward.11
$region0: #{model_forward.11}
  #allocation0 [shape = 'u32[]', space=smem, size = 0x4, offset = 0x4, fixed_abs, tag = 'smem constant byte address 0x4 - core index']
  #allocation1 [shape = 'u32[144,128]{1,0:T(1,128)}', space=vmem, size = 0x12000, scoped, tag = 'internal scratch']
  %s0 = inlined_call_operand.vmem [shape: bf16[6,1024], index: 0, kind: input, shape index: {}]
  %s1 = inlined_call_operand.vmem [shape: bf16[1024,128], index: 1, kind: input, shape index: {}]
  %s2 = inlined_call_operand.vmem [shape: f32[6,128], index: 2, kind: output, shape index: {}]
  %s3 = sld [smem:[#allocation0]]
  $region18: #{model_forward.11} parent=0
    _
  %s5 = ssub.s32 1, %s3
  %s6 = scalar_select 0, %s5, %s3
  // Predicated region
  $region2: #{model_forward.11} parent=0 // pred_check
    _
  $region3: #{model_forward.11} parent=0 // pred_check_branch
    %8 = sbr.rel (0) target = $region5
  $region4: #{model_forward.11} parent=0 // pred_region
    _
  $region5: #{model_forward.11} parent=0 // pred_fallthru
    _
  // Predicated region
  $region6: #{model_forward.11} parent=0 // pred_check
    _
  $region7: #{model_forward.11} parent=0 // pred_check_branch
    %10 = sbr.rel (0) target = $region9
  $region8: #{model_forward.11} parent=0 // pred_region
    _
  $region9: #{model_forward.11} parent=0 // pred_fallthru
    _
  %v12 = vld [vmem:[%s0] sm:$0x77]
  %v13 = vld [vmem:[%s0 + $0x8] sm:$0x77]
  %v14 = vld [vmem:[%s0 + $0x10] sm:$0x77]
  %v15 = vld [vmem:[%s0 + $0x18] sm:$0x77]
  %v16 = vld [vmem:[%s1] sm:$0xf]
  %v17 = vld [vmem:[%s1 + $0x4] sm:$0xf]
  %v18 = vld [vmem:[%s1 + $0x8] sm:$0xf]
  %v19 = vld [vmem:[%s1 + $0xc] sm:$0xf]
  %v20 = vld [vmem:[%s1 + $0x10] sm:$0xf]
  %v21 = vld [vmem:[%s1 + $0x14] sm:$0xf]
  %v22 = vld [vmem:[%s1 + $0x18] sm:$0xf]
  %v23 = vld [vmem:[%s1 + $0x1c] sm:$0xf]
  %v24 = vld [vmem:[%s1 + $0x20] sm:$0xf]
  %v25 = vld [vmem:[%s1 + $0x24] sm:$0xf]
  %v26 = vld [vmem:[%s1 + $0x28] sm:$0xf]
  %v27 = vld [vmem:[%s1 + $0x2c] sm:$0xf]
  %v28 = vld [vmem:[%s1 + $0x30] sm:$0xf]
  %v29 = vld [vmem:[%s1 + $0x34] sm:$0xf]
  %v30 = vld [vmem:[%s1 + $0x38] sm:$0xf]
  %v31 = vld [vmem:[%s1 + $0x3c] sm:$0xf]
  %v32 = vld [vmem:[%s1 + $0x40] sm:$0xf]
  %v33 = vld [vmem:[%s1 + $0x44] sm:$0xf]
  %v34 = vld [vmem:[%s1 + $0x48] sm:$0xf]
  %v35 = vld [vmem:[%s1 + $0x4c] sm:$0xf]
  %v36 = vld [vmem:[%s1 + $0x50] sm:$0xf]
  %v37 = vld [vmem:[%s1 + $0x54] sm:$0xf]
  %v38 = vld [vmem:[%s1 + $0x58] sm:$0xf]
  %v39 = vld [vmem:[%s1 + $0x5c] sm:$0xf]
  %v40 = vld [vmem:[%s1 + $0x60] sm:$0xf]
  %v41 = vld [vmem:[%s1 + $0x64] sm:$0xf]
  %v42 = vld [vmem:[%s1 + $0x68] sm:$0xf]
  %v43 = vld [vmem:[%s1 + $0x6c] sm:$0xf]
  %v44 = vld [vmem:[%s1 + $0x70] sm:$0xf]
  %v45 = vld [vmem:[%s1 + $0x74] sm:$0xf]
  %v46 = vld [vmem:[%s1 + $0x78] sm:$0xf]
  %v47 = vld [vmem:[%s1 + $0x7c] sm:$0xf]
  %v48 = vld [vmem:[%s1 + $0x80] sm:$0xf]
  %v49 = vld [vmem:[%s1 + $0x84] sm:$0xf]
  %v50 = vld [vmem:[%s1 + $0x88] sm:$0xf]
  %v51 = vld [vmem:[%s1 + $0x8c] sm:$0xf]
  %v52 = vld [vmem:[%s1 + $0x90] sm:$0xf]
  %v53 = vld [vmem:[%s1 + $0x94] sm:$0xf]
  %v54 = vld [vmem:[%s1 + $0x98] sm:$0xf]
  %v55 = vld [vmem:[%s1 + $0x9c] sm:$0xf]
  %v56 = vld [vmem:[%s1 + $0xa0] sm:$0xf]
  %v57 = vld [vmem:[%s1 + $0xa4] sm:$0xf]
  %v58 = vld [vmem:[%s1 + $0xa8] sm:$0xf]
  %v59 = vld [vmem:[%s1 + $0xac] sm:$0xf]
  %v60 = vld [vmem:[%s1 + $0xb0] sm:$0xf]
  %v61 = vld [vmem:[%s1 + $0xb4] sm:$0xf]
  %v62 = vld [vmem:[%s1 + $0xb8] sm:$0xf]
  %v63 = vld [vmem:[%s1 + $0xbc] sm:$0xf]
  %v64 = vld [vmem:[%s1 + $0xc0] sm:$0xf]
  %v65 = vld [vmem:[%s1 + $0xc4] sm:$0xf]
  %v66 = vld [vmem:[%s1 + $0xc8] sm:$0xf]
  %v67 = vld [vmem:[%s1 + $0xcc] sm:$0xf]
  %v68 = vld [vmem:[%s1 + $0xd0] sm:$0xf]
  %v69 = vld [vmem:[%s1 + $0xd4] sm:$0xf]
  %v70 = vld [vmem:[%s1 + $0xd8] sm:$0xf]
  %v71 = vld [vmem:[%s1 + $0xdc] sm:$0xf]
  %v72 = vld [vmem:[%s1 + $0xe0] sm:$0xf]
  %v73 = vld [vmem:[%s1 + $0xe4] sm:$0xf]
  %v74 = vld [vmem:[%s1 + $0xe8] sm:$0xf]
  %v75 = vld [vmem:[%s1 + $0xec] sm:$0xf]
  %v76 = vld [vmem:[%s1 + $0xf0] sm:$0xf]
  %v77 = vld [vmem:[%s1 + $0xf4] sm:$0xf]
  %v78 = vld [vmem:[%s1 + $0xf8] sm:$0xf]
  %v79 = vld [vmem:[%s1 + $0xfc] sm:$0xf]
  %v80 = vld [vmem:[%s1 + $0x100] sm:$0xf]
  %v81 = vld [vmem:[%s1 + $0x104] sm:$0xf]
  %v82 = vld [vmem:[%s1 + $0x108] sm:$0xf]
  %v83 = vld [vmem:[%s1 + $0x10c] sm:$0xf]
  %v84 = vld [vmem:[%s1 + $0x110] sm:$0xf]
  %v85 = vld [vmem:[%s1 + $0x114] sm:$0xf]
  %v86 = vld [vmem:[%s1 + $0x118] sm:$0xf]
  %v87 = vld [vmem:[%s1 + $0x11c] sm:$0xf]
  %v88 = vld [vmem:[%s1 + $0x120] sm:$0xf]
  %v89 = vld [vmem:[%s1 + $0x124] sm:$0xf]
  %v90 = vld [vmem:[%s1 + $0x128] sm:$0xf]
  %v91 = vld [vmem:[%s1 + $0x12c] sm:$0xf]
  %v92 = vld [vmem:[%s1 + $0x130] sm:$0xf]
  %v93 = vld [vmem:[%s1 + $0x134] sm:$0xf]
  %v94 = vld [vmem:[%s1 + $0x138] sm:$0xf]
  %v95 = vld [vmem:[%s1 + $0x13c] sm:$0xf]
  %v96 = vld [vmem:[%s1 + $0x140] sm:$0xf]
  %v97 = vld [vmem:[%s1 + $0x144] sm:$0xf]
  %v98 = vld [vmem:[%s1 + $0x148] sm:$0xf]
  %v99 = vld [vmem:[%s1 + $0x14c] sm:$0xf]
  %v100 = vld [vmem:[%s1 + $0x150] sm:$0xf]
  %v101 = vld [vmem:[%s1 + $0x154] sm:$0xf]
  %v102 = vld [vmem:[%s1 + $0x158] sm:$0xf]
  %v103 = vld [vmem:[%s1 + $0x15c] sm:$0xf]
  %v104 = vld [vmem:[%s1 + $0x160] sm:$0xf]
  %v105 = vld [vmem:[%s1 + $0x164] sm:$0xf]
  %v106 = vld [vmem:[%s1 + $0x168] sm:$0xf]
  %v107 = vld [vmem:[%s1 + $0x16c] sm:$0xf]
  %v108 = vld [vmem:[%s1 + $0x170] sm:$0xf]
  %v109 = vld [vmem:[%s1 + $0x174] sm:$0xf]
  %v110 = vld [vmem:[%s1 + $0x178] sm:$0xf]
  %v111 = vld [vmem:[%s1 + $0x17c] sm:$0xf]
  %v112 = vld [vmem:[%s1 + $0x180] sm:$0xf]
  %v113 = vld [vmem:[%s1 + $0x184] sm:$0xf]
  %v114 = vld [vmem:[%s1 + $0x188] sm:$0xf]
  %v115 = vld [vmem:[%s1 + $0x18c] sm:$0xf]
  %v116 = vld [vmem:[%s1 + $0x190] sm:$0xf]
  %v117 = vld [vmem:[%s1 + $0x194] sm:$0xf]
  %v118 = vld [vmem:[%s1 + $0x198] sm:$0xf]
  %v119 = vld [vmem:[%s1 + $0x19c] sm:$0xf]
  %v120 = vld [vmem:[%s1 + $0x1a0] sm:$0xf]
  %v121 = vld [vmem:[%s1 + $0x1a4] sm:$0xf]
  %v122 = vld [vmem:[%s1 + $0x1a8] sm:$0xf]
  %v123 = vld [vmem:[%s1 + $0x1ac] sm:$0xf]
  %v124 = vld [vmem:[%s1 + $0x1b0] sm:$0xf]
  %v125 = vld [vmem:[%s1 + $0x1b4] sm:$0xf]
  %v126 = vld [vmem:[%s1 + $0x1b8] sm:$0xf]
  %v127 = vld [vmem:[%s1 + $0x1bc] sm:$0xf]
  %v128 = vld [vmem:[%s1 + $0x1c0] sm:$0xf]
  %v129 = vld [vmem:[%s1 + $0x1c4] sm:$0xf]
  %v130 = vld [vmem:[%s1 + $0x1c8] sm:$0xf]
  %v131 = vld [vmem:[%s1 + $0x1cc] sm:$0xf]
  %v132 = vld [vmem:[%s1 + $0x1d0] sm:$0xf]
  %v133 = vld [vmem:[%s1 + $0x1d4] sm:$0xf]
  %v134 = vld [vmem:[%s1 + $0x1d8] sm:$0xf]
  %v135 = vld [vmem:[%s1 + $0x1dc] sm:$0xf]
  %v136 = vld [vmem:[%s1 + $0x1e0] sm:$0xf]
  %v137 = vld [vmem:[%s1 + $0x1e4] sm:$0xf]
  %v138 = vld [vmem:[%s1 + $0x1e8] sm:$0xf]
  %v139 = vld [vmem:[%s1 + $0x1ec] sm:$0xf]
  %v140 = vld [vmem:[%s1 + $0x1f0] sm:$0xf]
  %v141 = vld [vmem:[%s1 + $0x1f4] sm:$0xf]
  %v142 = vld [vmem:[%s1 + $0x1f8] sm:$0xf]
  %v143 = vld [vmem:[%s1 + $0x1fc] sm:$0xf]
  %v148 = vunpack.c.l.b16 %v12
  %v149 = vunpack.c.h.b16 %v12
  %v150 = vunpack.c.l.b16 %v13
  %v151 = vunpack.c.h.b16 %v13
  %v152 = vunpack.c.l.b16 %v14
  %v153 = vunpack.c.h.b16 %v14
  %v154 = vunpack.c.l.b16 %v15
  %v155 = vunpack.c.h.b16 %v15
  %v156 = vpack.c.b16 %v148, %v148
  %v157 = vpack.c.b16 %v149, %v149
  %v158 = vpack.c.b16 %v150, %v150
  %v159 = vpack.c.b16 %v151, %v151
  %v160 = vpack.c.b16 %v152, %v152
  %v161 = vpack.c.b16 %v153, %v153
  %v162 = vpack.c.b16 %v154, %v154
  %v163 = vpack.c.b16 %v155, %v155
  %v300 = vunpack.c.l.b16 %v16
  %v301 = vunpack.c.l.b16 %v17
  %v302 = vunpack.c.l.b16 %v18
  %v303 = vunpack.c.l.b16 %v19
  %v304 = vunpack.c.l.b16 %v20
  %v305 = vunpack.c.l.b16 %v21
  %v306 = vunpack.c.l.b16 %v22
  %v307 = vunpack.c.l.b16 %v23
  %v308 = vunpack.c.l.b16 %v24
  %v309 = vunpack.c.l.b16 %v25
  %v310 = vunpack.c.l.b16 %v26
  %v311 = vunpack.c.l.b16 %v27
  %v312 = vunpack.c.l.b16 %v28
  %v313 = vunpack.c.l.b16 %v29
  %v314 = vunpack.c.l.b16 %v30
  %v315 = vunpack.c.l.b16 %v31
  %v316 = vunpack.c.l.b16 %v32
  %v317 = vunpack.c.l.b16 %v33
  %v318 = vunpack.c.l.b16 %v34
  %v319 = vunpack.c.l.b16 %v35
  %v320 = vunpack.c.l.b16 %v36
  %v321 = vunpack.c.l.b16 %v37
  %v322 = vunpack.c.l.b16 %v38
  %v323 = vunpack.c.l.b16 %v39
  %v324 = vunpack.c.l.b16 %v40
  %v325 = vunpack.c.l.b16 %v41
  %v326 = vunpack.c.l.b16 %v42
  %v327 = vunpack.c.l.b16 %v43
  %v328 = vunpack.c.l.b16 %v44
  %v329 = vunpack.c.l.b16 %v45
  %v330 = vunpack.c.l.b16 %v46
  %v331 = vunpack.c.l.b16 %v47
  %v332 = vunpack.c.l.b16 %v48
  %v333 = vunpack.c.l.b16 %v49
  %v334 = vunpack.c.l.b16 %v50
  %v335 = vunpack.c.l.b16 %v51
  %v336 = vunpack.c.l.b16 %v52
  %v337 = vunpack.c.l.b16 %v53
  %v338 = vunpack.c.l.b16 %v54
  %v339 = vunpack.c.l.b16 %v55
  %v340 = vunpack.c.l.b16 %v56
  %v341 = vunpack.c.l.b16 %v57
  %v342 = vunpack.c.l.b16 %v58
  %v343 = vunpack.c.l.b16 %v59
  %v344 = vunpack.c.l.b16 %v60
  %v345 = vunpack.c.l.b16 %v61
  %v346 = vunpack.c.l.b16 %v62
  %v347 = vunpack.c.l.b16 %v63
  %v348 = vunpack.c.l.b16 %v64
  %v349 = vunpack.c.l.b16 %v65
  %v350 = vunpack.c.l.b16 %v66
  %v351 = vunpack.c.l.b16 %v67
  %v352 = vunpack.c.l.b16 %v68
  %v353 = vunpack.c.l.b16 %v69
  %v354 = vunpack.c.l.b16 %v70
  %v355 = vunpack.c.l.b16 %v71
  %v356 = vunpack.c.l.b16 %v72
  %v357 = vunpack.c.l.b16 %v73
  %v358 = vunpack.c.l.b16 %v74
  %v359 = vunpack.c.l.b16 %v75
  %v360 = vunpack.c.l.b16 %v76
  %v361 = vunpack.c.l.b16 %v77
  %v362 = vunpack.c.l.b16 %v78
  %v363 = vunpack.c.l.b16 %v79
  %v364 = vunpack.c.l.b16 %v80
  %v365 = vunpack.c.l.b16 %v81
  %v366 = vunpack.c.l.b16 %v82
  %v367 = vunpack.c.l.b16 %v83
  %v368 = vunpack.c.l.b16 %v84
  %v369 = vunpack.c.l.b16 %v85
  %v370 = vunpack.c.l.b16 %v86
  %v371 = vunpack.c.l.b16 %v87
  %v372 = vunpack.c.l.b16 %v88
  %v373 = vunpack.c.l.b16 %v89
  %v374 = vunpack.c.l.b16 %v90
  %v375 = vunpack.c.l.b16 %v91
  %v376 = vunpack.c.l.b16 %v92
  %v377 = vunpack.c.l.b16 %v93
  %v378 = vunpack.c.l.b16 %v94
  %v379 = vunpack.c.l.b16 %v95
  %v380 = vunpack.c.l.b16 %v96
  %v381 = vunpack.c.l.b16 %v97
  %v382 = vunpack.c.l.b16 %v98
  %v383 = vunpack.c.l.b16 %v99
  %v384 = vunpack.c.l.b16 %v100
  %v385 = vunpack.c.l.b16 %v101
  %v386 = vunpack.c.l.b16 %v102
  %v387 = vunpack.c.l.b16 %v103
  %v388 = vunpack.c.l.b16 %v104
  %v389 = vunpack.c.l.b16 %v105
  %v390 = vunpack.c.l.b16 %v106
  %v391 = vunpack.c.l.b16 %v107
  %v392 = vunpack.c.l.b16 %v108
  %v393 = vunpack.c.l.b16 %v109
  %v394 = vunpack.c.l.b16 %v110
  %v395 = vunpack.c.l.b16 %v111
  %v396 = vunpack.c.l.b16 %v112
  %v397 = vunpack.c.l.b16 %v113
  %v398 = vunpack.c.l.b16 %v114
  %v399 = vunpack.c.l.b16 %v115
  %v400 = vunpack.c.l.b16 %v116
  %v401 = vunpack.c.l.b16 %v117
  %v402 = vunpack.c.l.b16 %v118
  %v403 = vunpack.c.l.b16 %v119
  %v404 = vunpack.c.l.b16 %v120
  %v405 = vunpack.c.l.b16 %v121
  %v406 = vunpack.c.l.b16 %v122
  %v407 = vunpack.c.l.b16 %v123
  %v408 = vunpack.c.l.b16 %v124
  %v409 = vunpack.c.l.b16 %v125
  %v410 = vunpack.c.l.b16 %v126
  %v411 = vunpack.c.l.b16 %v127
  %v412 = vunpack.c.l.b16 %v128
  %v413 = vunpack.c.l.b16 %v129
  %v414 = vunpack.c.l.b16 %v130
  %v415 = vunpack.c.l.b16 %v131
  %v416 = vunpack.c.l.b16 %v132
  %v417 = vunpack.c.l.b16 %v133
  %v418 = vunpack.c.l.b16 %v134
  %v419 = vunpack.c.l.b16 %v135
  %v420 = vunpack.c.l.b16 %v136
  %v421 = vunpack.c.l.b16 %v137
  %v422 = vunpack.c.l.b16 %v138
  %v423 = vunpack.c.l.b16 %v139
  %v424 = vunpack.c.l.b16 %v140
  %v425 = vunpack.c.l.b16 %v141
  %v426 = vunpack.c.l.b16 %v142
  %v427 = vunpack.c.l.b16 %v143
  %v428 = vpack.c.b16 %v301, %v300
  %v429 = vpack.c.b16 %v303, %v302
  %v430 = vpack.c.b16 %v305, %v304
  %v431 = vpack.c.b16 %v307, %v306
  %v432 = vpack.c.b16 %v309, %v308
  %v433 = vpack.c.b16 %v311, %v310
  %v434 = vpack.c.b16 %v313, %v312
  %v435 = vpack.c.b16 %v315, %v314
  %v436 = vpack.c.b16 %v317, %v316
  %v437 = vpack.c.b16 %v319, %v318
  %v438 = vpack.c.b16 %v321, %v320
  %v439 = vpack.c.b16 %v323, %v322
  %v440 = vpack.c.b16 %v325, %v324
  %v441 = vpack.c.b16 %v327, %v326
  %v442 = vpack.c.b16 %v329, %v328
  %v443 = vpack.c.b16 %v331, %v330
  %v444 = vpack.c.b16 %v333, %v332
  %v445 = vpack.c.b16 %v335, %v334
  %v446 = vpack.c.b16 %v337, %v336
  %v447 = vpack.c.b16 %v339, %v338
  %v448 = vpack.c.b16 %v341, %v340
  %v449 = vpack.c.b16 %v343, %v342
  %v450 = vpack.c.b16 %v345, %v344
  %v451 = vpack.c.b16 %v347, %v346
  %v452 = vpack.c.b16 %v349, %v348
  %v453 = vpack.c.b16 %v351, %v350
  %v454 = vpack.c.b16 %v353, %v352
  %v455 = vpack.c.b16 %v355, %v354
  %v456 = vpack.c.b16 %v357, %v356
  %v457 = vpack.c.b16 %v359, %v358
  %v458 = vpack.c.b16 %v361, %v360
  %v459 = vpack.c.b16 %v363, %v362
  %v460 = vpack.c.b16 %v365, %v364
  %v461 = vpack.c.b16 %v367, %v366
  %v462 = vpack.c.b16 %v369, %v368
  %v463 = vpack.c.b16 %v371, %v370
  %v464 = vpack.c.b16 %v373, %v372
  %v465 = vpack.c.b16 %v375, %v374
  %v466 = vpack.c.b16 %v377, %v376
  %v467 = vpack.c.b16 %v379, %v378
  %v468 = vpack.c.b16 %v381, %v380
  %v469 = vpack.c.b16 %v383, %v382
  %v470 = vpack.c.b16 %v385, %v384
  %v471 = vpack.c.b16 %v387, %v386
  %v472 = vpack.c.b16 %v389, %v388
  %v473 = vpack.c.b16 %v391, %v390
  %v474 = vpack.c.b16 %v393, %v392
  %v475 = vpack.c.b16 %v395, %v394
  %v476 = vpack.c.b16 %v397, %v396
  %v477 = vpack.c.b16 %v399, %v398
  %v478 = vpack.c.b16 %v401, %v400
  %v479 = vpack.c.b16 %v403, %v402
  %v480 = vpack.c.b16 %v405, %v404
  %v481 = vpack.c.b16 %v407, %v406
  %v482 = vpack.c.b16 %v409, %v408
  %v483 = vpack.c.b16 %v411, %v410
  %v484 = vpack.c.b16 %v413, %v412
  %v485 = vpack.c.b16 %v415, %v414
  %v486 = vpack.c.b16 %v417, %v416
  %v487 = vpack.c.b16 %v419, %v418
  %v488 = vpack.c.b16 %v421, %v420
  %v489 = vpack.c.b16 %v423, %v422
  %v490 = vpack.c.b16 %v425, %v424
  %v491 = vpack.c.b16 %v427, %v426
  %556 = vmatprep.subr.bf16.mxu0 0
  %557 = vmatpush1.bf16.msra.mxu0 %v428
  %558 = vmatprep.subr.bf16.mxu0 0
  %559 = vmatpush1.bf16.msra.mxu0 %v429
  %560 = vmatprep.subr.bf16.mxu0 0
  %561 = vmatpush1.bf16.msra.mxu0 %v430
  %562 = vmatprep.subr.bf16.mxu0 0
  %563 = vmatpush1.bf16.msra.mxu0 %v431
  %564 = vmatprep.subr.bf16.mxu0 0
  %565 = vmatpush1.bf16.msra.mxu0 %v432
  %566 = vmatprep.subr.bf16.mxu0 0
  %567 = vmatpush1.bf16.msra.mxu0 %v433
  %568 = vmatprep.subr.bf16.mxu0 0
  %569 = vmatpush1.bf16.msra.mxu0 %v434
  %570 = vmatprep.subr.bf16.mxu0 0
  %571 = vmatpush1.bf16.msra.mxu0 %v435
  %572 = vmatprep.subr.bf16.mxu0 0
  %573 = vmatpush1.bf16.msra.mxu0 %v436
  %574 = vmatprep.subr.bf16.mxu0 0
  %575 = vmatpush1.bf16.msra.mxu0 %v437
  %576 = vmatprep.subr.bf16.mxu0 0
  %577 = vmatpush1.bf16.msra.mxu0 %v438
  %578 = vmatprep.subr.bf16.mxu0 0
  %579 = vmatpush1.bf16.msra.mxu0 %v439
  %580 = vmatprep.subr.bf16.mxu0 0
  %581 = vmatpush1.bf16.msra.mxu0 %v440
  %582 = vmatprep.subr.bf16.mxu0 0
  %583 = vmatpush1.bf16.msra.mxu0 %v441
  %584 = vmatprep.subr.bf16.mxu0 0
  %585 = vmatpush1.bf16.msra.mxu0 %v442
  %586 = vmatprep.subr.bf16.mxu0 0
  %587 = vmatpush1.bf16.msra.mxu0 %v443
  %588 = vmatprep.mubr.bf16.mxu0 %v157
  %589 = vmatmul.mubr.bf16.gmra.mrb[0].mxu0 %v156
  %v590 = vpop.f32.mrb[0].mxu0
  %v591 = vadd.f32 0.0, %v590
  %v592 = vpop.f32.mrb[0].mxu0
  %v593 = vpop.f32.mrb[0].mxu0
  %v594 = vpop.f32.mrb[0].mxu0
  %595 = vdwg.mxu0
  %596 = vmatprep.subr.bf16.mxu0 0
  %597 = vmatpush1.bf16.msra.mxu0 %v444
  %598 = vmatprep.subr.bf16.mxu0 0
  %599 = vmatpush1.bf16.msra.mxu0 %v445
  %600 = vmatprep.subr.bf16.mxu0 0
  %601 = vmatpush1.bf16.msra.mxu0 %v446
  %602 = vmatprep.subr.bf16.mxu0 0
  %603 = vmatpush1.bf16.msra.mxu0 %v447
  %604 = vmatprep.subr.bf16.mxu0 0
  %605 = vmatpush1.bf16.msra.mxu0 %v448
  %606 = vmatprep.subr.bf16.mxu0 0
  %607 = vmatpush1.bf16.msra.mxu0 %v449
  %608 = vmatprep.subr.bf16.mxu0 0
  %609 = vmatpush1.bf16.msra.mxu0 %v450
  %610 = vmatprep.subr.bf16.mxu0 0
  %611 = vmatpush1.bf16.msra.mxu0 %v451
  %612 = vmatprep.subr.bf16.mxu0 0
  %613 = vmatpush1.bf16.msra.mxu0 %v452
  %614 = vmatprep.subr.bf16.mxu0 0
  %615 = vmatpush1.bf16.msra.mxu0 %v453
  %616 = vmatprep.subr.bf16.mxu0 0
  %617 = vmatpush1.bf16.msra.mxu0 %v454
  %618 = vmatprep.subr.bf16.mxu0 0
  %619 = vmatpush1.bf16.msra.mxu0 %v455
  %620 = vmatprep.subr.bf16.mxu0 0
  %621 = vmatpush1.bf16.msra.mxu0 %v456
  %622 = vmatprep.subr.bf16.mxu0 0
  %623 = vmatpush1.bf16.msra.mxu0 %v457
  %624 = vmatprep.subr.bf16.mxu0 0
  %625 = vmatpush1.bf16.msra.mxu0 %v458
  %626 = vmatprep.subr.bf16.mxu0 0
  %627 = vmatpush1.bf16.msra.mxu0 %v459
  %628 = vmatprep.mubr.bf16.mxu0 %v159
  %629 = vmatmul.mubr.bf16.gmra.mrb[0].mxu0 %v158
  %v630 = vpop.f32.mrb[0].mxu0
  %v631 = vadd.f32 %v591, %v630
  %v632 = vpop.f32.mrb[0].mxu0
  %v633 = vpop.f32.mrb[0].mxu0
  %v634 = vpop.f32.mrb[0].mxu0
  %635 = vdwg.mxu0
  %636 = vmatprep.subr.bf16.mxu0 0
  %637 = vmatpush1.bf16.msra.mxu0 %v460
  %638 = vmatprep.subr.bf16.mxu0 0
  %639 = vmatpush1.bf16.msra.mxu0 %v461
  %640 = vmatprep.subr.bf16.mxu0 0
  %641 = vmatpush1.bf16.msra.mxu0 %v462
  %642 = vmatprep.subr.bf16.mxu0 0
  %643 = vmatpush1.bf16.msra.mxu0 %v463
  %644 = vmatprep.subr.bf16.mxu0 0
  %645 = vmatpush1.bf16.msra.mxu0 %v464
  %646 = vmatprep.subr.bf16.mxu0 0
  %647 = vmatpush1.bf16.msra.mxu0 %v465
  %648 = vmatprep.subr.bf16.mxu0 0
  %649 = vmatpush1.bf16.msra.mxu0 %v466
  %650 = vmatprep.subr.bf16.mxu0 0
  %651 = vmatpush1.bf16.msra.mxu0 %v467
  %652 = vmatprep.subr.bf16.mxu0 0
  %653 = vmatpush1.bf16.msra.mxu0 %v468
  %654 = vmatprep.subr.bf16.mxu0 0
  %655 = vmatpush1.bf16.msra.mxu0 %v469
  %656 = vmatprep.subr.bf16.mxu0 0
  %657 = vmatpush1.bf16.msra.mxu0 %v470
  %658 = vmatprep.subr.bf16.mxu0 0
  %659 = vmatpush1.bf16.msra.mxu0 %v471
  %660 = vmatprep.subr.bf16.mxu0 0
  %661 = vmatpush1.bf16.msra.mxu0 %v472
  %662 = vmatprep.subr.bf16.mxu0 0
  %663 = vmatpush1.bf16.msra.mxu0 %v473
  %664 = vmatprep.subr.bf16.mxu0 0
  %665 = vmatpush1.bf16.msra.mxu0 %v474
  %666 = vmatprep.subr.bf16.mxu0 0
  %667 = vmatpush1.bf16.msra.mxu0 %v475
  %668 = vmatprep.mubr.bf16.mxu0 %v161
  %669 = vmatmul.mubr.bf16.gmra.mrb[0].mxu0 %v160
  %v670 = vpop.f32.mrb[0].mxu0
  %v671 = vadd.f32 %v631, %v670
  %v672 = vpop.f32.mrb[0].mxu0
  %v673 = vpop.f32.mrb[0].mxu0
  %v674 = vpop.f32.mrb[0].mxu0
  %675 = vdwg.mxu0
  %676 = vmatprep.subr.bf16.mxu0 0
  %677 = vmatpush1.bf16.msra.mxu0 %v476
  %678 = vmatprep.subr.bf16.mxu0 0
  %679 = vmatpush1.bf16.msra.mxu0 %v477
  %680 = vmatprep.subr.bf16.mxu0 0
  %681 = vmatpush1.bf16.msra.mxu0 %v478
  %682 = vmatprep.subr.bf16.mxu0 0
  %683 = vmatpush1.bf16.msra.mxu0 %v479
  %684 = vmatprep.subr.bf16.mxu0 0
  %685 = vmatpush1.bf16.msra.mxu0 %v480
  %686 = vmatprep.subr.bf16.mxu0 0
  %687 = vmatpush1.bf16.msra.mxu0 %v481
  %688 = vmatprep.subr.bf16.mxu0 0
  %689 = vmatpush1.bf16.msra.mxu0 %v482
  %690 = vmatprep.subr.bf16.mxu0 0
  %691 = vmatpush1.bf16.msra.mxu0 %v483
  %692 = vmatprep.subr.bf16.mxu0 0
  %693 = vmatpush1.bf16.msra.mxu0 %v484
  %694 = vmatprep.subr.bf16.mxu0 0
  %695 = vmatpush1.bf16.msra.mxu0 %v485
  %696 = vmatprep.subr.bf16.mxu0 0
  %697 = vmatpush1.bf16.msra.mxu0 %v486
  %698 = vmatprep.subr.bf16.mxu0 0
  %699 = vmatpush1.bf16.msra.mxu0 %v487
  %700 = vmatprep.subr.bf16.mxu0 0
  %701 = vmatpush1.bf16.msra.mxu0 %v488
  %702 = vmatprep.subr.bf16.mxu0 0
  %703 = vmatpush1.bf16.msra.mxu0 %v489
  %704 = vmatprep.subr.bf16.mxu0 0
  %705 = vmatpush1.bf16.msra.mxu0 %v490
  %706 = vmatprep.subr.bf16.mxu0 0
  %707 = vmatpush1.bf16.msra.mxu0 %v491
  %708 = vmatprep.mubr.bf16.mxu0 %v163
  %709 = vmatmul.mubr.bf16.gmra.mrb[0].mxu0 %v162
  %v710 = vpop.f32.mrb[0].mxu0
  %v711 = vadd.f32 %v671, %v710
  %v712 = vpop.f32.mrb[0].mxu0
  %v713 = vpop.f32.mrb[0].mxu0
  %v714 = vpop.f32.mrb[0].mxu0
  %715 = vdwg.mxu0
  %vm716 = vcmask 1045504
  %v717 = vsel %vm716, %v711, -inf
  %v718 = vrot.slane %v717, 4
  %v719 = vmax.f32 %v717, %v718
  %v720 = vrot.slane %v719, 2
  %v721 = vmax.f32 %v719, %v720
  %v722 = vrot.slane %v721, 1
  %v723 = vmax.f32 %v721, %v722
  %v724 = vsub.f32 %v711, %v723
  %v725 = vmul.f32 %v724, 1.442695
  %v726 = vpow.pop %v725
  %v727 = vsel %vm716, %v726, 0.0
  %v728 = vrot.slane %v727, 4
  %v729 = vadd.f32 %v727, %v728
  %v730 = vrot.slane %v729, 2
  %v731 = vadd.f32 %v729, %v730
  %v732 = vrot.slane %v731, 1
  %v733 = vadd.f32 %v731, %v732
  %v734 = vrcp.pop %v733
  %v735 = vmul.f32 %v726, %v734
  %736 = vst [vmem:[%s2] sm:$0x3f] %v735
  // Predicated region
  $region10: #{model_forward.11} parent=0 // pred_check
    _
  $region11: #{model_forward.11} parent=0 // pred_check_branch
    %738 = sbr.rel (0) target = $region13
  $region12: #{model_forward.11} parent=0 // pred_region
    _
  $region13: #{model_forward.11} parent=0 // pred_fallthru
    _
  // Predicated region
  $region14: #{model_forward.11} parent=0 // pred_check
    _
  $region15: #{model_forward.11} parent=0 // pred_check_branch
    %740 = sbr.rel (0) target = $region17
  $region16: #{model_forward.11} parent=0 // pred_region
    _
  $region17: #{model_forward.11} parent=0 // pred_fallthru
    _

</llo_original>
